<compile_context>
chip_gen: v5e
topology: v5e:2x2
jax: 0.10.0
libtpu: 0.0.40
codegen_flags: <defaults>
</compile_context>

<pallas_src>
import jax
import jax.numpy as jnp
import numpy as np
from jax import lax
from jax.experimental import pallas as pl
from jax.experimental.pallas import tpu as pltpu


def _round_up(x, m):
    return (x + m - 1) // m * m


def basic_block_pallas(x_nhwc, w1_hwio, s1, b1, w2_hwio, s2, b2, *,
                       block_rows=16, vmem_limit_bytes=32 * 1024 * 1024):
    """x_nhwc: (N, H, W, Cin) f32; w*_hwio: (3,3,Cin,C); s*/b*: folded BN (C,).

    Returns (N, H, W, C) bf16 (bf16 writeback; cast outside if f32 is needed).
    """
    N, H, W, Cin = x_nhwc.shape
    C = w1_hwio.shape[-1]
    assert Cin == C, "BasicBlock with downsample=None requires inplanes == planes"

    LANE = 128
    Cp = _round_up(C, LANE)
    Wp = _round_up(W + 2, 8)        # >= 2 zero cols on the right; multiple of 8 so
                                    # (rows, width) flattens with no relayout.

    # Row-block size: start big (amortize per-step overhead, shrink halo
    # amplification), shrink until the rough per-step VMEM estimate fits.
    TH = max(1, min(block_rows, H))

    def vmem_estimate(th):
        m1 = (th + 2) * Wp
        return (2 * (th + 4) * Wp * Cp * 2      # double-buffered input tile
                + 2 * 2 * 9 * Cp * Cp * 2       # conv weights (x2 buffers)
                + 2 * th * W * Cp * 2           # double-buffered output block
                + 6 * m1 * Cp * 4)              # live f32 partials / temporaries

    while TH > 4 and vmem_estimate(TH) > int(0.75 * vmem_limit_bytes):
        TH = max(4, TH // 2)

    Hp = _round_up(H, TH)           # awkward H -> pad rows, mask in kernel
    num_i = Hp // TH

    R1 = TH + 2                     # conv1 output rows kept per tile (conv2 halo)
    M1 = R1 * Wp
    M2 = TH * Wp
    SROWS = (TH + 4) * Wp           # flattened rows of one input tile (incl. halo)

    # ---- one-time reformat: 2 zero halo rows top / 2+remainder bottom, >=2 zero
    # cols right, channels padded to Cp, bf16, (row, col) flattened. ----
    xpad = jnp.pad(x_nhwc.astype(jnp.bfloat16),
                   ((0, 0), (2, Hp - H + 2), (0, Wp - W), (0, Cp - Cin)))
    xflat = xpad.reshape(N, (Hp + 4) * Wp, Cp)

    def pad_w(w):
        w = jnp.pad(w, ((0, 0), (0, 0), (0, Cp - w.shape[2]), (0, Cp - w.shape[3])))
        return w.reshape(9, Cp, Cp).astype(jnp.bfloat16)   # tap-major (dy*3+dx)

    def pad_v(v):
        return jnp.pad(jnp.reshape(v, (-1,)).astype(jnp.float32),
                       (0, Cp - C)).reshape(1, Cp)

    w1p, w2p = pad_w(w1_hwio), pad_w(w2_hwio)
    s1p, b1p, s2p, b2p = pad_v(s1), pad_v(b1), pad_v(s2), pad_v(b2)

    def conv3x3(x2, w_ref):
        """3x3 conv over a flattened (rows*Wp, Cp) bf16 tile value.

        Contiguous sublane-aligned row slabs feed 9 K=Cp MXU matmuls; the dx
        column shift is realized with two f32 sublane rolls whose wraparound
        lands only on zero pad columns (exact for the consumed columns).
        """
        rows_out = x2.shape[0] - 2 * Wp
        slabs = [x2[dy * Wp: dy * Wp + rows_out, :] for dy in range(3)]
        parts = []
        for dx in range(3):
            acc = jnp.zeros((rows_out, Cp), jnp.float32)
            for dy in range(3):
                acc = acc + jnp.dot(slabs[dy], w_ref[dy * 3 + dx],
                                    preferred_element_type=jnp.float32)
            parts.append(acc)
        return (parts[1]
                + pltpu.roll(parts[0], 1, axis=0)                 # dx = 0 tap
                + pltpu.roll(parts[2], rows_out - 1, axis=0))     # dx = 2 tap

    def kernel(x_hbm, w1_ref, s1_ref, b1_ref, w2_ref, s2_ref, b2_ref,
               out_ref, xtile, dma_sem):
        n = pl.program_id(0)
        i = pl.program_id(1)
        slot = i % 2

        def fetch(i_blk, dst_slot):
            start = pl.multiple_of(i_blk * (TH * Wp), TH * Wp)
            pltpu.make_async_copy(
                x_hbm.at[n, pl.ds(start, SROWS), :],
                xtile.at[dst_slot], dma_sem.at[dst_slot]).start()

        # Prime the pipeline at the start of each batch element's row sweep, then
        # keep one row-block prefetched ahead of compute (double buffered).
        @pl.when(i == 0)
        def _():
            fetch(0, 0)

        @pl.when(i + 1 < num_i)
        def _():
            fetch(i + 1, (i + 1) % 2)

        pltpu.make_async_copy(
            x_hbm.at[n, pl.ds(pl.multiple_of(i * (TH * Wp), TH * Wp), SROWS), :],
            xtile.at[slot], dma_sem.at[slot]).wait()

        x2 = xtile[slot]                                      # (SROWS, Cp) bf16

        # ---- conv1 + bn1 + relu ----
        acc1 = conv3x3(x2, w1_ref)                            # (M1, Cp) f32
        h1 = jnp.maximum(acc1 * s1_ref[...] + b1_ref[...], 0.0)
        # Zero everything outside the valid image so conv2 sees true zero padding
        # (global row indices -> also correct at image borders and when Hp > H).
        h1 = h1.reshape(R1, Wp, Cp)
        r_ix = lax.broadcasted_iota(jnp.int32, (R1, Wp, 1), 0)
        c_ix = lax.broadcasted_iota(jnp.int32, (R1, Wp, 1), 1)
        g_row = r_ix + (i * TH - 1)
        valid = (g_row >= 0) & (g_row < H) & (c_ix < W)
        mid = jnp.where(valid, h1, 0.0).reshape(M1, Cp).astype(jnp.bfloat16)

        # ---- conv2 + bn2 + residual + relu ----
        acc2 = conv3x3(mid, w2_ref)                           # (M2, Cp) f32
        h2 = acc2 * s2_ref[...] + b2_ref[...]
        res = x2[2 * Wp: 2 * Wp + M2, :].astype(jnp.float32)  # aligned slab
        y = jnp.maximum(h2 + res, 0.0).reshape(TH, Wp, Cp)
        out_ref[...] = y[:, :W, :].reshape(1, TH, W, Cp).astype(out_ref.dtype)

    flops = 2 * 2 * 9 * N * Hp * Wp * Cp * Cp
    bytes_accessed = (N * (Hp + 4) * Wp * Cp * 2      # input (bf16)
                      + 2 * 9 * Cp * Cp * 2           # weights (bf16)
                      + 4 * 4 * Cp                    # scale / bias (f32)
                      + N * Hp * W * Cp * 2)          # output (bf16)

    const3 = lambda n, i: (0, 0, 0)
    const2 = lambda n, i: (0, 0)

    out_padded = pl.pallas_call(
        kernel,
        out_shape=jax.ShapeDtypeStruct((N, Hp, W, Cp), jnp.bfloat16),
        grid=(N, num_i),
        in_specs=[
            pl.BlockSpec(memory_space=pl.ANY),     # flattened padded input (manual DMA)
            pl.BlockSpec((9, Cp, Cp), const3),     # w1 (VMEM resident across grid)
            pl.BlockSpec((1, Cp), const2),         # s1
            pl.BlockSpec((1, Cp), const2),         # b1
            pl.BlockSpec((9, Cp, Cp), const3),     # w2
            pl.BlockSpec((1, Cp), const2),         # s2
            pl.BlockSpec((1, Cp), const2),         # b2
        ],
        out_specs=pl.BlockSpec((1, TH, W, Cp), lambda n, i: (n, i, 0, 0)),
        scratch_shapes=[
            pltpu.VMEM((2, SROWS, Cp), jnp.bfloat16),   # double-buffered input tile
            pltpu.SemaphoreType.DMA((2,)),
        ],
        compiler_params=pltpu.CompilerParams(
            dimension_semantics=("parallel", "arbitrary"),
            vmem_limit_bytes=vmem_limit_bytes),
        cost_estimate=pl.CostEstimate(flops=flops, transcendentals=0,
                                      bytes_accessed=bytes_accessed),
    )(xflat, w1p, s1p, b1p, w2p, s2p, b2p)

    # Trim row / channel padding (only needed when not chaining padded blocks).
    return out_padded[:, :H, :, :C]


def _fold_bn(gamma, beta, mean, var, eps=1e-5):
    scale = gamma / jnp.sqrt(var + eps)
    bias = beta - mean * scale
    return scale, bias


def _reference_forward(x_nhwc, w1_hwio, bn1, w2_hwio, bn2, eps=1e-5):
    """Plain-JAX f32 reference (eval-mode BN), used only to validate the kernel."""
    def conv(x, w):
        return jax.lax.conv_general_dilated(
            x, w, window_strides=(1, 1), padding=((1, 1), (1, 1)),
            dimension_numbers=("NHWC", "HWIO", "NHWC"))

    def bn(x, p):
        g, b, m, v = p
        return (x - m) / jnp.sqrt(v + eps) * g + b

    out = jax.nn.relu(bn(conv(x_nhwc, w1_hwio), bn1))
    out = bn(conv(out, w2_hwio), bn2)
    return jax.nn.relu(out + x_nhwc)


if __name__ == "__main__":
    key = jax.random.PRNGKey(0)
    N, C_in, H, W = 2, 4, 16, 16       # inplanes == planes (downsample=None)
    C = C_in
    keys = jax.random.split(key, 11)

    # PyTorch-style NCHW input -> NHWC for the kernel.
    x_nchw = jax.random.normal(keys[0], (N, C_in, H, W), jnp.float32)
    x_nhwc = jnp.transpose(x_nchw, (0, 2, 3, 1))

    # Deterministic parameter init (conv weights HWIO; BN eval-mode stats).
    w1_hwio = jax.random.normal(keys[1], (3, 3, C_in, C), jnp.float32) * 0.1
    w2_hwio = jax.random.normal(keys[2], (3, 3, C, C), jnp.float32) * 0.1
    gamma1 = 1.0 + 0.1 * jax.random.normal(keys[3], (C,), jnp.float32)
    beta1 = 0.1 * jax.random.normal(keys[4], (C,), jnp.float32)
    mean1 = 0.1 * jax.random.normal(keys[5], (C,), jnp.float32)
    var1 = 0.5 + jax.random.uniform(keys[6], (C,), jnp.float32)
    gamma2 = 1.0 + 0.1 * jax.random.normal(keys[7], (C,), jnp.float32)
    beta2 = 0.1 * jax.random.normal(keys[8], (C,), jnp.float32)
    mean2 = 0.1 * jax.random.normal(keys[9], (C,), jnp.float32)
    var2 = 0.5 + jax.random.uniform(keys[10], (C,), jnp.float32)

    s1, b1 = _fold_bn(gamma1, beta1, mean1, var1)
    s2, b2 = _fold_bn(gamma2, beta2, mean2, var2)

    out = basic_block_pallas(x_nhwc, w1_hwio, s1, b1, w2_hwio, s2, b2)
    out = jax.block_until_ready(out)

    ref = _reference_forward(
        x_nhwc, w1_hwio, (gamma1, beta1, mean1, var1),
        w2_hwio, (gamma2, beta2, mean2, var2))
    ref = jax.block_until_ready(ref)

    # bf16 MXU inputs / bf16 skip connection / bf16 output with f32 accumulation
    # -> loosened tolerance vs the f32 reference.
    np.testing.assert_allclose(np.asarray(out, np.float32), np.asarray(ref),
                               rtol=5e-2, atol=5e-2)
    print("KERNEL_OK")
</pallas_src>

<mosaic_0001>
module attributes {stable_mosaic.version = 11 : i64} {
  func.func @kernel(%arg0: i32, %arg1: i32, %arg2: memref<2x480x128xbf16, #tpu.memory_space<any>>, %arg3: memref<9x128x128xbf16, #tpu.memory_space<vmem>>, %arg4: memref<1x128xf32, #tpu.memory_space<vmem>>, %arg5: memref<1x128xf32, #tpu.memory_space<vmem>>, %arg6: memref<9x128x128xbf16, #tpu.memory_space<vmem>>, %arg7: memref<1x128xf32, #tpu.memory_space<vmem>>, %arg8: memref<1x128xf32, #tpu.memory_space<vmem>>, %arg9: memref<1x16x16x128xbf16, #tpu.memory_space<vmem>>, %arg10: memref<2x480x128xbf16, #tpu.memory_space<vmem>>, %arg11: memref<2x!tpu.dma_semaphore, #tpu.memory_space<semaphore_mem>>) attributes {dimension_semantics = [#tpu.dimension_semantics<parallel>, #tpu.dimension_semantics<arbitrary>], iteration_bounds = array<i64: 2, 1>, scalar_prefetch = 0 : i64, scratch_operands = 2 : i64, tpu.core_type = #tpu.core_type<tc>, window_params = [{}, {pipeline_mode = #tpu.pipeline_mode<synchronous>, transform_indices = @transform_1, window_bounds = array<i64: 9, 128, 128>}, {pipeline_mode = #tpu.pipeline_mode<synchronous>, transform_indices = @transform_2, window_bounds = array<i64: 1, 128>}, {pipeline_mode = #tpu.pipeline_mode<synchronous>, transform_indices = @transform_3, window_bounds = array<i64: 1, 128>}, {pipeline_mode = #tpu.pipeline_mode<synchronous>, transform_indices = @transform_4, window_bounds = array<i64: 9, 128, 128>}, {pipeline_mode = #tpu.pipeline_mode<synchronous>, transform_indices = @transform_5, window_bounds = array<i64: 1, 128>}, {pipeline_mode = #tpu.pipeline_mode<synchronous>, transform_indices = @transform_6, window_bounds = array<i64: 1, 128>}, {transform_indices = @transform_7, window_bounds = array<i64: 1, 16, 16, 128>}]} {
    %c2_i32 = arith.constant 2 : i32
    %c0_i32 = arith.constant 0 : i32
    %0 = arith.cmpi eq, %c2_i32, %c0_i32 : i32
    %c1_i32 = arith.constant 1 : i32
    %1 = arith.select %0, %c1_i32, %c2_i32 : i32
    %2 = arith.remsi %arg1, %1 : i32
    %c0_i32_0 = arith.constant 0 : i32
    %3 = arith.cmpi ne, %2, %c0_i32_0 : i32
    %c0_i32_1 = arith.constant 0 : i32
    %4 = arith.cmpi slt, %2, %c0_i32_1 : i32
    %c0_i32_2 = arith.constant 0 : i32
    %5 = arith.cmpi slt, %1, %c0_i32_2 : i32
    %6 = arith.xori %4, %5 : i1
    %7 = arith.andi %6, %3 : i1
    %8 = arith.addi %2, %1 : i32
    %9 = arith.select %7, %8, %2 : i32
    %c0_i32_3 = arith.constant 0 : i32
    %10 = arith.cmpi eq, %arg1, %c0_i32_3 : i32
    %11 = arith.extui %10 : i1 to i32
    %c0_i32_4 = arith.constant 0 : i32
    %12 = arith.cmpi ne, %11, %c0_i32_4 : i32
    scf.if %12 {
      %c0_i32_102 = arith.constant 0 : i32
      %165 = tpu.assume_multiple %c0_i32_102, 384 : i32
      %c0_i32_103 = arith.constant 0 : i32
      %c0_i32_104 = arith.constant 0 : i32
      %c0_i32_105 = arith.constant 0 : i32
      %166 = tpu.memref_slice %arg2[%arg0, %165, %c0_i32_105] : memref<2x480x128xbf16, #tpu.memory_space<any>> -> memref<1x480x128xbf16, #tpu.memory_space<any>>
      %167 = tpu.memref_squeeze %166 : memref<1x480x128xbf16, #tpu.memory_space<any>> -> memref<480x128xbf16, #tpu.memory_space<any>>
      %c0_i32_106 = arith.constant 0 : i32
      %c0_i32_107 = arith.constant 0 : i32
      %168 = tpu.memref_slice %arg10[%c0_i32_103, %c0_i32_106, %c0_i32_107] : memref<2x480x128xbf16, #tpu.memory_space<vmem>> -> memref<1x480x128xbf16, #tpu.memory_space<vmem>>
      %169 = tpu.memref_squeeze %168 : memref<1x480x128xbf16, #tpu.memory_space<vmem>> -> memref<480x128xbf16, #tpu.memory_space<vmem>>
      %170 = tpu.memref_slice %arg11[%c0_i32_104] : memref<2x!tpu.dma_semaphore, #tpu.memory_space<semaphore_mem>> -> memref<1x!tpu.dma_semaphore, #tpu.memory_space<semaphore_mem>>
      %171 = tpu.memref_squeeze %170 : memref<1x!tpu.dma_semaphore, #tpu.memory_space<semaphore_mem>> -> memref<!tpu.dma_semaphore, #tpu.memory_space<semaphore_mem>>
      tpu.enqueue_dma source(%167 : memref<480x128xbf16, #tpu.memory_space<any>>) target(%169 : memref<480x128xbf16, #tpu.memory_space<vmem>>) target_semaphore(%171 : memref<!tpu.dma_semaphore, #tpu.memory_space<semaphore_mem>>)
    } else {
    }
    %c1_i32_5 = arith.constant 1 : i32
    %13 = arith.addi %arg1, %c1_i32_5 : i32
    %c1_i32_6 = arith.constant 1 : i32
    %14 = arith.cmpi slt, %13, %c1_i32_6 : i32
    %15 = arith.extui %14 : i1 to i32
    %c0_i32_7 = arith.constant 0 : i32
    %16 = arith.cmpi ne, %15, %c0_i32_7 : i32
    scf.if %16 {
      %c1_i32_102 = arith.constant 1 : i32
      %165 = arith.addi %arg1, %c1_i32_102 : i32
      %c1_i32_103 = arith.constant 1 : i32
      %166 = arith.addi %arg1, %c1_i32_103 : i32
      %c2_i32_104 = arith.constant 2 : i32
      %c0_i32_105 = arith.constant 0 : i32
      %167 = arith.cmpi eq, %c2_i32_104, %c0_i32_105 : i32
      %c1_i32_106 = arith.constant 1 : i32
      %168 = arith.select %167, %c1_i32_106, %c2_i32_104 : i32
      %169 = arith.remsi %166, %168 : i32
      %c0_i32_107 = arith.constant 0 : i32
      %170 = arith.cmpi ne, %169, %c0_i32_107 : i32
      %c0_i32_108 = arith.constant 0 : i32
      %171 = arith.cmpi slt, %169, %c0_i32_108 : i32
      %c0_i32_109 = arith.constant 0 : i32
      %172 = arith.cmpi slt, %168, %c0_i32_109 : i32
      %173 = arith.xori %171, %172 : i1
      %174 = arith.andi %173, %170 : i1
      %175 = arith.addi %169, %168 : i32
      %176 = arith.select %174, %175, %169 : i32
      %c384_i32_110 = arith.constant 384 : i32
      %177 = arith.muli %165, %c384_i32_110 : i32
      %178 = tpu.assume_multiple %177, 384 : i32
      %c0_i32_111 = arith.constant 0 : i32
      %179 = tpu.memref_slice %arg2[%arg0, %178, %c0_i32_111] : memref<2x480x128xbf16, #tpu.memory_space<any>> -> memref<1x480x128xbf16, #tpu.memory_space<any>>
      %180 = tpu.memref_squeeze %179 : memref<1x480x128xbf16, #tpu.memory_space<any>> -> memref<480x128xbf16, #tpu.memory_space<any>>
      %c0_i32_112 = arith.constant 0 : i32
      %c0_i32_113 = arith.constant 0 : i32
      %181 = tpu.memref_slice %arg10[%176, %c0_i32_112, %c0_i32_113] : memref<2x480x128xbf16, #tpu.memory_space<vmem>> -> memref<1x480x128xbf16, #tpu.memory_space<vmem>>
      %182 = tpu.memref_squeeze %181 : memref<1x480x128xbf16, #tpu.memory_space<vmem>> -> memref<480x128xbf16, #tpu.memory_space<vmem>>
      %183 = tpu.memref_slice %arg11[%176] : memref<2x!tpu.dma_semaphore, #tpu.memory_space<semaphore_mem>> -> memref<1x!tpu.dma_semaphore, #tpu.memory_space<semaphore_mem>>
      %184 = tpu.memref_squeeze %183 : memref<1x!tpu.dma_semaphore, #tpu.memory_space<semaphore_mem>> -> memref<!tpu.dma_semaphore, #tpu.memory_space<semaphore_mem>>
      tpu.enqueue_dma source(%180 : memref<480x128xbf16, #tpu.memory_space<any>>) target(%182 : memref<480x128xbf16, #tpu.memory_space<vmem>>) target_semaphore(%184 : memref<!tpu.dma_semaphore, #tpu.memory_space<semaphore_mem>>)
    } else {
    }
    %c384_i32 = arith.constant 384 : i32
    %17 = arith.muli %arg1, %c384_i32 : i32
    %18 = tpu.assume_multiple %17, 384 : i32
    %c0_i32_8 = arith.constant 0 : i32
    %19 = tpu.memref_slice %arg2[%arg0, %18, %c0_i32_8] : memref<2x480x128xbf16, #tpu.memory_space<any>> -> memref<1x480x128xbf16, #tpu.memory_space<any>>
    %20 = tpu.memref_squeeze %19 : memref<1x480x128xbf16, #tpu.memory_space<any>> -> memref<480x128xbf16, #tpu.memory_space<any>>
    %c0_i32_9 = arith.constant 0 : i32
    %c0_i32_10 = arith.constant 0 : i32
    %21 = tpu.memref_slice %arg10[%9, %c0_i32_9, %c0_i32_10] : memref<2x480x128xbf16, #tpu.memory_space<vmem>> -> memref<1x480x128xbf16, #tpu.memory_space<vmem>>
    %22 = tpu.memref_squeeze %21 : memref<1x480x128xbf16, #tpu.memory_space<vmem>> -> memref<480x128xbf16, #tpu.memory_space<vmem>>
    %23 = tpu.memref_slice %arg11[%9] : memref<2x!tpu.dma_semaphore, #tpu.memory_space<semaphore_mem>> -> memref<1x!tpu.dma_semaphore, #tpu.memory_space<semaphore_mem>>
    %24 = tpu.memref_squeeze %23 : memref<1x!tpu.dma_semaphore, #tpu.memory_space<semaphore_mem>> -> memref<!tpu.dma_semaphore, #tpu.memory_space<semaphore_mem>>
    tpu.wait_dma2 semaphore(%24 : memref<!tpu.dma_semaphore, #tpu.memory_space<semaphore_mem>>) src(%20 : memref<480x128xbf16, #tpu.memory_space<any>>) dst(%22 : memref<480x128xbf16, #tpu.memory_space<vmem>>)
    %25 = arith.index_cast %9 : i32 to index
    %c0 = arith.constant 0 : index
    %c0_11 = arith.constant 0 : index
    %26 = vector.load %arg10[%25, %c0, %c0_11] : memref<2x480x128xbf16, #tpu.memory_space<vmem>>, vector<1x480x128xbf16>
    %27 = vector.shape_cast %26 : vector<1x480x128xbf16> to vector<480x128xbf16>
    %28 = vector.extract_strided_slice %27 {offsets = [0, 0], sizes = [432, 128], strides = [1, 1]} : vector<480x128xbf16> to vector<432x128xbf16>
    %29 = vector.extract_strided_slice %27 {offsets = [24, 0], sizes = [432, 128], strides = [1, 1]} : vector<480x128xbf16> to vector<432x128xbf16>
    %30 = vector.extract_strided_slice %27 {offsets = [48, 0], sizes = [432, 128], strides = [1, 1]} : vector<480x128xbf16> to vector<432x128xbf16>
    %cst = arith.constant 0.000000e+00 : f32
    %31 = vector.broadcast %cst : f32 to vector<432x128xf32>
    %c0_12 = arith.constant 0 : index
    %c0_13 = arith.constant 0 : index
    %c0_14 = arith.constant 0 : index
    %32 = vector.load %arg3[%c0_12, %c0_13, %c0_14] : memref<9x128x128xbf16, #tpu.memory_space<vmem>>, vector<1x128x128xbf16>
    %33 = vector.shape_cast %32 : vector<1x128x128xbf16> to vector<128x128xbf16>
    %cst_15 = arith.constant dense<0.000000e+00> : vector<432x128xf32>
    %34 = tpu.matmul %28, %33, %cst_15 {dimension_numbers = #tpu.dot_dimension_numbers<[1], [0], [0], [1], [0, 0, 1, 1], [], []>} : vector<432x128xbf16>, vector<128x128xbf16>, vector<432x128xf32> -> vector<432x128xf32>
    %35 = arith.addf %31, %34 : vector<432x128xf32>
    %c3 = arith.constant 3 : index
    %c0_16 = arith.constant 0 : index
    %c0_17 = arith.constant 0 : index
    %36 = vector.load %arg3[%c3, %c0_16, %c0_17] : memref<9x128x128xbf16, #tpu.memory_space<vmem>>, vector<1x128x128xbf16>
    %37 = vector.shape_cast %36 : vector<1x128x128xbf16> to vector<128x128xbf16>
    %cst_18 = arith.constant dense<0.000000e+00> : vector<432x128xf32>
    %38 = tpu.matmul %29, %37, %cst_18 {dimension_numbers = #tpu.dot_dimension_numbers<[1], [0], [0], [1], [0, 0, 1, 1], [], []>} : vector<432x128xbf16>, vector<128x128xbf16>, vector<432x128xf32> -> vector<432x128xf32>
    %39 = arith.addf %35, %38 : vector<432x128xf32>
    %c6 = arith.constant 6 : index
    %c0_19 = arith.constant 0 : index
    %c0_20 = arith.constant 0 : index
    %40 = vector.load %arg3[%c6, %c0_19, %c0_20] : memref<9x128x128xbf16, #tpu.memory_space<vmem>>, vector<1x128x128xbf16>
    %41 = vector.shape_cast %40 : vector<1x128x128xbf16> to vector<128x128xbf16>
    %cst_21 = arith.constant dense<0.000000e+00> : vector<432x128xf32>
    %42 = tpu.matmul %30, %41, %cst_21 {dimension_numbers = #tpu.dot_dimension_numbers<[1], [0], [0], [1], [0, 0, 1, 1], [], []>} : vector<432x128xbf16>, vector<128x128xbf16>, vector<432x128xf32> -> vector<432x128xf32>
    %43 = arith.addf %39, %42 : vector<432x128xf32>
    %cst_22 = arith.constant 0.000000e+00 : f32
    %44 = vector.broadcast %cst_22 : f32 to vector<432x128xf32>
    %c1 = arith.constant 1 : index
    %c0_23 = arith.constant 0 : index
    %c0_24 = arith.constant 0 : index
    %45 = vector.load %arg3[%c1, %c0_23, %c0_24] : memref<9x128x128xbf16, #tpu.memory_space<vmem>>, vector<1x128x128xbf16>
    %46 = vector.shape_cast %45 : vector<1x128x128xbf16> to vector<128x128xbf16>
    %cst_25 = arith.constant dense<0.000000e+00> : vector<432x128xf32>
    %47 = tpu.matmul %28, %46, %cst_25 {dimension_numbers = #tpu.dot_dimension_numbers<[1], [0], [0], [1], [0, 0, 1, 1], [], []>} : vector<432x128xbf16>, vector<128x128xbf16>, vector<432x128xf32> -> vector<432x128xf32>
    %48 = arith.addf %44, %47 : vector<432x128xf32>
    %c4 = arith.constant 4 : index
    %c0_26 = arith.constant 0 : index
    %c0_27 = arith.constant 0 : index
    %49 = vector.load %arg3[%c4, %c0_26, %c0_27] : memref<9x128x128xbf16, #tpu.memory_space<vmem>>, vector<1x128x128xbf16>
    %50 = vector.shape_cast %49 : vector<1x128x128xbf16> to vector<128x128xbf16>
    %cst_28 = arith.constant dense<0.000000e+00> : vector<432x128xf32>
    %51 = tpu.matmul %29, %50, %cst_28 {dimension_numbers = #tpu.dot_dimension_numbers<[1], [0], [0], [1], [0, 0, 1, 1], [], []>} : vector<432x128xbf16>, vector<128x128xbf16>, vector<432x128xf32> -> vector<432x128xf32>
    %52 = arith.addf %48, %51 : vector<432x128xf32>
    %c7 = arith.constant 7 : index
    %c0_29 = arith.constant 0 : index
    %c0_30 = arith.constant 0 : index
    %53 = vector.load %arg3[%c7, %c0_29, %c0_30] : memref<9x128x128xbf16, #tpu.memory_space<vmem>>, vector<1x128x128xbf16>
    %54 = vector.shape_cast %53 : vector<1x128x128xbf16> to vector<128x128xbf16>
    %cst_31 = arith.constant dense<0.000000e+00> : vector<432x128xf32>
    %55 = tpu.matmul %30, %54, %cst_31 {dimension_numbers = #tpu.dot_dimension_numbers<[1], [0], [0], [1], [0, 0, 1, 1], [], []>} : vector<432x128xbf16>, vector<128x128xbf16>, vector<432x128xf32> -> vector<432x128xf32>
    %56 = arith.addf %52, %55 : vector<432x128xf32>
    %cst_32 = arith.constant 0.000000e+00 : f32
    %57 = vector.broadcast %cst_32 : f32 to vector<432x128xf32>
    %c2 = arith.constant 2 : index
    %c0_33 = arith.constant 0 : index
    %c0_34 = arith.constant 0 : index
    %58 = vector.load %arg3[%c2, %c0_33, %c0_34] : memref<9x128x128xbf16, #tpu.memory_space<vmem>>, vector<1x128x128xbf16>
    %59 = vector.shape_cast %58 : vector<1x128x128xbf16> to vector<128x128xbf16>
    %cst_35 = arith.constant dense<0.000000e+00> : vector<432x128xf32>
    %60 = tpu.matmul %28, %59, %cst_35 {dimension_numbers = #tpu.dot_dimension_numbers<[1], [0], [0], [1], [0, 0, 1, 1], [], []>} : vector<432x128xbf16>, vector<128x128xbf16>, vector<432x128xf32> -> vector<432x128xf32>
    %61 = arith.addf %57, %60 : vector<432x128xf32>
    %c5 = arith.constant 5 : index
    %c0_36 = arith.constant 0 : index
    %c0_37 = arith.constant 0 : index
    %62 = vector.load %arg3[%c5, %c0_36, %c0_37] : memref<9x128x128xbf16, #tpu.memory_space<vmem>>, vector<1x128x128xbf16>
    %63 = vector.shape_cast %62 : vector<1x128x128xbf16> to vector<128x128xbf16>
    %cst_38 = arith.constant dense<0.000000e+00> : vector<432x128xf32>
    %64 = tpu.matmul %29, %63, %cst_38 {dimension_numbers = #tpu.dot_dimension_numbers<[1], [0], [0], [1], [0, 0, 1, 1], [], []>} : vector<432x128xbf16>, vector<128x128xbf16>, vector<432x128xf32> -> vector<432x128xf32>
    %65 = arith.addf %61, %64 : vector<432x128xf32>
    %c8 = arith.constant 8 : index
    %c0_39 = arith.constant 0 : index
    %c0_40 = arith.constant 0 : index
    %66 = vector.load %arg3[%c8, %c0_39, %c0_40] : memref<9x128x128xbf16, #tpu.memory_space<vmem>>, vector<1x128x128xbf16>
    %67 = vector.shape_cast %66 : vector<1x128x128xbf16> to vector<128x128xbf16>
    %cst_41 = arith.constant dense<0.000000e+00> : vector<432x128xf32>
    %68 = tpu.matmul %30, %67, %cst_41 {dimension_numbers = #tpu.dot_dimension_numbers<[1], [0], [0], [1], [0, 0, 1, 1], [], []>} : vector<432x128xbf16>, vector<128x128xbf16>, vector<432x128xf32> -> vector<432x128xf32>
    %69 = arith.addf %65, %68 : vector<432x128xf32>
    %c1_i32_42 = arith.constant 1 : i32
    %70 = tpu.dynamic_rotate %43 by %c1_i32_42 dim 0 : vector<432x128xf32>, i32 -> vector<432x128xf32>
    %71 = arith.addf %56, %70 : vector<432x128xf32>
    %c431_i32 = arith.constant 431 : i32
    %72 = tpu.dynamic_rotate %69 by %c431_i32 dim 0 : vector<432x128xf32>, i32 -> vector<432x128xf32>
    %73 = arith.addf %71, %72 : vector<432x128xf32>
    %c0_43 = arith.constant 0 : index
    %c0_44 = arith.constant 0 : index
    %74 = vector.load %arg4[%c0_43, %c0_44] : memref<1x128xf32, #tpu.memory_space<vmem>>, vector<1x128xf32>
    %75 = vector.broadcast %74 : vector<1x128xf32> to vector<432x128xf32>
    %76 = arith.mulf %73, %75 : vector<432x128xf32>
    %c0_45 = arith.constant 0 : index
    %c0_46 = arith.constant 0 : index
    %77 = vector.load %arg5[%c0_45, %c0_46] : memref<1x128xf32, #tpu.memory_space<vmem>>, vector<1x128xf32>
    %78 = vector.broadcast %77 : vector<1x128xf32> to vector<432x128xf32>
    %79 = arith.addf %76, %78 : vector<432x128xf32>
    %cst_47 = arith.constant 0.000000e+00 : f32
    %80 = vector.broadcast %cst_47 : f32 to vector<432x128xf32>
    %81 = arith.maximumf %79, %80 : vector<432x128xf32>
    %82 = vector.shape_cast %81 : vector<432x128xf32> to vector<18x24x128xf32>
    %83 = tpu.iota {dimensions = array<i32: 0>} : vector<18x24x1xi32>
    %84 = tpu.iota {dimensions = array<i32: 1>} : vector<18x24x1xi32>
    %c16_i32 = arith.constant 16 : i32
    %85 = arith.muli %arg1, %c16_i32 : i32
    %c1_i32_48 = arith.constant 1 : i32
    %86 = arith.subi %85, %c1_i32_48 : i32
    %87 = vector.broadcast %86 : i32 to vector<18x24x1xi32>
    %88 = arith.addi %83, %87 : vector<18x24x1xi32>
    %c0_i32_49 = arith.constant 0 : i32
    %89 = vector.broadcast %c0_i32_49 : i32 to vector<18x24x1xi32>
    %90 = arith.cmpi sge, %88, %89 : vector<18x24x1xi32>
    %c16_i32_50 = arith.constant 16 : i32
    %91 = vector.broadcast %c16_i32_50 : i32 to vector<18x24x1xi32>
    %92 = arith.cmpi slt, %88, %91 : vector<18x24x1xi32>
    %93 = arith.andi %90, %92 : vector<18x24x1xi1>
    %c16_i32_51 = arith.constant 16 : i32
    %94 = vector.broadcast %c16_i32_51 : i32 to vector<18x24x1xi32>
    %95 = arith.cmpi slt, %84, %94 : vector<18x24x1xi32>
    %96 = arith.andi %93, %95 : vector<18x24x1xi1>
    %cst_52 = arith.constant 0.000000e+00 : f32
    %97 = vector.shape_cast %96 : vector<18x24x1xi1> to vector<18x24x1xi1>
    %98 = vector.broadcast %97 : vector<18x24x1xi1> to vector<18x24x128xi1>
    %99 = vector.broadcast %cst_52 : f32 to vector<18x24x128xf32>
    %100 = arith.select %98, %82, %99 : vector<18x24x128xi1>, vector<18x24x128xf32>
    %101 = vector.shape_cast %100 : vector<18x24x128xf32> to vector<432x128xf32>
    %102 = arith.truncf %101 : vector<432x128xf32> to vector<432x128xbf16>
    %103 = vector.extract_strided_slice %102 {offsets = [0, 0], sizes = [384, 128], strides = [1, 1]} : vector<432x128xbf16> to vector<384x128xbf16>
    %104 = vector.extract_strided_slice %102 {offsets = [24, 0], sizes = [384, 128], strides = [1, 1]} : vector<432x128xbf16> to vector<384x128xbf16>
    %105 = vector.extract_strided_slice %102 {offsets = [48, 0], sizes = [384, 128], strides = [1, 1]} : vector<432x128xbf16> to vector<384x128xbf16>
    %cst_53 = arith.constant 0.000000e+00 : f32
    %106 = vector.broadcast %cst_53 : f32 to vector<384x128xf32>
    %c0_54 = arith.constant 0 : index
    %c0_55 = arith.constant 0 : index
    %c0_56 = arith.constant 0 : index
    %107 = vector.load %arg6[%c0_54, %c0_55, %c0_56] : memref<9x128x128xbf16, #tpu.memory_space<vmem>>, vector<1x128x128xbf16>
    %108 = vector.shape_cast %107 : vector<1x128x128xbf16> to vector<128x128xbf16>
    %cst_57 = arith.constant dense<0.000000e+00> : vector<384x128xf32>
    %109 = tpu.matmul %103, %108, %cst_57 {dimension_numbers = #tpu.dot_dimension_numbers<[1], [0], [0], [1], [0, 0, 1, 1], [], []>} : vector<384x128xbf16>, vector<128x128xbf16>, vector<384x128xf32> -> vector<384x128xf32>
    %110 = arith.addf %106, %109 : vector<384x128xf32>
    %c3_58 = arith.constant 3 : index
    %c0_59 = arith.constant 0 : index
    %c0_60 = arith.constant 0 : index
    %111 = vector.load %arg6[%c3_58, %c0_59, %c0_60] : memref<9x128x128xbf16, #tpu.memory_space<vmem>>, vector<1x128x128xbf16>
    %112 = vector.shape_cast %111 : vector<1x128x128xbf16> to vector<128x128xbf16>
    %cst_61 = arith.constant dense<0.000000e+00> : vector<384x128xf32>
    %113 = tpu.matmul %104, %112, %cst_61 {dimension_numbers = #tpu.dot_dimension_numbers<[1], [0], [0], [1], [0, 0, 1, 1], [], []>} : vector<384x128xbf16>, vector<128x128xbf16>, vector<384x128xf32> -> vector<384x128xf32>
    %114 = arith.addf %110, %113 : vector<384x128xf32>
    %c6_62 = arith.constant 6 : index
    %c0_63 = arith.constant 0 : index
    %c0_64 = arith.constant 0 : index
    %115 = vector.load %arg6[%c6_62, %c0_63, %c0_64] : memref<9x128x128xbf16, #tpu.memory_space<vmem>>, vector<1x128x128xbf16>
    %116 = vector.shape_cast %115 : vector<1x128x128xbf16> to vector<128x128xbf16>
    %cst_65 = arith.constant dense<0.000000e+00> : vector<384x128xf32>
    %117 = tpu.matmul %105, %116, %cst_65 {dimension_numbers = #tpu.dot_dimension_numbers<[1], [0], [0], [1], [0, 0, 1, 1], [], []>} : vector<384x128xbf16>, vector<128x128xbf16>, vector<384x128xf32> -> vector<384x128xf32>
    %118 = arith.addf %114, %117 : vector<384x128xf32>
    %cst_66 = arith.constant 0.000000e+00 : f32
    %119 = vector.broadcast %cst_66 : f32 to vector<384x128xf32>
    %c1_67 = arith.constant 1 : index
    %c0_68 = arith.constant 0 : index
    %c0_69 = arith.constant 0 : index
    %120 = vector.load %arg6[%c1_67, %c0_68, %c0_69] : memref<9x128x128xbf16, #tpu.memory_space<vmem>>, vector<1x128x128xbf16>
    %121 = vector.shape_cast %120 : vector<1x128x128xbf16> to vector<128x128xbf16>
    %cst_70 = arith.constant dense<0.000000e+00> : vector<384x128xf32>
    %122 = tpu.matmul %103, %121, %cst_70 {dimension_numbers = #tpu.dot_dimension_numbers<[1], [0], [0], [1], [0, 0, 1, 1], [], []>} : vector<384x128xbf16>, vector<128x128xbf16>, vector<384x128xf32> -> vector<384x128xf32>
    %123 = arith.addf %119, %122 : vector<384x128xf32>
    %c4_71 = arith.constant 4 : index
    %c0_72 = arith.constant 0 : index
    %c0_73 = arith.constant 0 : index
    %124 = vector.load %arg6[%c4_71, %c0_72, %c0_73] : memref<9x128x128xbf16, #tpu.memory_space<vmem>>, vector<1x128x128xbf16>
    %125 = vector.shape_cast %124 : vector<1x128x128xbf16> to vector<128x128xbf16>
    %cst_74 = arith.constant dense<0.000000e+00> : vector<384x128xf32>
    %126 = tpu.matmul %104, %125, %cst_74 {dimension_numbers = #tpu.dot_dimension_numbers<[1], [0], [0], [1], [0, 0, 1, 1], [], []>} : vector<384x128xbf16>, vector<128x128xbf16>, vector<384x128xf32> -> vector<384x128xf32>
    %127 = arith.addf %123, %126 : vector<384x128xf32>
    %c7_75 = arith.constant 7 : index
    %c0_76 = arith.constant 0 : index
    %c0_77 = arith.constant 0 : index
    %128 = vector.load %arg6[%c7_75, %c0_76, %c0_77] : memref<9x128x128xbf16, #tpu.memory_space<vmem>>, vector<1x128x128xbf16>
    %129 = vector.shape_cast %128 : vector<1x128x128xbf16> to vector<128x128xbf16>
    %cst_78 = arith.constant dense<0.000000e+00> : vector<384x128xf32>
    %130 = tpu.matmul %105, %129, %cst_78 {dimension_numbers = #tpu.dot_dimension_numbers<[1], [0], [0], [1], [0, 0, 1, 1], [], []>} : vector<384x128xbf16>, vector<128x128xbf16>, vector<384x128xf32> -> vector<384x128xf32>
    %131 = arith.addf %127, %130 : vector<384x128xf32>
    %cst_79 = arith.constant 0.000000e+00 : f32
    %132 = vector.broadcast %cst_79 : f32 to vector<384x128xf32>
    %c2_80 = arith.constant 2 : index
    %c0_81 = arith.constant 0 : index
    %c0_82 = arith.constant 0 : index
    %133 = vector.load %arg6[%c2_80, %c0_81, %c0_82] : memref<9x128x128xbf16, #tpu.memory_space<vmem>>, vector<1x128x128xbf16>
    %134 = vector.shape_cast %133 : vector<1x128x128xbf16> to vector<128x128xbf16>
    %cst_83 = arith.constant dense<0.000000e+00> : vector<384x128xf32>
    %135 = tpu.matmul %103, %134, %cst_83 {dimension_numbers = #tpu.dot_dimension_numbers<[1], [0], [0], [1], [0, 0, 1, 1], [], []>} : vector<384x128xbf16>, vector<128x128xbf16>, vector<384x128xf32> -> vector<384x128xf32>
    %136 = arith.addf %132, %135 : vector<384x128xf32>
    %c5_84 = arith.constant 5 : index
    %c0_85 = arith.constant 0 : index
    %c0_86 = arith.constant 0 : index
    %137 = vector.load %arg6[%c5_84, %c0_85, %c0_86] : memref<9x128x128xbf16, #tpu.memory_space<vmem>>, vector<1x128x128xbf16>
    %138 = vector.shape_cast %137 : vector<1x128x128xbf16> to vector<128x128xbf16>
    %cst_87 = arith.constant dense<0.000000e+00> : vector<384x128xf32>
    %139 = tpu.matmul %104, %138, %cst_87 {dimension_numbers = #tpu.dot_dimension_numbers<[1], [0], [0], [1], [0, 0, 1, 1], [], []>} : vector<384x128xbf16>, vector<128x128xbf16>, vector<384x128xf32> -> vector<384x128xf32>
    %140 = arith.addf %136, %139 : vector<384x128xf32>
    %c8_88 = arith.constant 8 : index
    %c0_89 = arith.constant 0 : index
    %c0_90 = arith.constant 0 : index
    %141 = vector.load %arg6[%c8_88, %c0_89, %c0_90] : memref<9x128x128xbf16, #tpu.memory_space<vmem>>, vector<1x128x128xbf16>
    %142 = vector.shape_cast %141 : vector<1x128x128xbf16> to vector<128x128xbf16>
    %cst_91 = arith.constant dense<0.000000e+00> : vector<384x128xf32>
    %143 = tpu.matmul %105, %142, %cst_91 {dimension_numbers = #tpu.dot_dimension_numbers<[1], [0], [0], [1], [0, 0, 1, 1], [], []>} : vector<384x128xbf16>, vector<128x128xbf16>, vector<384x128xf32> -> vector<384x128xf32>
    %144 = arith.addf %140, %143 : vector<384x128xf32>
    %c1_i32_92 = arith.constant 1 : i32
    %145 = tpu.dynamic_rotate %118 by %c1_i32_92 dim 0 : vector<384x128xf32>, i32 -> vector<384x128xf32>
    %146 = arith.addf %131, %145 : vector<384x128xf32>
    %c383_i32 = arith.constant 383 : i32
    %147 = tpu.dynamic_rotate %144 by %c383_i32 dim 0 : vector<384x128xf32>, i32 -> vector<384x128xf32>
    %148 = arith.addf %146, %147 : vector<384x128xf32>
    %c0_93 = arith.constant 0 : index
    %c0_94 = arith.constant 0 : index
    %149 = vector.load %arg7[%c0_93, %c0_94] : memref<1x128xf32, #tpu.memory_space<vmem>>, vector<1x128xf32>
    %150 = vector.broadcast %149 : vector<1x128xf32> to vector<384x128xf32>
    %151 = arith.mulf %148, %150 : vector<384x128xf32>
    %c0_95 = arith.constant 0 : index
    %c0_96 = arith.constant 0 : index
    %152 = vector.load %arg8[%c0_95, %c0_96] : memref<1x128xf32, #tpu.memory_space<vmem>>, vector<1x128xf32>
    %153 = vector.broadcast %152 : vector<1x128xf32> to vector<384x128xf32>
    %154 = arith.addf %151, %153 : vector<384x128xf32>
    %155 = vector.extract_strided_slice %27 {offsets = [48, 0], sizes = [384, 128], strides = [1, 1]} : vector<480x128xbf16> to vector<384x128xbf16>
    %156 = arith.extf %155 : vector<384x128xbf16> to vector<384x128xf32>
    %157 = arith.addf %154, %156 : vector<384x128xf32>
    %cst_97 = arith.constant 0.000000e+00 : f32
    %158 = vector.broadcast %cst_97 : f32 to vector<384x128xf32>
    %159 = arith.maximumf %157, %158 : vector<384x128xf32>
    %160 = vector.shape_cast %159 : vector<384x128xf32> to vector<16x24x128xf32>
    %161 = vector.extract_strided_slice %160 {offsets = [0, 0, 0], sizes = [16, 16, 128], strides = [1, 1, 1]} : vector<16x24x128xf32> to vector<16x16x128xf32>
    %162 = vector.shape_cast %161 : vector<16x16x128xf32> to vector<1x16x16x128xf32>
    %163 = arith.truncf %162 : vector<1x16x16x128xf32> to vector<1x16x16x128xbf16>
    %c0_98 = arith.constant 0 : index
    %c0_99 = arith.constant 0 : index
    %c0_100 = arith.constant 0 : index
    %c0_101 = arith.constant 0 : index
    %164 = vector.load %arg9[%c0_98, %c0_99, %c0_100, %c0_101] : memref<1x16x16x128xbf16, #tpu.memory_space<vmem>>, vector<1x16x16x128xbf16>
    tpu.vector_store %arg9[%c0_98, %c0_99, %c0_100, %c0_101], %163 {strides = array<i32>} : memref<1x16x16x128xbf16, #tpu.memory_space<vmem>>, vector<1x16x16x128xbf16>,
    return
  }
  func.func @transform_1(%arg0: i32, %arg1: i32) -> (i32, i32, i32) {
    %c0_i32 = arith.constant 0 : i32
    %c0_i32_0 = arith.constant 0 : i32
    %c0_i32_1 = arith.constant 0 : i32
    %c0_i32_2 = arith.constant 0 : i32
    return %c0_i32, %c0_i32_0, %c0_i32_1 : i32, i32, i32
  }
  func.func @transform_2(%arg0: i32, %arg1: i32) -> (i32, i32) {
    %c0_i32 = arith.constant 0 : i32
    %c0_i32_0 = arith.constant 0 : i32
    %c0_i32_1 = arith.constant 0 : i32
    return %c0_i32, %c0_i32_0 : i32, i32
  }
  func.func @transform_3(%arg0: i32, %arg1: i32) -> (i32, i32) {
    %c0_i32 = arith.constant 0 : i32
    %c0_i32_0 = arith.constant 0 : i32
    %c0_i32_1 = arith.constant 0 : i32
    return %c0_i32, %c0_i32_0 : i32, i32
  }
  func.func @transform_4(%arg0: i32, %arg1: i32) -> (i32, i32, i32) {
    %c0_i32 = arith.constant 0 : i32
    %c0_i32_0 = arith.constant 0 : i32
    %c0_i32_1 = arith.constant 0 : i32
    %c0_i32_2 = arith.constant 0 : i32
    return %c0_i32, %c0_i32_0, %c0_i32_1 : i32, i32, i32
  }
  func.func @transform_5(%arg0: i32, %arg1: i32) -> (i32, i32) {
    %c0_i32 = arith.constant 0 : i32
    %c0_i32_0 = arith.constant 0 : i32
    %c0_i32_1 = arith.constant 0 : i32
    return %c0_i32, %c0_i32_0 : i32, i32
  }
  func.func @transform_6(%arg0: i32, %arg1: i32) -> (i32, i32) {
    %c0_i32 = arith.constant 0 : i32
    %c0_i32_0 = arith.constant 0 : i32
    %c0_i32_1 = arith.constant 0 : i32
    return %c0_i32, %c0_i32_0 : i32, i32
  }
  func.func @transform_7(%arg0: i32, %arg1: i32) -> (i32, i32, i32, i32) {
    %c0_i32 = arith.constant 0 : i32
    %c0_i32_0 = arith.constant 0 : i32
    %c0_i32_1 = arith.constant 0 : i32
    return %arg0, %arg1, %c0_i32, %c0_i32_0 : i32, i32, i32, i32
  }
}

</mosaic_0001>

<llo_original>
// kernel: tpu_custom_call.1
$region0: #{tpu_custom_call.1}
  #allocation0 [shape = 'u32[]', space=smem, size = 0x4, offset = 0x4, fixed_abs, tag = 'smem constant byte address 0x4 - core index']
  #allocation1 [shape = 'u32[72,128]{1,0:T(1,128)}', space=vmem, size = 0x9000, scoped, tag = 'internal scratch']
  #allocation2 [shape = 'bf16[2,480,128]{2,1,0:T(8,128)(2,1)}', space=vmem, size = 0x3c000, scoped, tag = 'scratch operand']
  #allocation3 [shape = 's32[2]{0}', space=sflag, size = 0x8, scoped, tag = 'scratch operand']
  #allocation10 [shape = 's32[]', space=sflag, size = 0x4, offset = 0, fixed_abs, tag = 'sflag constant byte address 0x0 - dummy sync flag']
  #allocation11 [shape = 's32[]', space=sflag, size = 0x4, offset = 0, fixed_abs, tag = 'sflag constant byte address 0x0 - dummy sync flag']
  #allocation12 [shape = 'u32[]', space=smem, size = 0x4, offset = 0x44, fixed_abs, tag = 'smem constant byte address 0x44 - assertion arg 0']
  #allocation13 [shape = 'u32[]', space=smem, size = 0x4, offset = 0x48, fixed_abs, tag = 'smem constant byte address 0x48 - assertion arg 1']
  #allocation14 [shape = 's32[]', space=sflag, size = 0x4, offset = 0, fixed_abs, tag = 'sflag constant byte address 0x0 - dummy sync flag']
  #allocation15 [shape = 's32[]', space=sflag, size = 0x4, offset = 0, fixed_abs, tag = 'sflag constant byte address 0x0 - dummy sync flag']
  %s0 = inlined_call_operand.hbm [shape: bf16[2,480,128], index: 0, kind: input, shape index: {}]
  %s1 = inlined_call_operand.hbm [shape: bf16[9,128,128], index: 1, kind: input, shape index: {}]
  %s2 = inlined_call_operand.vmem [shape: f32[1,128], index: 2, kind: input, shape index: {}]
  %s3 = inlined_call_operand.vmem [shape: f32[1,128], index: 3, kind: input, shape index: {}]
  %s4 = inlined_call_operand.hbm [shape: bf16[9,128,128], index: 4, kind: input, shape index: {}]
  %s5 = inlined_call_operand.vmem [shape: f32[1,128], index: 5, kind: input, shape index: {}]
  %s6 = inlined_call_operand.vmem [shape: f32[1,128], index: 6, kind: input, shape index: {}]
  %s7 = inlined_call_operand.hbm [shape: bf16[2,16,16,128], index: 7, kind: output, shape index: {}]
  %s8 = sld [smem:[#allocation0]]
  $region81: #{tpu_custom_call.1} parent=0
    _
  %s10 = ssub.s32 1, %s8
  %s11 = scalar_select 0, %s10, %s8
  $region1: #{tpu_custom_call.1} parent=0
    #allocation4 [shape = 'u8[294912]{0}', space=vmem, size = 0x48000, scoped, tag = 'input window, operand 1, single buffered']
    #allocation5 [shape = 's32[2]{0}', space=sflag, size = 0x8, scoped, tag = 'scoped memory for tpu_custom_call.1']
    #allocation6 [shape = 's32[2]{0}', space=sflag, size = 0x8, scoped, tag = 'scoped memory for tpu_custom_call.1']
    #allocation7 [shape = 'u8[294912]{0}', space=vmem, size = 0x48000, scoped, tag = 'input window, operand 4, single buffered']
    #allocation8 [shape = 's32[1]{0}', space=sflag, size = 0x4, scoped, tag = 'scoped memory for tpu_custom_call.1']
    #allocation9 [shape = 'u8[131072]{0}', space=vmem, size = 0x20000, scoped, tag = 'output window, operand 0']
    %12 = vsyncpa [#allocation5], 0
    %13 = vsyncpa [#allocation8], 0
    %14 = vsyncpa [#allocation6], 0
    %s15 = scalar_lea.sflag [#allocation6], 1
    %16 = vsyncpa %s15, 0
    loop: start=0, step=1, limit=4
    $region2: #{tpu_custom_call.1} parent=1 // loop_pre_header
      _
    $region3: #{tpu_custom_call.1} parent=1 // loop_header
      %s18 = sphi 0, %s22
      %p19 = scmp.ge.s32.totalorder %s18, 4
      %s25 = sphi 0, %s37
      %s26 = sphi 0, %s33
      %s27 = sphi 0, %s25
      %s28 = sphi 0, %s26
      %s29 = sphi 0, %s27
      %s30 = sphi 0, %s28
      %s38 = sphi 0, %s38
      %s40 = sphi 0, %s38
      %s41 = sphi 0, %s40
      %s55 = sphi 0, %s41
      %s59 = sphi 0, %s59
      %s61 = sphi 0, %s59
      %s62 = sphi 0, %s61
      %s76 = sphi 0, %s62
      %s80 = sphi 0, %s80
      %s82 = sphi 0, %s80
      %s83 = sphi 0, %s82
      %s97 = sphi 0, %s83
      %s101 = sphi 0, %s101
      %s103 = sphi 0, %s101
      %s104 = sphi 0, %s103
      %s118 = sphi 0, %s104
      %s122 = sphi 0, %s122
      %s124 = sphi 0, %s122
      %s125 = sphi 0, %s124
      %s139 = sphi 0, %s125
      %s143 = sphi 0, %s143
      %s145 = sphi 0, %s143
      %s146 = sphi 0, %s145
      %s160 = sphi 0, %s146
      %s168 = sphi 0, %s170
      %s171 = sphi 0, %s168
      %s172 = sphi 0, %s171
      %s188 = sphi 0, %s172
    $region4: #{tpu_custom_call.1} parent=1 // loop_header_branch
      %21 = sbr.rel (%p19) target = $region8
    $region5: #{tpu_custom_call.1} parent=1 // loop_body
      %s23 = ssub.s32 %s18, 1
      %s24 = ssub.s32 %s18, 2
      %s31 = sadd.s32 1, %s26
      %p32 = scmp.ge.s32.totalorder %s31, 1
      %s33 = scalar_select %p32, 0, %s31
      %s34 = sadd.s32 1, %s25
      %s35 = scalar_select %p32, %s34, %s25
      %p36 = scmp.ge.s32.totalorder %s35, 2
      %s37 = scalar_select %p36, 0, %s35
      %s39 = sadd.s32 %s38, 1
      %p42 = scmp.eq.s32.totalorder %s18, 1
      %p43 = scmp.ne.s32.totalorder %s38, %s40
      %p44 = scmp.eq.s32.totalorder %s18, 0
      %p45 = por %p43, %p44
      %p46 = scmp.ne.s32.totalorder %s38, %s40
      %p47 = scmp.eq.s32.totalorder %s23, 1
      %p48 = por %p46, %p47
      %p49 = scmp.ne.s32.totalorder %s40, %s41
      %p50 = scmp.eq.s32.totalorder %s23, 0
      %p51 = por %p49, %p50
      %p52 = scmp.ne.s32.totalorder %s40, %s41
      %p53 = scmp.eq.s32.totalorder %s24, 1
      %p54 = por %p52, %p53
      %p56 = scmp.ne.s32.totalorder %s41, %s55
      %p57 = scmp.eq.s32.totalorder %s24, 0
      %p58 = por %p56, %p57
      %s60 = sadd.s32 %s59, 1
      %p63 = scmp.eq.s32.totalorder %s18, 1
      %p64 = scmp.ne.s32.totalorder %s59, %s61
      %p65 = scmp.eq.s32.totalorder %s18, 0
      %p66 = por %p64, %p65
      %p67 = scmp.ne.s32.totalorder %s59, %s61
      %p68 = scmp.eq.s32.totalorder %s23, 1
      %p69 = por %p67, %p68
      %p70 = scmp.ne.s32.totalorder %s61, %s62
      %p71 = scmp.eq.s32.totalorder %s23, 0
      %p72 = por %p70, %p71
      %p73 = scmp.ne.s32.totalorder %s61, %s62
      %p74 = scmp.eq.s32.totalorder %s24, 1
      %p75 = por %p73, %p74
      %p77 = scmp.ne.s32.totalorder %s62, %s76
      %p78 = scmp.eq.s32.totalorder %s24, 0
      %p79 = por %p77, %p78
      %s81 = sadd.s32 %s80, 1
      %p84 = scmp.eq.s32.totalorder %s18, 1
      %p85 = scmp.ne.s32.totalorder %s80, %s82
      %p86 = scmp.eq.s32.totalorder %s18, 0
      %p87 = por %p85, %p86
      %p88 = scmp.ne.s32.totalorder %s80, %s82
      %p89 = scmp.eq.s32.totalorder %s23, 1
      %p90 = por %p88, %p89
      %p91 = scmp.ne.s32.totalorder %s82, %s83
      %p92 = scmp.eq.s32.totalorder %s23, 0
      %p93 = por %p91, %p92
      %p94 = scmp.ne.s32.totalorder %s82, %s83
      %p95 = scmp.eq.s32.totalorder %s24, 1
      %p96 = por %p94, %p95
      %p98 = scmp.ne.s32.totalorder %s83, %s97
      %p99 = scmp.eq.s32.totalorder %s24, 0
      %p100 = por %p98, %p99
      %s102 = sadd.s32 %s101, 1
      %p105 = scmp.eq.s32.totalorder %s18, 1
      %p106 = scmp.ne.s32.totalorder %s101, %s103
      %p107 = scmp.eq.s32.totalorder %s18, 0
      %p108 = por %p106, %p107
      %p109 = scmp.ne.s32.totalorder %s101, %s103
      %p110 = scmp.eq.s32.totalorder %s23, 1
      %p111 = por %p109, %p110
      %p112 = scmp.ne.s32.totalorder %s103, %s104
      %p113 = scmp.eq.s32.totalorder %s23, 0
      %p114 = por %p112, %p113
      %p115 = scmp.ne.s32.totalorder %s103, %s104
      %p116 = scmp.eq.s32.totalorder %s24, 1
      %p117 = por %p115, %p116
      %p119 = scmp.ne.s32.totalorder %s104, %s118
      %p120 = scmp.eq.s32.totalorder %s24, 0
      %p121 = por %p119, %p120
      %s123 = sadd.s32 %s122, 1
      %p126 = scmp.eq.s32.totalorder %s18, 1
      %p127 = scmp.ne.s32.totalorder %s122, %s124
      %p128 = scmp.eq.s32.totalorder %s18, 0
      %p129 = por %p127, %p128
      %p130 = scmp.ne.s32.totalorder %s122, %s124
      %p131 = scmp.eq.s32.totalorder %s23, 1
      %p132 = por %p130, %p131
      %p133 = scmp.ne.s32.totalorder %s124, %s125
      %p134 = scmp.eq.s32.totalorder %s23, 0
      %p135 = por %p133, %p134
      %p136 = scmp.ne.s32.totalorder %s124, %s125
      %p137 = scmp.eq.s32.totalorder %s24, 1
      %p138 = por %p136, %p137
      %p140 = scmp.ne.s32.totalorder %s125, %s139
      %p141 = scmp.eq.s32.totalorder %s24, 0
      %p142 = por %p140, %p141
      %s144 = sadd.s32 %s143, 1
      %p147 = scmp.eq.s32.totalorder %s18, 1
      %p148 = scmp.ne.s32.totalorder %s143, %s145
      %p149 = scmp.eq.s32.totalorder %s18, 0
      %p150 = por %p148, %p149
      %p151 = scmp.ne.s32.totalorder %s143, %s145
      %p152 = scmp.eq.s32.totalorder %s23, 1
      %p153 = por %p151, %p152
      %p154 = scmp.ne.s32.totalorder %s145, %s146
      %p155 = scmp.eq.s32.totalorder %s23, 0
      %p156 = por %p154, %p155
      %p157 = scmp.ne.s32.totalorder %s145, %s146
      %p158 = scmp.eq.s32.totalorder %s24, 1
      %p159 = por %p157, %p158
      %p161 = scmp.ne.s32.totalorder %s146, %s160
      %p162 = scmp.eq.s32.totalorder %s24, 0
      %p163 = por %p161, %p162
      %s164 = ssub.s32 %s25, %s37
      %s165 = ssub.s32 %s26, %s33
      %s166 = sor.u32 %s164, %s165
      %p167 = scmp.eq.s32.totalorder %s166, 0
      %s169 = sadd.s32 %s168, 1
      %s170 = scalar_select %p167, %s168, %s169
      %p173 = pneg %p167
      %p174 = scmp.eq.s32.totalorder %s18, 1
      %p175 = por %p173, %p174
      %p176 = scmp.ne.s32.totalorder %s168, %s171
      %p177 = scmp.eq.s32.totalorder %s18, 0
      %p178 = por %p176, %p177
      %p179 = scmp.ne.s32.totalorder %s168, %s171
      %p180 = scmp.eq.s32.totalorder %s23, 1
      %p181 = por %p179, %p180
      %p182 = scmp.ne.s32.totalorder %s171, %s172
      %p183 = scmp.eq.s32.totalorder %s23, 0
      %p184 = por %p182, %p183
      %p185 = scmp.ne.s32.totalorder %s171, %s172
      %p186 = scmp.eq.s32.totalorder %s24, 1
      %p187 = por %p185, %p186
      %p189 = scmp.ne.s32.totalorder %s172, %s188
      %p190 = scmp.eq.s32.totalorder %s24, 0
      %p191 = por %p189, %p190
      %p192 = scmp.le.s32.totalorder 1, %s18
      %p193 = scmp.lt.s32.totalorder %s18, 3
      %p194 = pnand %p192, %p193
      %p195 = pneg %p194
      // Predicated region
      $region9: #{tpu_custom_call.1} parent=5 // pred_check
        _
      $region10: #{tpu_custom_call.1} parent=5 // pred_check_branch
        %197 = sbr.rel (%p194) target = $region12
      $region11: #{tpu_custom_call.1} parent=5 // pred_region
        %s198 = ssub.s32 %s18, 1
        // Predicated region
        $region13: #{tpu_custom_call.1} parent=11 // pred_check
          %p199 = pneg %p51
        $region14: #{tpu_custom_call.1} parent=11 // pred_check_branch
          %201 = sbr.rel (%p199) target = $region16
        $region15: #{tpu_custom_call.1} parent=11 // pred_region
          %203 = vsyncadd [#allocation5], 0
          %s204 = sshll.u32 %s1, 4
          %s205 = int_to_ptr.hbm [resolvable:$true] %s204
          %s206 = sshll.u32 [#allocation4], 4
          %s207 = int_to_ptr.vmem [resolvable:$true] %s206
          %212 = dma.hbm_to_vmem [thread:$0]  %s205, 9216, %s207, [#allocation5], 64, 64, 4
        $region16: #{tpu_custom_call.1} parent=11 // pred_fallthru
          _
        // Predicated region
        $region17: #{tpu_custom_call.1} parent=11 // pred_check
          %p213 = pneg %p72
        $region18: #{tpu_custom_call.1} parent=11 // pred_check_branch
          %215 = sbr.rel (%p213) target = $region20
        $region19: #{tpu_custom_call.1} parent=11 // pred_region
          _
        $region20: #{tpu_custom_call.1} parent=11 // pred_fallthru
          _
        // Predicated region
        $region21: #{tpu_custom_call.1} parent=11 // pred_check
          %p216 = pneg %p93
        $region22: #{tpu_custom_call.1} parent=11 // pred_check_branch
          %218 = sbr.rel (%p216) target = $region24
        $region23: #{tpu_custom_call.1} parent=11 // pred_region
          _
        $region24: #{tpu_custom_call.1} parent=11 // pred_fallthru
          _
        // Predicated region
        $region25: #{tpu_custom_call.1} parent=11 // pred_check
          %p219 = pneg %p114
        $region26: #{tpu_custom_call.1} parent=11 // pred_check_branch
          %221 = sbr.rel (%p219) target = $region28
        $region27: #{tpu_custom_call.1} parent=11 // pred_region
          %223 = vsyncadd [#allocation8], 0
          %s224 = sshll.u32 %s4, 4
          %s225 = int_to_ptr.hbm [resolvable:$true] %s224
          %s226 = sshll.u32 [#allocation7], 4
          %s227 = int_to_ptr.vmem [resolvable:$true] %s226
          %232 = dma.hbm_to_vmem [thread:$0]  %s225, 9216, %s227, [#allocation8], 64, 64, 4
        $region28: #{tpu_custom_call.1} parent=11 // pred_fallthru
          _
        // Predicated region
        $region29: #{tpu_custom_call.1} parent=11 // pred_check
          %p233 = pneg %p135
        $region30: #{tpu_custom_call.1} parent=11 // pred_check_branch
          %235 = sbr.rel (%p233) target = $region32
        $region31: #{tpu_custom_call.1} parent=11 // pred_region
          _
        $region32: #{tpu_custom_call.1} parent=11 // pred_fallthru
          _
        // Predicated region
        $region33: #{tpu_custom_call.1} parent=11 // pred_check
          %p236 = pneg %p156
        $region34: #{tpu_custom_call.1} parent=11 // pred_check_branch
          %238 = sbr.rel (%p236) target = $region36
        $region35: #{tpu_custom_call.1} parent=11 // pred_region
          _
        $region36: #{tpu_custom_call.1} parent=11 // pred_fallthru
          _
      $region12: #{tpu_custom_call.1} parent=5 // pred_fallthru
        _
      %p239 = scmp.lt.s32.totalorder %s18, 2
      // Predicated region
      $region37: #{tpu_custom_call.1} parent=5 // pred_check
        %p240 = pneg %p239
      $region38: #{tpu_custom_call.1} parent=5 // pred_check_branch
        %242 = sbr.rel (%p240) target = $region40
      $region39: #{tpu_custom_call.1} parent=5 // pred_region
        _
      $region40: #{tpu_custom_call.1} parent=5 // pred_fallthru
        _
      %p243 = scmp.le.s32.totalorder 1, %s18
      %p244 = scmp.lt.s32.totalorder %s18, 3
      %p245 = pnand %p243, %p244
      %p246 = pneg %p245
      // Predicated region
      $region41: #{tpu_custom_call.1} parent=5 // pred_check
        _
      $region42: #{tpu_custom_call.1} parent=5 // pred_check_branch
        %248 = sbr.rel (%p245) target = $region44
      $region43: #{tpu_custom_call.1} parent=5 // pred_region
        %s249 = ssub.s32 %s18, 1
        // Predicated region
        $region45: #{tpu_custom_call.1} parent=43 // pred_check
          %p250 = pneg %p51
        $region46: #{tpu_custom_call.1} parent=43 // pred_check_branch
          %252 = sbr.rel (%p250) target = $region48
        $region47: #{tpu_custom_call.1} parent=43 // pred_region
          %254 = dma.done [#allocation5], 9216
        $region48: #{tpu_custom_call.1} parent=43 // pred_fallthru
          _
        // Predicated region
        $region49: #{tpu_custom_call.1} parent=43 // pred_check
          %p255 = pneg %p114
        $region50: #{tpu_custom_call.1} parent=43 // pred_check_branch
          %257 = sbr.rel (%p255) target = $region52
        $region51: #{tpu_custom_call.1} parent=43 // pred_region
          %259 = dma.done [#allocation8], 9216
        $region52: #{tpu_custom_call.1} parent=43 // pred_fallthru
          _
        %p260 = pneg %p51
        %p261 = pneg %p48
        %p262 = pneg %p72
        %p263 = pneg %p69
        %p264 = pneg %p93
        %p265 = pneg %p90
        %p266 = pneg %p114
        %p267 = pneg %p111
        %p268 = pneg %p135
        %p269 = pneg %p132
        %p270 = pneg %p156
        %p271 = pneg %p153
        %p272 = pneg %p184
        %p273 = pneg %p181
        %s274 = sand.u32 %s171, 1
        %s275 = scalar_lea.sflag [#allocation6], %s274
        %s276 = sand.u32 %s171, 1
        %s277 = smul.addr %s276, 128
        %s278 = scalar_lea.vmem [#allocation9], %s277
        %s279 = smul.u32 16, %s28
        %p280 = scmp.lt.s32.totalorder %s28, 0
        %s281 = ssub.s32 0, %s28
        %s282 = scalar_select %p280, %s281, %s28
        %s283 = sand.u32 %s282, 1
        %s284 = ssub.s32 0, %s283
        %s285 = scalar_select %p280, %s284, %s283
        %p286 = scmp.ne.s32.totalorder %s285, 0
        %p287 = scmp.lt.s32.totalorder %s285, 0
        %p288 = pnand %p287, %p286
        %p289 = pneg %p288
        %s290 = sadd.s32 %s285, 2
        %s291 = scalar_select %p289, %s290, %s285
        %p292 = scmp.eq.s32.totalorder %s28, 0
        // Predicated region
        $region53: #{tpu_custom_call.1} parent=43 // pred_check
          %p293 = pneg %p292
        $region54: #{tpu_custom_call.1} parent=43 // pred_check_branch
          %295 = sbr.rel (%p293) target = $region56
        $region55: #{tpu_custom_call.1} parent=43 // pred_region
          %s296 = smul.u32 %s27, 60
          %s297 = sadd.s32 0, %s296
          %s298 = smul.addr %s297, 4
          %s299 = scalar_lea.hbm %s0, %s298
          // Predicated region
          $region57: #{tpu_custom_call.1} parent=55 // pred_check
            _
          $region58: #{tpu_custom_call.1} parent=55 // pred_check_branch
            %301 = sbr.rel target = $region60
          $region59: #{tpu_custom_call.1} parent=55 // pred_region
            %302 = sst [smem:[#allocation12]] [#allocation11]
            %303 = sst [smem:[#allocation13]] [#allocation10]
          $region60: #{tpu_custom_call.1} parent=55 // pred_fallthru
            _
          %305 = shalt.err (0)
          %s307 = sshll.u32 %s299, 4
          %s308 = int_to_ptr.hbm [resolvable:$true] %s307
          %s309 = sshll.u32 [#allocation2], 4
          %s310 = int_to_ptr.vmem [resolvable:$true] %s309
          %312 = dma.hbm_to_vmem [thread:$0]  %s308, 3840, %s310, [#allocation3]
        $region56: #{tpu_custom_call.1} parent=43 // pred_fallthru
          _
        %s313 = sadd.s32 %s28, 1
        %p314 = scmp.lt.s32.totalorder %s313, 1
        // Predicated region
        $region61: #{tpu_custom_call.1} parent=43 // pred_check
          %p315 = pneg %p314
        $region62: #{tpu_custom_call.1} parent=43 // pred_check_branch
          %317 = sbr.rel (%p315) target = $region64
        $region63: #{tpu_custom_call.1} parent=43 // pred_region
          %p318 = scmp.lt.s32.totalorder %s313, 0
          %s319 = ssub.s32 0, %s313
          %s320 = scalar_select %p318, %s319, %s313
          %s321 = sand.u32 %s320, 1
          %s322 = ssub.s32 0, %s321
          %s323 = scalar_select %p318, %s322, %s321
          %p324 = scmp.ne.s32.totalorder %s323, 0
          %p325 = scmp.lt.s32.totalorder %s323, 0
          %p326 = pnand %p325, %p324
          %p327 = pneg %p326
          %s328 = sadd.s32 %s323, 2
          %s329 = scalar_select %p327, %s328, %s323
          %s330 = smul.u32 %s313, 384
          %s331 = sshra.s32 %s330, 3
          %s332 = sand.u32 %s330, 7
          %s333 = smul.u32 %s27, 60
          %s334 = sadd.s32 %s331, %s333
          %s335 = smul.addr %s334, 4
          %s336 = scalar_lea.hbm %s0, %s335
          %s337 = smul.u32 %s329, 60
          %s338 = smul.addr %s337, 4
          %s339 = scalar_lea.vmem [#allocation2], %s338
          %s340 = scalar_lea.sflag [#allocation3], %s329
          // Predicated region
          $region65: #{tpu_custom_call.1} parent=63 // pred_check
            _
          $region66: #{tpu_custom_call.1} parent=63 // pred_check_branch
            %342 = sbr.rel target = $region68
          $region67: #{tpu_custom_call.1} parent=63 // pred_region
            %343 = sst [smem:[#allocation12]] [#allocation15]
            %344 = sst [smem:[#allocation13]] [#allocation14]
          $region68: #{tpu_custom_call.1} parent=63 // pred_fallthru
            _
          %346 = shalt.err (0)
          %s348 = sshll.u32 %s336, 4
          %s349 = int_to_ptr.hbm [resolvable:$true] %s348
          %s350 = sshll.u32 %s339, 4
          %s351 = int_to_ptr.vmem [resolvable:$true] %s350
          %353 = dma.hbm_to_vmem [thread:$0]  %s349, 3840, %s351, %s340
        $region64: #{tpu_custom_call.1} parent=43 // pred_fallthru
          _
        %s354 = smul.u32 %s28, 384
        %s355 = smul.u32 %s291, 60
        %s356 = smul.addr %s355, 4
        %s357 = scalar_lea.vmem [#allocation2], %s356
        %s358 = scalar_lea.sflag [#allocation3], %s291
        %s359 = smul.u32 4, 60
        %s360 = smul.u32 %s359, 1
        %s361 = sshll.u32 %s360, 4
        %362 = dma.done %s358, %s361
        %v363 = vld [vmem:[%s357] sm:$0xf]
        %v364 = vld [vmem:[%s357 + $0x4] sm:$0xf]
        %v365 = vld [vmem:[%s357 + $0x8] sm:$0xf]
        %v366 = vld [vmem:[%s357 + $0xc] sm:$0xf]
        %v367 = vld [vmem:[%s357 + $0x10] sm:$0xf]
        %v368 = vld [vmem:[%s357 + $0x14] sm:$0xf]
        %v369 = vld [vmem:[%s357 + $0x18] sm:$0xf]
        %v370 = vld [vmem:[%s357 + $0x1c] sm:$0xf]
        %v371 = vld [vmem:[%s357 + $0x20] sm:$0xf]
        %v372 = vld [vmem:[%s357 + $0x24] sm:$0xf]
        %v373 = vld [vmem:[%s357 + $0x28] sm:$0xf]
        %v374 = vld [vmem:[%s357 + $0x2c] sm:$0xf]
        %v375 = vld [vmem:[%s357 + $0x30] sm:$0xf]
        %v376 = vld [vmem:[%s357 + $0x34] sm:$0xf]
        %v377 = vld [vmem:[%s357 + $0x38] sm:$0xf]
        %v378 = vld [vmem:[%s357 + $0x3c] sm:$0xf]
        %v379 = vld [vmem:[%s357 + $0x40] sm:$0xf]
        %v380 = vld [vmem:[%s357 + $0x44] sm:$0xf]
        %v381 = vld [vmem:[%s357 + $0x48] sm:$0xf]
        %v382 = vld [vmem:[%s357 + $0x4c] sm:$0xf]
        %v383 = vld [vmem:[%s357 + $0x50] sm:$0xf]
        %v384 = vld [vmem:[%s357 + $0x54] sm:$0xf]
        %v385 = vld [vmem:[%s357 + $0x58] sm:$0xf]
        %v386 = vld [vmem:[%s357 + $0x5c] sm:$0xf]
        %v387 = vld [vmem:[%s357 + $0x60] sm:$0xf]
        %v388 = vld [vmem:[%s357 + $0x64] sm:$0xf]
        %v389 = vld [vmem:[%s357 + $0x68] sm:$0xf]
        %v390 = vld [vmem:[%s357 + $0x6c] sm:$0xf]
        %v391 = vld [vmem:[%s357 + $0x70] sm:$0xf]
        %v392 = vld [vmem:[%s357 + $0x74] sm:$0xf]
        %v393 = vld [vmem:[%s357 + $0x78] sm:$0xf]
        %v394 = vld [vmem:[%s357 + $0x7c] sm:$0xf]
        %v395 = vld [vmem:[%s357 + $0x80] sm:$0xf]
        %v396 = vld [vmem:[%s357 + $0x84] sm:$0xf]
        %v397 = vld [vmem:[%s357 + $0x88] sm:$0xf]
        %v398 = vld [vmem:[%s357 + $0x8c] sm:$0xf]
        %v399 = vld [vmem:[%s357 + $0x90] sm:$0xf]
        %v400 = vld [vmem:[%s357 + $0x94] sm:$0xf]
        %v401 = vld [vmem:[%s357 + $0x98] sm:$0xf]
        %v402 = vld [vmem:[%s357 + $0x9c] sm:$0xf]
        %v403 = vld [vmem:[%s357 + $0xa0] sm:$0xf]
        %v404 = vld [vmem:[%s357 + $0xa4] sm:$0xf]
        %v405 = vld [vmem:[%s357 + $0xa8] sm:$0xf]
        %v406 = vld [vmem:[%s357 + $0xac] sm:$0xf]
        %v407 = vld [vmem:[%s357 + $0xb0] sm:$0xf]
        %v408 = vld [vmem:[%s357 + $0xb4] sm:$0xf]
        %v409 = vld [vmem:[%s357 + $0xb8] sm:$0xf]
        %v410 = vld [vmem:[%s357 + $0xbc] sm:$0xf]
        %v411 = vld [vmem:[%s357 + $0xc0] sm:$0xf]
        %v412 = vld [vmem:[%s357 + $0xc4] sm:$0xf]
        %v413 = vld [vmem:[%s357 + $0xc8] sm:$0xf]
        %v414 = vld [vmem:[%s357 + $0xcc] sm:$0xf]
        %v415 = vld [vmem:[%s357 + $0xd0] sm:$0xf]
        %v416 = vld [vmem:[%s357 + $0xd4] sm:$0xf]
        %v417 = vld [vmem:[%s357 + $0xd8] sm:$0xf]
        %v418 = vld [vmem:[%s357 + $0xdc] sm:$0xf]
        %v419 = vld [vmem:[%s357 + $0xe0] sm:$0xf]
        %v420 = vld [vmem:[%s357 + $0xe4] sm:$0xf]
        %v421 = vld [vmem:[%s357 + $0xe8] sm:$0xf]
        %v422 = vld [vmem:[%s357 + $0xec] sm:$0xf]
        %v423 = vld [vmem:[#allocation4] sm:$0xf]
        %v424 = vld [vmem:[#allocation4 + $0x4] sm:$0xf]
        %v425 = vld [vmem:[#allocation4 + $0x8] sm:$0xf]
        %v426 = vld [vmem:[#allocation4 + $0xc] sm:$0xf]
        %v427 = vld [vmem:[#allocation4 + $0x10] sm:$0xf]
        %v428 = vld [vmem:[#allocation4 + $0x14] sm:$0xf]
        %v429 = vld [vmem:[#allocation4 + $0x18] sm:$0xf]
        %v430 = vld [vmem:[#allocation4 + $0x1c] sm:$0xf]
        %v431 = vld [vmem:[#allocation4 + $0x20] sm:$0xf]
        %v432 = vld [vmem:[#allocation4 + $0x24] sm:$0xf]
        %v433 = vld [vmem:[#allocation4 + $0x28] sm:$0xf]
        %v434 = vld [vmem:[#allocation4 + $0x2c] sm:$0xf]
        %v435 = vld [vmem:[#allocation4 + $0x30] sm:$0xf]
        %v436 = vld [vmem:[#allocation4 + $0x34] sm:$0xf]
        %v437 = vld [vmem:[#allocation4 + $0x38] sm:$0xf]
        %v438 = vld [vmem:[#allocation4 + $0x3c] sm:$0xf]
        %s439 = scalar_lea.vmem [#allocation4], 192
        %v440 = vld [vmem:[%s439] sm:$0xf]
        %v441 = vld [vmem:[%s439 + $0x4] sm:$0xf]
        %v442 = vld [vmem:[%s439 + $0x8] sm:$0xf]
        %v443 = vld [vmem:[%s439 + $0xc] sm:$0xf]
        %v444 = vld [vmem:[%s439 + $0x10] sm:$0xf]
        %v445 = vld [vmem:[%s439 + $0x14] sm:$0xf]
        %v446 = vld [vmem:[%s439 + $0x18] sm:$0xf]
        %v447 = vld [vmem:[%s439 + $0x1c] sm:$0xf]
        %v448 = vld [vmem:[%s439 + $0x20] sm:$0xf]
        %v449 = vld [vmem:[%s439 + $0x24] sm:$0xf]
        %v450 = vld [vmem:[%s439 + $0x28] sm:$0xf]
        %v451 = vld [vmem:[%s439 + $0x2c] sm:$0xf]
        %v452 = vld [vmem:[%s439 + $0x30] sm:$0xf]
        %v453 = vld [vmem:[%s439 + $0x34] sm:$0xf]
        %v454 = vld [vmem:[%s439 + $0x38] sm:$0xf]
        %v455 = vld [vmem:[%s439 + $0x3c] sm:$0xf]
        %v510 = vunpack.c.l.b16 %v366
        %v511 = vunpack.c.l.b16 %v367
        %v512 = vunpack.c.l.b16 %v368
        %v513 = vunpack.c.l.b16 %v369
        %v514 = vunpack.c.l.b16 %v370
        %v515 = vunpack.c.l.b16 %v371
        %v516 = vunpack.c.l.b16 %v372
        %v517 = vunpack.c.l.b16 %v373
        %v518 = vunpack.c.l.b16 %v374
        %v519 = vunpack.c.l.b16 %v375
        %v520 = vunpack.c.l.b16 %v376
        %v521 = vunpack.c.l.b16 %v377
        %v522 = vunpack.c.l.b16 %v378
        %v523 = vunpack.c.l.b16 %v379
        %v524 = vunpack.c.l.b16 %v380
        %v525 = vunpack.c.l.b16 %v381
        %v526 = vunpack.c.l.b16 %v382
        %v527 = vunpack.c.l.b16 %v383
        %v528 = vunpack.c.l.b16 %v384
        %v529 = vunpack.c.l.b16 %v385
        %v530 = vunpack.c.l.b16 %v386
        %v531 = vunpack.c.l.b16 %v387
        %v532 = vunpack.c.l.b16 %v388
        %v533 = vunpack.c.l.b16 %v389
        %v534 = vunpack.c.l.b16 %v390
        %v535 = vunpack.c.l.b16 %v391
        %v536 = vunpack.c.l.b16 %v392
        %v537 = vunpack.c.l.b16 %v393
        %v538 = vunpack.c.l.b16 %v394
        %v539 = vunpack.c.l.b16 %v395
        %v540 = vunpack.c.l.b16 %v396
        %v541 = vunpack.c.l.b16 %v397
        %v542 = vunpack.c.l.b16 %v398
        %v543 = vunpack.c.l.b16 %v399
        %v544 = vunpack.c.l.b16 %v400
        %v545 = vunpack.c.l.b16 %v401
        %v546 = vunpack.c.l.b16 %v402
        %v547 = vunpack.c.l.b16 %v403
        %v548 = vunpack.c.l.b16 %v404
        %v549 = vunpack.c.l.b16 %v405
        %v550 = vunpack.c.l.b16 %v406
        %v551 = vunpack.c.l.b16 %v407
        %v552 = vunpack.c.l.b16 %v408
        %v553 = vunpack.c.l.b16 %v409
        %v554 = vunpack.c.l.b16 %v410
        %v555 = vunpack.c.l.b16 %v411
        %v556 = vunpack.c.l.b16 %v412
        %v557 = vunpack.c.l.b16 %v413
        %v558 = vunpack.c.l.b16 %v414
        %v559 = vunpack.c.l.b16 %v415
        %v560 = vunpack.c.l.b16 %v416
        %v561 = vunpack.c.l.b16 %v417
        %v562 = vunpack.c.l.b16 %v418
        %v563 = vunpack.c.l.b16 %v419
        %v564 = vpack.c.b16 %v511, %v510
        %v565 = vpack.c.b16 %v513, %v512
        %v566 = vpack.c.b16 %v515, %v514
        %v567 = vpack.c.b16 %v517, %v516
        %v568 = vpack.c.b16 %v519, %v518
        %v569 = vpack.c.b16 %v521, %v520
        %v570 = vpack.c.b16 %v523, %v522
        %v571 = vpack.c.b16 %v525, %v524
        %v572 = vpack.c.b16 %v527, %v526
        %v573 = vpack.c.b16 %v529, %v528
        %v574 = vpack.c.b16 %v531, %v530
        %v575 = vpack.c.b16 %v533, %v532
        %v576 = vpack.c.b16 %v535, %v534
        %v577 = vpack.c.b16 %v537, %v536
        %v578 = vpack.c.b16 %v539, %v538
        %v579 = vpack.c.b16 %v541, %v540
        %v580 = vpack.c.b16 %v543, %v542
        %v581 = vpack.c.b16 %v545, %v544
        %v582 = vpack.c.b16 %v547, %v546
        %v583 = vpack.c.b16 %v549, %v548
        %v584 = vpack.c.b16 %v551, %v550
        %v585 = vpack.c.b16 %v553, %v552
        %v586 = vpack.c.b16 %v555, %v554
        %v587 = vpack.c.b16 %v557, %v556
        %v588 = vpack.c.b16 %v559, %v558
        %v589 = vpack.c.b16 %v561, %v560
        %v590 = vpack.c.b16 %v563, %v562
        %v634 = vunpack.c.l.b16 %v440
        %v635 = vunpack.c.l.b16 %v441
        %v636 = vunpack.c.l.b16 %v442
        %v637 = vunpack.c.l.b16 %v443
        %v638 = vunpack.c.l.b16 %v444
        %v639 = vunpack.c.l.b16 %v445
        %v640 = vunpack.c.l.b16 %v446
        %v641 = vunpack.c.l.b16 %v447
        %v642 = vunpack.c.l.b16 %v448
        %v643 = vunpack.c.l.b16 %v449
        %v644 = vunpack.c.l.b16 %v450
        %v645 = vunpack.c.l.b16 %v451
        %v646 = vunpack.c.l.b16 %v452
        %v647 = vunpack.c.l.b16 %v453
        %v648 = vunpack.c.l.b16 %v454
        %v649 = vunpack.c.l.b16 %v455
        %v650 = vpack.c.b16 %v635, %v634
        %v651 = vpack.c.b16 %v637, %v636
        %v652 = vpack.c.b16 %v639, %v638
        %v653 = vpack.c.b16 %v641, %v640
        %v654 = vpack.c.b16 %v643, %v642
        %v655 = vpack.c.b16 %v645, %v644
        %v656 = vpack.c.b16 %v647, %v646
        %v657 = vpack.c.b16 %v649, %v648
        %666 = vmatpush.bf16.msra.mxu0 %v657
        %667 = vmatpush.bf16.msra.mxu0 %v656
        %668 = vmatpush.bf16.msra.mxu0 %v655
        %669 = vmatpush.bf16.msra.mxu0 %v654
        %670 = vmatpush.bf16.msra.mxu0 %v653
        %671 = vmatpush.bf16.msra.mxu0 %v652
        %672 = vmatpush.bf16.msra.mxu0 %v651
        %673 = vmatpush.bf16.msra.mxu0 %v650
        %674 = vmatmul.bf16.gmra.mxu0 %v564
        %v675 = vpop.f32.mrf.mxu0
        %v676 = vadd.f32 0.0, %v675
        %v677 = vpop.f32.mrf.mxu0
        %v678 = vadd.f32 0.0, %v677
        %679 = vmatmul.bf16.gmra.mxu0 %v565
        %v680 = vpop.f32.mrf.mxu0
        %v681 = vadd.f32 0.0, %v680
        %v682 = vpop.f32.mrf.mxu0
        %v683 = vadd.f32 0.0, %v682
        %684 = vmatmul.bf16.gmra.mxu0 %v566
        %v685 = vpop.f32.mrf.mxu0
        %v686 = vadd.f32 0.0, %v685
        %v687 = vpop.f32.mrf.mxu0
        %v688 = vadd.f32 0.0, %v687
        %689 = vmatmul.bf16.gmra.mxu0 %v567
        %v690 = vpop.f32.mrf.mxu0
        %v691 = vadd.f32 0.0, %v690
        %v692 = vpop.f32.mrf.mxu0
        %v693 = vadd.f32 0.0, %v692
        %694 = vmatmul.bf16.gmra.mxu0 %v568
        %v695 = vpop.f32.mrf.mxu0
        %v696 = vadd.f32 0.0, %v695
        %v697 = vpop.f32.mrf.mxu0
        %v698 = vadd.f32 0.0, %v697
        %699 = vmatmul.bf16.gmra.mxu0 %v569
        %v700 = vpop.f32.mrf.mxu0
        %v701 = vadd.f32 0.0, %v700
        %v702 = vpop.f32.mrf.mxu0
        %v703 = vadd.f32 0.0, %v702
        %704 = vmatmul.bf16.gmra.mxu0 %v570
        %v705 = vpop.f32.mrf.mxu0
        %v706 = vadd.f32 0.0, %v705
        %v707 = vpop.f32.mrf.mxu0
        %v708 = vadd.f32 0.0, %v707
        %709 = vmatmul.bf16.gmra.mxu0 %v571
        %v710 = vpop.f32.mrf.mxu0
        %v711 = vadd.f32 0.0, %v710
        %v712 = vpop.f32.mrf.mxu0
        %v713 = vadd.f32 0.0, %v712
        %714 = vmatmul.bf16.gmra.mxu0 %v572
        %v715 = vpop.f32.mrf.mxu0
        %v716 = vadd.f32 0.0, %v715
        %v717 = vpop.f32.mrf.mxu0
        %v718 = vadd.f32 0.0, %v717
        %719 = vmatmul.bf16.gmra.mxu0 %v573
        %v720 = vpop.f32.mrf.mxu0
        %v721 = vadd.f32 0.0, %v720
        %v722 = vpop.f32.mrf.mxu0
        %v723 = vadd.f32 0.0, %v722
        %724 = vmatmul.bf16.gmra.mxu0 %v574
        %v725 = vpop.f32.mrf.mxu0
        %v726 = vadd.f32 0.0, %v725
        %v727 = vpop.f32.mrf.mxu0
        %v728 = vadd.f32 0.0, %v727
        %729 = vmatmul.bf16.gmra.mxu0 %v575
        %v730 = vpop.f32.mrf.mxu0
        %v731 = vadd.f32 0.0, %v730
        %v732 = vpop.f32.mrf.mxu0
        %v733 = vadd.f32 0.0, %v732
        %734 = vmatmul.bf16.gmra.mxu0 %v576
        %v735 = vpop.f32.mrf.mxu0
        %v736 = vadd.f32 0.0, %v735
        %v737 = vpop.f32.mrf.mxu0
        %v738 = vadd.f32 0.0, %v737
        %739 = vmatmul.bf16.gmra.mxu0 %v577
        %v740 = vpop.f32.mrf.mxu0
        %v741 = vadd.f32 0.0, %v740
        %v742 = vpop.f32.mrf.mxu0
        %v743 = vadd.f32 0.0, %v742
        %744 = vmatmul.bf16.gmra.mxu0 %v578
        %v745 = vpop.f32.mrf.mxu0
        %v746 = vadd.f32 0.0, %v745
        %v747 = vpop.f32.mrf.mxu0
        %v748 = vadd.f32 0.0, %v747
        %749 = vmatmul.bf16.gmra.mxu0 %v579
        %v750 = vpop.f32.mrf.mxu0
        %v751 = vadd.f32 0.0, %v750
        %v752 = vpop.f32.mrf.mxu0
        %v753 = vadd.f32 0.0, %v752
        %754 = vmatmul.bf16.gmra.mxu0 %v580
        %v755 = vpop.f32.mrf.mxu0
        %v756 = vadd.f32 0.0, %v755
        %v757 = vpop.f32.mrf.mxu0
        %v758 = vadd.f32 0.0, %v757
        %759 = vmatmul.bf16.gmra.mxu0 %v581
        %v760 = vpop.f32.mrf.mxu0
        %v761 = vadd.f32 0.0, %v760
        %v762 = vpop.f32.mrf.mxu0
        %v763 = vadd.f32 0.0, %v762
        %764 = vmatmul.bf16.gmra.mxu0 %v582
        %v765 = vpop.f32.mrf.mxu0
        %v766 = vadd.f32 0.0, %v765
        %v767 = vpop.f32.mrf.mxu0
        %v768 = vadd.f32 0.0, %v767
        %769 = vmatmul.bf16.gmra.mxu0 %v583
        %v770 = vpop.f32.mrf.mxu0
        %v771 = vadd.f32 0.0, %v770
        %v772 = vpop.f32.mrf.mxu0
        %v773 = vadd.f32 0.0, %v772
        %774 = vmatmul.bf16.gmra.mxu0 %v584
        %v775 = vpop.f32.mrf.mxu0
        %v776 = vadd.f32 0.0, %v775
        %v777 = vpop.f32.mrf.mxu0
        %v778 = vadd.f32 0.0, %v777
        %779 = vmatmul.bf16.gmra.mxu0 %v585
        %v780 = vpop.f32.mrf.mxu0
        %v781 = vadd.f32 0.0, %v780
        %v782 = vpop.f32.mrf.mxu0
        %v783 = vadd.f32 0.0, %v782
        %784 = vmatmul.bf16.gmra.mxu0 %v586
        %v785 = vpop.f32.mrf.mxu0
        %v786 = vadd.f32 0.0, %v785
        %v787 = vpop.f32.mrf.mxu0
        %v788 = vadd.f32 0.0, %v787
        %789 = vmatmul.bf16.gmra.mxu0 %v587
        %v790 = vpop.f32.mrf.mxu0
        %v791 = vadd.f32 0.0, %v790
        %v792 = vpop.f32.mrf.mxu0
        %v793 = vadd.f32 0.0, %v792
        %794 = vmatmul.bf16.gmra.mxu0 %v588
        %v795 = vpop.f32.mrf.mxu0
        %v796 = vadd.f32 0.0, %v795
        %v797 = vpop.f32.mrf.mxu0
        %v798 = vadd.f32 0.0, %v797
        %799 = vmatmul.bf16.gmra.mxu0 %v589
        %v800 = vpop.f32.mrf.mxu0
        %v801 = vadd.f32 0.0, %v800
        %v802 = vpop.f32.mrf.mxu0
        %v803 = vadd.f32 0.0, %v802
        %804 = vmatmul.bf16.gmra.mxu0 %v590
        %v805 = vpop.f32.mrf.mxu0
        %v806 = vadd.f32 0.0, %v805
        %v807 = vpop.f32.mrf.mxu0
        %v808 = vadd.f32 0.0, %v807
        %809 = vdwg.mxu0
        %v813 = vunpack.c.l.b16 %v363
        %v814 = vunpack.c.l.b16 %v364
        %v815 = vunpack.c.l.b16 %v365
        %v816 = vpack.c.b16 %v814, %v813
        %v817 = vpack.c.b16 %v510, %v815
        %v818 = vpack.c.b16 %v512, %v511
        %v819 = vpack.c.b16 %v514, %v513
        %v820 = vpack.c.b16 %v516, %v515
        %v821 = vpack.c.b16 %v518, %v517
        %v822 = vpack.c.b16 %v520, %v519
        %v823 = vpack.c.b16 %v522, %v521
        %v824 = vpack.c.b16 %v524, %v523
        %v825 = vpack.c.b16 %v526, %v525
        %v826 = vpack.c.b16 %v528, %v527
        %v827 = vpack.c.b16 %v530, %v529
        %v828 = vpack.c.b16 %v532, %v531
        %v829 = vpack.c.b16 %v534, %v533
        %v830 = vpack.c.b16 %v536, %v535
        %v831 = vpack.c.b16 %v538, %v537
        %v832 = vpack.c.b16 %v540, %v539
        %v833 = vpack.c.b16 %v542, %v541
        %v834 = vpack.c.b16 %v544, %v543
        %v835 = vpack.c.b16 %v546, %v545
        %v836 = vpack.c.b16 %v548, %v547
        %v837 = vpack.c.b16 %v550, %v549
        %v838 = vpack.c.b16 %v552, %v551
        %v839 = vpack.c.b16 %v554, %v553
        %v840 = vpack.c.b16 %v556, %v555
        %v841 = vpack.c.b16 %v558, %v557
        %v842 = vpack.c.b16 %v560, %v559
        %v886 = vunpack.c.l.b16 %v423
        %v887 = vunpack.c.l.b16 %v424
        %v888 = vunpack.c.l.b16 %v425
        %v889 = vunpack.c.l.b16 %v426
        %v890 = vunpack.c.l.b16 %v427
        %v891 = vunpack.c.l.b16 %v428
        %v892 = vunpack.c.l.b16 %v429
        %v893 = vunpack.c.l.b16 %v430
        %v894 = vunpack.c.l.b16 %v431
        %v895 = vunpack.c.l.b16 %v432
        %v896 = vunpack.c.l.b16 %v433
        %v897 = vunpack.c.l.b16 %v434
        %v898 = vunpack.c.l.b16 %v435
        %v899 = vunpack.c.l.b16 %v436
        %v900 = vunpack.c.l.b16 %v437
        %v901 = vunpack.c.l.b16 %v438
        %v902 = vpack.c.b16 %v887, %v886
        %v903 = vpack.c.b16 %v889, %v888
        %v904 = vpack.c.b16 %v891, %v890
        %v905 = vpack.c.b16 %v893, %v892
        %v906 = vpack.c.b16 %v895, %v894
        %v907 = vpack.c.b16 %v897, %v896
        %v908 = vpack.c.b16 %v899, %v898
        %v909 = vpack.c.b16 %v901, %v900
        %918 = vmatpush.bf16.msra.mxu0 %v909
        %919 = vmatpush.bf16.msra.mxu0 %v908
        %920 = vmatpush.bf16.msra.mxu0 %v907
        %921 = vmatpush.bf16.msra.mxu0 %v906
        %922 = vmatpush.bf16.msra.mxu0 %v905
        %923 = vmatpush.bf16.msra.mxu0 %v904
        %924 = vmatpush.bf16.msra.mxu0 %v903
        %925 = vmatpush.bf16.msra.mxu0 %v902
        %926 = vmatmul.bf16.gmra.mxu0 %v816
        %v927 = vpop.f32.mrf.mxu0
        %v928 = vadd.f32 %v676, %v927
        %v929 = vpop.f32.mrf.mxu0
        %v930 = vadd.f32 %v678, %v929
        %931 = vmatmul.bf16.gmra.mxu0 %v817
        %v932 = vpop.f32.mrf.mxu0
        %v933 = vadd.f32 %v681, %v932
        %v934 = vpop.f32.mrf.mxu0
        %v935 = vadd.f32 %v683, %v934
        %936 = vmatmul.bf16.gmra.mxu0 %v818
        %v937 = vpop.f32.mrf.mxu0
        %v938 = vadd.f32 %v686, %v937
        %v939 = vpop.f32.mrf.mxu0
        %v940 = vadd.f32 %v688, %v939
        %941 = vmatmul.bf16.gmra.mxu0 %v819
        %v942 = vpop.f32.mrf.mxu0
        %v943 = vadd.f32 %v691, %v942
        %v944 = vpop.f32.mrf.mxu0
        %v945 = vadd.f32 %v693, %v944
        %946 = vmatmul.bf16.gmra.mxu0 %v820
        %v947 = vpop.f32.mrf.mxu0
        %v948 = vadd.f32 %v696, %v947
        %v949 = vpop.f32.mrf.mxu0
        %v950 = vadd.f32 %v698, %v949
        %951 = vmatmul.bf16.gmra.mxu0 %v821
        %v952 = vpop.f32.mrf.mxu0
        %v953 = vadd.f32 %v701, %v952
        %v954 = vpop.f32.mrf.mxu0
        %v955 = vadd.f32 %v703, %v954
        %956 = vmatmul.bf16.gmra.mxu0 %v822
        %v957 = vpop.f32.mrf.mxu0
        %v958 = vadd.f32 %v706, %v957
        %v959 = vpop.f32.mrf.mxu0
        %v960 = vadd.f32 %v708, %v959
        %961 = vmatmul.bf16.gmra.mxu0 %v823
        %v962 = vpop.f32.mrf.mxu0
        %v963 = vadd.f32 %v711, %v962
        %v964 = vpop.f32.mrf.mxu0
        %v965 = vadd.f32 %v713, %v964
        %966 = vmatmul.bf16.gmra.mxu0 %v824
        %v967 = vpop.f32.mrf.mxu0
        %v968 = vadd.f32 %v716, %v967
        %v969 = vpop.f32.mrf.mxu0
        %v970 = vadd.f32 %v718, %v969
        %971 = vmatmul.bf16.gmra.mxu0 %v825
        %v972 = vpop.f32.mrf.mxu0
        %v973 = vadd.f32 %v721, %v972
        %v974 = vpop.f32.mrf.mxu0
        %v975 = vadd.f32 %v723, %v974
        %976 = vmatmul.bf16.gmra.mxu0 %v826
        %v977 = vpop.f32.mrf.mxu0
        %v978 = vadd.f32 %v726, %v977
        %v979 = vpop.f32.mrf.mxu0
        %v980 = vadd.f32 %v728, %v979
        %981 = vmatmul.bf16.gmra.mxu0 %v827
        %v982 = vpop.f32.mrf.mxu0
        %v983 = vadd.f32 %v731, %v982
        %v984 = vpop.f32.mrf.mxu0
        %v985 = vadd.f32 %v733, %v984
        %986 = vmatmul.bf16.gmra.mxu0 %v828
        %v987 = vpop.f32.mrf.mxu0
        %v988 = vadd.f32 %v736, %v987
        %v989 = vpop.f32.mrf.mxu0
        %v990 = vadd.f32 %v738, %v989
        %991 = vmatmul.bf16.gmra.mxu0 %v829
        %v992 = vpop.f32.mrf.mxu0
        %v993 = vadd.f32 %v741, %v992
        %v994 = vpop.f32.mrf.mxu0
        %v995 = vadd.f32 %v743, %v994
        %996 = vmatmul.bf16.gmra.mxu0 %v830
        %v997 = vpop.f32.mrf.mxu0
        %v998 = vadd.f32 %v746, %v997
        %v999 = vpop.f32.mrf.mxu0
        %v1000 = vadd.f32 %v748, %v999
        %1001 = vmatmul.bf16.gmra.mxu0 %v831
        %v1002 = vpop.f32.mrf.mxu0
        %v1003 = vadd.f32 %v751, %v1002
        %v1004 = vpop.f32.mrf.mxu0
        %v1005 = vadd.f32 %v753, %v1004
        %1006 = vmatmul.bf16.gmra.mxu0 %v832
        %v1007 = vpop.f32.mrf.mxu0
        %v1008 = vadd.f32 %v756, %v1007
        %v1009 = vpop.f32.mrf.mxu0
        %v1010 = vadd.f32 %v758, %v1009
        %1011 = vmatmul.bf16.gmra.mxu0 %v833
        %v1012 = vpop.f32.mrf.mxu0
        %v1013 = vadd.f32 %v761, %v1012
        %v1014 = vpop.f32.mrf.mxu0
        %v1015 = vadd.f32 %v763, %v1014
        %1016 = vmatmul.bf16.gmra.mxu0 %v834
        %v1017 = vpop.f32.mrf.mxu0
        %v1018 = vadd.f32 %v766, %v1017
        %v1019 = vpop.f32.mrf.mxu0
        %v1020 = vadd.f32 %v768, %v1019
        %1021 = vmatmul.bf16.gmra.mxu0 %v835
        %v1022 = vpop.f32.mrf.mxu0
        %v1023 = vadd.f32 %v771, %v1022
        %v1024 = vpop.f32.mrf.mxu0
        %v1025 = vadd.f32 %v773, %v1024
        %1026 = vmatmul.bf16.gmra.mxu0 %v836
        %v1027 = vpop.f32.mrf.mxu0
        %v1028 = vadd.f32 %v776, %v1027
        %v1029 = vpop.f32.mrf.mxu0
        %v1030 = vadd.f32 %v778, %v1029
        %1031 = vmatmul.bf16.gmra.mxu0 %v837
        %v1032 = vpop.f32.mrf.mxu0
        %v1033 = vadd.f32 %v781, %v1032
        %v1034 = vpop.f32.mrf.mxu0
        %v1035 = vadd.f32 %v783, %v1034
        %1036 = vmatmul.bf16.gmra.mxu0 %v838
        %v1037 = vpop.f32.mrf.mxu0
        %v1038 = vadd.f32 %v786, %v1037
        %v1039 = vpop.f32.mrf.mxu0
        %v1040 = vadd.f32 %v788, %v1039
        %1041 = vmatmul.bf16.gmra.mxu0 %v839
        %v1042 = vpop.f32.mrf.mxu0
        %v1043 = vadd.f32 %v791, %v1042
        %v1044 = vpop.f32.mrf.mxu0
        %v1045 = vadd.f32 %v793, %v1044
        %1046 = vmatmul.bf16.gmra.mxu0 %v840
        %v1047 = vpop.f32.mrf.mxu0
        %v1048 = vadd.f32 %v796, %v1047
        %v1049 = vpop.f32.mrf.mxu0
        %v1050 = vadd.f32 %v798, %v1049
        %1051 = vmatmul.bf16.gmra.mxu0 %v841
        %v1052 = vpop.f32.mrf.mxu0
        %v1053 = vadd.f32 %v801, %v1052
        %v1054 = vpop.f32.mrf.mxu0
        %v1055 = vadd.f32 %v803, %v1054
        %1056 = vmatmul.bf16.gmra.mxu0 %v842
        %v1057 = vpop.f32.mrf.mxu0
        %v1058 = vadd.f32 %v806, %v1057
        %v1059 = vpop.f32.mrf.mxu0
        %v1060 = vadd.f32 %v808, %v1059
        %1061 = vdwg.mxu0
        %s1062 = scalar_lea.vmem [#allocation4], 384
        %v1063 = vld [vmem:[%s1062] sm:$0xf]
        %v1064 = vld [vmem:[%s1062 + $0x4] sm:$0xf]
        %v1065 = vld [vmem:[%s1062 + $0x8] sm:$0xf]
        %v1066 = vld [vmem:[%s1062 + $0xc] sm:$0xf]
        %v1067 = vld [vmem:[%s1062 + $0x10] sm:$0xf]
        %v1068 = vld [vmem:[%s1062 + $0x14] sm:$0xf]
        %v1069 = vld [vmem:[%s1062 + $0x18] sm:$0xf]
        %v1070 = vld [vmem:[%s1062 + $0x1c] sm:$0xf]
        %v1071 = vld [vmem:[%s1062 + $0x20] sm:$0xf]
        %v1072 = vld [vmem:[%s1062 + $0x24] sm:$0xf]
        %v1073 = vld [vmem:[%s1062 + $0x28] sm:$0xf]
        %v1074 = vld [vmem:[%s1062 + $0x2c] sm:$0xf]
        %v1075 = vld [vmem:[%s1062 + $0x30] sm:$0xf]
        %v1076 = vld [vmem:[%s1062 + $0x34] sm:$0xf]
        %v1077 = vld [vmem:[%s1062 + $0x38] sm:$0xf]
        %v1078 = vld [vmem:[%s1062 + $0x3c] sm:$0xf]
        %v1082 = vunpack.c.l.b16 %v420
        %v1083 = vunpack.c.l.b16 %v421
        %v1084 = vunpack.c.l.b16 %v422
        %v1085 = vpack.c.b16 %v562, %v561
        %v1086 = vpack.c.b16 %v1082, %v563
        %v1087 = vpack.c.b16 %v1084, %v1083
        %v1107 = vunpack.c.l.b16 %v1063
        %v1108 = vunpack.c.l.b16 %v1064
        %v1109 = vunpack.c.l.b16 %v1065
        %v1110 = vunpack.c.l.b16 %v1066
        %v1111 = vunpack.c.l.b16 %v1067
        %v1112 = vunpack.c.l.b16 %v1068
        %v1113 = vunpack.c.l.b16 %v1069
        %v1114 = vunpack.c.l.b16 %v1070
        %v1115 = vunpack.c.l.b16 %v1071
        %v1116 = vunpack.c.l.b16 %v1072
        %v1117 = vunpack.c.l.b16 %v1073
        %v1118 = vunpack.c.l.b16 %v1074
        %v1119 = vunpack.c.l.b16 %v1075
        %v1120 = vunpack.c.l.b16 %v1076
        %v1121 = vunpack.c.l.b16 %v1077
        %v1122 = vunpack.c.l.b16 %v1078
        %v1123 = vpack.c.b16 %v1108, %v1107
        %v1124 = vpack.c.b16 %v1110, %v1109
        %v1125 = vpack.c.b16 %v1112, %v1111
        %v1126 = vpack.c.b16 %v1114, %v1113
        %v1127 = vpack.c.b16 %v1116, %v1115
        %v1128 = vpack.c.b16 %v1118, %v1117
        %v1129 = vpack.c.b16 %v1120, %v1119
        %v1130 = vpack.c.b16 %v1122, %v1121
        %1139 = vmatpush.bf16.msra.mxu0 %v1130
        %1140 = vmatpush.bf16.msra.mxu0 %v1129
        %1141 = vmatpush.bf16.msra.mxu0 %v1128
        %1142 = vmatpush.bf16.msra.mxu0 %v1127
        %1143 = vmatpush.bf16.msra.mxu0 %v1126
        %1144 = vmatpush.bf16.msra.mxu0 %v1125
        %1145 = vmatpush.bf16.msra.mxu0 %v1124
        %1146 = vmatpush.bf16.msra.mxu0 %v1123
        %1147 = vmatmul.bf16.gmra.mxu0 %v819
        %v1148 = vpop.f32.mrf.mxu0
        %v1149 = vadd.f32 0.0, %v1148
        %v1150 = vpop.f32.mrf.mxu0
        %v1151 = vadd.f32 0.0, %v1150
        %1152 = vmatmul.bf16.gmra.mxu0 %v820
        %v1153 = vpop.f32.mrf.mxu0
        %v1154 = vadd.f32 0.0, %v1153
        %v1155 = vpop.f32.mrf.mxu0
        %v1156 = vadd.f32 0.0, %v1155
        %1157 = vmatmul.bf16.gmra.mxu0 %v821
        %v1158 = vpop.f32.mrf.mxu0
        %v1159 = vadd.f32 0.0, %v1158
        %v1160 = vpop.f32.mrf.mxu0
        %v1161 = vadd.f32 0.0, %v1160
        %1162 = vmatmul.bf16.gmra.mxu0 %v822
        %v1163 = vpop.f32.mrf.mxu0
        %v1164 = vadd.f32 0.0, %v1163
        %v1165 = vpop.f32.mrf.mxu0
        %v1166 = vadd.f32 0.0, %v1165
        %1167 = vmatmul.bf16.gmra.mxu0 %v823
        %v1168 = vpop.f32.mrf.mxu0
        %v1169 = vadd.f32 0.0, %v1168
        %v1170 = vpop.f32.mrf.mxu0
        %v1171 = vadd.f32 0.0, %v1170
        %1172 = vmatmul.bf16.gmra.mxu0 %v824
        %v1173 = vpop.f32.mrf.mxu0
        %v1174 = vadd.f32 0.0, %v1173
        %v1175 = vpop.f32.mrf.mxu0
        %v1176 = vadd.f32 0.0, %v1175
        %1177 = vmatmul.bf16.gmra.mxu0 %v825
        %v1178 = vpop.f32.mrf.mxu0
        %v1179 = vadd.f32 0.0, %v1178
        %v1180 = vpop.f32.mrf.mxu0
        %v1181 = vadd.f32 0.0, %v1180
        %1182 = vmatmul.bf16.gmra.mxu0 %v826
        %v1183 = vpop.f32.mrf.mxu0
        %v1184 = vadd.f32 0.0, %v1183
        %v1185 = vpop.f32.mrf.mxu0
        %v1186 = vadd.f32 0.0, %v1185
        %1187 = vmatmul.bf16.gmra.mxu0 %v827
        %v1188 = vpop.f32.mrf.mxu0
        %v1189 = vadd.f32 0.0, %v1188
        %v1190 = vpop.f32.mrf.mxu0
        %v1191 = vadd.f32 0.0, %v1190
        %1192 = vmatmul.bf16.gmra.mxu0 %v828
        %v1193 = vpop.f32.mrf.mxu0
        %v1194 = vadd.f32 0.0, %v1193
        %v1195 = vpop.f32.mrf.mxu0
        %v1196 = vadd.f32 0.0, %v1195
        %1197 = vmatmul.bf16.gmra.mxu0 %v829
        %v1198 = vpop.f32.mrf.mxu0
        %v1199 = vadd.f32 0.0, %v1198
        %v1200 = vpop.f32.mrf.mxu0
        %v1201 = vadd.f32 0.0, %v1200
        %1202 = vmatmul.bf16.gmra.mxu0 %v830
        %v1203 = vpop.f32.mrf.mxu0
        %v1204 = vadd.f32 0.0, %v1203
        %v1205 = vpop.f32.mrf.mxu0
        %v1206 = vadd.f32 0.0, %v1205
        %1207 = vmatmul.bf16.gmra.mxu0 %v831
        %v1208 = vpop.f32.mrf.mxu0
        %v1209 = vadd.f32 0.0, %v1208
        %v1210 = vpop.f32.mrf.mxu0
        %v1211 = vadd.f32 0.0, %v1210
        %1212 = vmatmul.bf16.gmra.mxu0 %v832
        %v1213 = vpop.f32.mrf.mxu0
        %v1214 = vadd.f32 0.0, %v1213
        %v1215 = vpop.f32.mrf.mxu0
        %v1216 = vadd.f32 0.0, %v1215
        %1217 = vmatmul.bf16.gmra.mxu0 %v833
        %v1218 = vpop.f32.mrf.mxu0
        %v1219 = vadd.f32 0.0, %v1218
        %v1220 = vpop.f32.mrf.mxu0
        %v1221 = vadd.f32 0.0, %v1220
        %1222 = vmatmul.bf16.gmra.mxu0 %v834
        %v1223 = vpop.f32.mrf.mxu0
        %v1224 = vadd.f32 0.0, %v1223
        %v1225 = vpop.f32.mrf.mxu0
        %v1226 = vadd.f32 0.0, %v1225
        %1227 = vmatmul.bf16.gmra.mxu0 %v835
        %v1228 = vpop.f32.mrf.mxu0
        %v1229 = vadd.f32 0.0, %v1228
        %v1230 = vpop.f32.mrf.mxu0
        %v1231 = vadd.f32 0.0, %v1230
        %1232 = vmatmul.bf16.gmra.mxu0 %v836
        %v1233 = vpop.f32.mrf.mxu0
        %v1234 = vadd.f32 0.0, %v1233
        %v1235 = vpop.f32.mrf.mxu0
        %v1236 = vadd.f32 0.0, %v1235
        %1237 = vmatmul.bf16.gmra.mxu0 %v837
        %v1238 = vpop.f32.mrf.mxu0
        %v1239 = vadd.f32 0.0, %v1238
        %v1240 = vpop.f32.mrf.mxu0
        %v1241 = vadd.f32 0.0, %v1240
        %1242 = vmatmul.bf16.gmra.mxu0 %v838
        %v1243 = vpop.f32.mrf.mxu0
        %v1244 = vadd.f32 0.0, %v1243
        %v1245 = vpop.f32.mrf.mxu0
        %v1246 = vadd.f32 0.0, %v1245
        %1247 = vmatmul.bf16.gmra.mxu0 %v839
        %v1248 = vpop.f32.mrf.mxu0
        %v1249 = vadd.f32 0.0, %v1248
        %v1250 = vpop.f32.mrf.mxu0
        %v1251 = vadd.f32 0.0, %v1250
        %1252 = vmatmul.bf16.gmra.mxu0 %v840
        %v1253 = vpop.f32.mrf.mxu0
        %v1254 = vadd.f32 0.0, %v1253
        %v1255 = vpop.f32.mrf.mxu0
        %v1256 = vadd.f32 0.0, %v1255
        %1257 = vmatmul.bf16.gmra.mxu0 %v841
        %v1258 = vpop.f32.mrf.mxu0
        %v1259 = vadd.f32 0.0, %v1258
        %v1260 = vpop.f32.mrf.mxu0
        %v1261 = vadd.f32 0.0, %v1260
        %1262 = vmatmul.bf16.gmra.mxu0 %v842
        %v1263 = vpop.f32.mrf.mxu0
        %v1264 = vadd.f32 0.0, %v1263
        %v1265 = vpop.f32.mrf.mxu0
        %v1266 = vadd.f32 0.0, %v1265
        %1267 = vmatmul.bf16.gmra.mxu0 %v1085
        %v1268 = vpop.f32.mrf.mxu0
        %v1269 = vadd.f32 0.0, %v1268
        %v1270 = vpop.f32.mrf.mxu0
        %v1271 = vadd.f32 0.0, %v1270
        %1272 = vmatmul.bf16.gmra.mxu0 %v1086
        %v1273 = vpop.f32.mrf.mxu0
        %v1274 = vadd.f32 0.0, %v1273
        %v1275 = vpop.f32.mrf.mxu0
        %v1276 = vadd.f32 0.0, %v1275
        %1277 = vmatmul.bf16.gmra.mxu0 %v1087
        %v1278 = vpop.f32.mrf.mxu0
        %v1279 = vadd.f32 0.0, %v1278
        %v1280 = vpop.f32.mrf.mxu0
        %v1281 = vadd.f32 0.0, %v1280
        %1282 = vdwg.mxu0
        %v1283 = vadd.f32 %v928, %v1149
        %v1284 = vadd.f32 %v930, %v1151
        %v1285 = vadd.f32 %v933, %v1154
        %v1286 = vadd.f32 %v935, %v1156
        %v1287 = vadd.f32 %v938, %v1159
        %v1288 = vadd.f32 %v940, %v1161
        %v1289 = vadd.f32 %v943, %v1164
        %v1290 = vadd.f32 %v945, %v1166
        %v1291 = vadd.f32 %v948, %v1169
        %v1292 = vadd.f32 %v950, %v1171
        %v1293 = vadd.f32 %v953, %v1174
        %v1294 = vadd.f32 %v955, %v1176
        %v1295 = vadd.f32 %v958, %v1179
        %v1296 = vadd.f32 %v960, %v1181
        %v1297 = vadd.f32 %v963, %v1184
        %v1298 = vadd.f32 %v965, %v1186
        %v1299 = vadd.f32 %v968, %v1189
        %v1300 = vadd.f32 %v970, %v1191
        %v1301 = vadd.f32 %v973, %v1194
        %v1302 = vadd.f32 %v975, %v1196
        %v1303 = vadd.f32 %v978, %v1199
        %v1304 = vadd.f32 %v980, %v1201
        %v1305 = vadd.f32 %v983, %v1204
        %v1306 = vadd.f32 %v985, %v1206
        %v1307 = vadd.f32 %v988, %v1209
        %v1308 = vadd.f32 %v990, %v1211
        %v1309 = vadd.f32 %v993, %v1214
        %v1310 = vadd.f32 %v995, %v1216
        %v1311 = vadd.f32 %v998, %v1219
        %v1312 = vadd.f32 %v1000, %v1221
        %v1313 = vadd.f32 %v1003, %v1224
        %v1314 = vadd.f32 %v1005, %v1226
        %v1315 = vadd.f32 %v1008, %v1229
        %v1316 = vadd.f32 %v1010, %v1231
        %v1317 = vadd.f32 %v1013, %v1234
        %v1318 = vadd.f32 %v1015, %v1236
        %v1319 = vadd.f32 %v1018, %v1239
        %v1320 = vadd.f32 %v1020, %v1241
        %v1321 = vadd.f32 %v1023, %v1244
        %v1322 = vadd.f32 %v1025, %v1246
        %v1323 = vadd.f32 %v1028, %v1249
        %v1324 = vadd.f32 %v1030, %v1251
        %v1325 = vadd.f32 %v1033, %v1254
        %v1326 = vadd.f32 %v1035, %v1256
        %v1327 = vadd.f32 %v1038, %v1259
        %v1328 = vadd.f32 %v1040, %v1261
        %v1329 = vadd.f32 %v1043, %v1264
        %v1330 = vadd.f32 %v1045, %v1266
        %v1331 = vadd.f32 %v1048, %v1269
        %v1332 = vadd.f32 %v1050, %v1271
        %v1333 = vadd.f32 %v1053, %v1274
        %v1334 = vadd.f32 %v1055, %v1276
        %v1335 = vadd.f32 %v1058, %v1279
        %v1336 = vadd.f32 %v1060, %v1281
        %s1337 = scalar_lea.vmem [#allocation4], 64
        %v1338 = vld [vmem:[%s1337] sm:$0xf]
        %v1339 = vld [vmem:[%s1337 + $0x4] sm:$0xf]
        %v1340 = vld [vmem:[%s1337 + $0x8] sm:$0xf]
        %v1341 = vld [vmem:[%s1337 + $0xc] sm:$0xf]
        %v1342 = vld [vmem:[%s1337 + $0x10] sm:$0xf]
        %v1343 = vld [vmem:[%s1337 + $0x14] sm:$0xf]
        %v1344 = vld [vmem:[%s1337 + $0x18] sm:$0xf]
        %v1345 = vld [vmem:[%s1337 + $0x1c] sm:$0xf]
        %v1346 = vld [vmem:[%s1337 + $0x20] sm:$0xf]
        %v1347 = vld [vmem:[%s1337 + $0x24] sm:$0xf]
        %v1348 = vld [vmem:[%s1337 + $0x28] sm:$0xf]
        %v1349 = vld [vmem:[%s1337 + $0x2c] sm:$0xf]
        %v1350 = vld [vmem:[%s1337 + $0x30] sm:$0xf]
        %v1351 = vld [vmem:[%s1337 + $0x34] sm:$0xf]
        %v1352 = vld [vmem:[%s1337 + $0x38] sm:$0xf]
        %v1353 = vld [vmem:[%s1337 + $0x3c] sm:$0xf]
        %s1354 = scalar_lea.vmem [#allocation4], 256
        %v1355 = vld [vmem:[%s1354] sm:$0xf]
        %v1356 = vld [vmem:[%s1354 + $0x4] sm:$0xf]
        %v1357 = vld [vmem:[%s1354 + $0x8] sm:$0xf]
        %v1358 = vld [vmem:[%s1354 + $0xc] sm:$0xf]
        %v1359 = vld [vmem:[%s1354 + $0x10] sm:$0xf]
        %v1360 = vld [vmem:[%s1354 + $0x14] sm:$0xf]
        %v1361 = vld [vmem:[%s1354 + $0x18] sm:$0xf]
        %v1362 = vld [vmem:[%s1354 + $0x1c] sm:$0xf]
        %v1363 = vld [vmem:[%s1354 + $0x20] sm:$0xf]
        %v1364 = vld [vmem:[%s1354 + $0x24] sm:$0xf]
        %v1365 = vld [vmem:[%s1354 + $0x28] sm:$0xf]
        %v1366 = vld [vmem:[%s1354 + $0x2c] sm:$0xf]
        %v1367 = vld [vmem:[%s1354 + $0x30] sm:$0xf]
        %v1368 = vld [vmem:[%s1354 + $0x34] sm:$0xf]
        %v1369 = vld [vmem:[%s1354 + $0x38] sm:$0xf]
        %v1370 = vld [vmem:[%s1354 + $0x3c] sm:$0xf]
        %v1387 = vunpack.c.l.b16 %v1355
        %v1388 = vunpack.c.l.b16 %v1356
        %v1389 = vunpack.c.l.b16 %v1357
        %v1390 = vunpack.c.l.b16 %v1358
        %v1391 = vunpack.c.l.b16 %v1359
        %v1392 = vunpack.c.l.b16 %v1360
        %v1393 = vunpack.c.l.b16 %v1361
        %v1394 = vunpack.c.l.b16 %v1362
        %v1395 = vunpack.c.l.b16 %v1363
        %v1396 = vunpack.c.l.b16 %v1364
        %v1397 = vunpack.c.l.b16 %v1365
        %v1398 = vunpack.c.l.b16 %v1366
        %v1399 = vunpack.c.l.b16 %v1367
        %v1400 = vunpack.c.l.b16 %v1368
        %v1401 = vunpack.c.l.b16 %v1369
        %v1402 = vunpack.c.l.b16 %v1370
        %v1403 = vpack.c.b16 %v1388, %v1387
        %v1404 = vpack.c.b16 %v1390, %v1389
        %v1405 = vpack.c.b16 %v1392, %v1391
        %v1406 = vpack.c.b16 %v1394, %v1393
        %v1407 = vpack.c.b16 %v1396, %v1395
        %v1408 = vpack.c.b16 %v1398, %v1397
        %v1409 = vpack.c.b16 %v1400, %v1399
        %v1410 = vpack.c.b16 %v1402, %v1401
        %1419 = vmatpush.bf16.msra.mxu0 %v1410
        %1420 = vmatpush.bf16.msra.mxu0 %v1409
        %1421 = vmatpush.bf16.msra.mxu0 %v1408
        %1422 = vmatpush.bf16.msra.mxu0 %v1407
        %1423 = vmatpush.bf16.msra.mxu0 %v1406
        %1424 = vmatpush.bf16.msra.mxu0 %v1405
        %1425 = vmatpush.bf16.msra.mxu0 %v1404
        %1426 = vmatpush.bf16.msra.mxu0 %v1403
        %1427 = vmatmul.bf16.gmra.mxu0 %v564
        %v1428 = vpop.f32.mrf.mxu0
        %v1429 = vadd.f32 0.0, %v1428
        %v1430 = vpop.f32.mrf.mxu0
        %v1431 = vadd.f32 0.0, %v1430
        %1432 = vmatmul.bf16.gmra.mxu0 %v565
        %v1433 = vpop.f32.mrf.mxu0
        %v1434 = vadd.f32 0.0, %v1433
        %v1435 = vpop.f32.mrf.mxu0
        %v1436 = vadd.f32 0.0, %v1435
        %1437 = vmatmul.bf16.gmra.mxu0 %v566
        %v1438 = vpop.f32.mrf.mxu0
        %v1439 = vadd.f32 0.0, %v1438
        %v1440 = vpop.f32.mrf.mxu0
        %v1441 = vadd.f32 0.0, %v1440
        %1442 = vmatmul.bf16.gmra.mxu0 %v567
        %v1443 = vpop.f32.mrf.mxu0
        %v1444 = vadd.f32 0.0, %v1443
        %v1445 = vpop.f32.mrf.mxu0
        %v1446 = vadd.f32 0.0, %v1445
        %1447 = vmatmul.bf16.gmra.mxu0 %v568
        %v1448 = vpop.f32.mrf.mxu0
        %v1449 = vadd.f32 0.0, %v1448
        %v1450 = vpop.f32.mrf.mxu0
        %v1451 = vadd.f32 0.0, %v1450
        %1452 = vmatmul.bf16.gmra.mxu0 %v569
        %v1453 = vpop.f32.mrf.mxu0
        %v1454 = vadd.f32 0.0, %v1453
        %v1455 = vpop.f32.mrf.mxu0
        %v1456 = vadd.f32 0.0, %v1455
        %1457 = vmatmul.bf16.gmra.mxu0 %v570
        %v1458 = vpop.f32.mrf.mxu0
        %v1459 = vadd.f32 0.0, %v1458
        %v1460 = vpop.f32.mrf.mxu0
        %v1461 = vadd.f32 0.0, %v1460
        %1462 = vmatmul.bf16.gmra.mxu0 %v571
        %v1463 = vpop.f32.mrf.mxu0
        %v1464 = vadd.f32 0.0, %v1463
        %v1465 = vpop.f32.mrf.mxu0
        %v1466 = vadd.f32 0.0, %v1465
        %1467 = vmatmul.bf16.gmra.mxu0 %v572
        %v1468 = vpop.f32.mrf.mxu0
        %v1469 = vadd.f32 0.0, %v1468
        %v1470 = vpop.f32.mrf.mxu0
        %v1471 = vadd.f32 0.0, %v1470
        %1472 = vmatmul.bf16.gmra.mxu0 %v573
        %v1473 = vpop.f32.mrf.mxu0
        %v1474 = vadd.f32 0.0, %v1473
        %v1475 = vpop.f32.mrf.mxu0
        %v1476 = vadd.f32 0.0, %v1475
        %1477 = vmatmul.bf16.gmra.mxu0 %v574
        %v1478 = vpop.f32.mrf.mxu0
        %v1479 = vadd.f32 0.0, %v1478
        %v1480 = vpop.f32.mrf.mxu0
        %v1481 = vadd.f32 0.0, %v1480
        %1482 = vmatmul.bf16.gmra.mxu0 %v575
        %v1483 = vpop.f32.mrf.mxu0
        %v1484 = vadd.f32 0.0, %v1483
        %v1485 = vpop.f32.mrf.mxu0
        %v1486 = vadd.f32 0.0, %v1485
        %1487 = vmatmul.bf16.gmra.mxu0 %v576
        %v1488 = vpop.f32.mrf.mxu0
        %v1489 = vadd.f32 0.0, %v1488
        %v1490 = vpop.f32.mrf.mxu0
        %v1491 = vadd.f32 0.0, %v1490
        %1492 = vmatmul.bf16.gmra.mxu0 %v577
        %v1493 = vpop.f32.mrf.mxu0
        %v1494 = vadd.f32 0.0, %v1493
        %v1495 = vpop.f32.mrf.mxu0
        %v1496 = vadd.f32 0.0, %v1495
        %1497 = vmatmul.bf16.gmra.mxu0 %v578
        %v1498 = vpop.f32.mrf.mxu0
        %v1499 = vadd.f32 0.0, %v1498
        %v1500 = vpop.f32.mrf.mxu0
        %v1501 = vadd.f32 0.0, %v1500
        %1502 = vmatmul.bf16.gmra.mxu0 %v579
        %v1503 = vpop.f32.mrf.mxu0
        %v1504 = vadd.f32 0.0, %v1503
        %v1505 = vpop.f32.mrf.mxu0
        %v1506 = vadd.f32 0.0, %v1505
        %1507 = vmatmul.bf16.gmra.mxu0 %v580
        %v1508 = vpop.f32.mrf.mxu0
        %v1509 = vadd.f32 0.0, %v1508
        %v1510 = vpop.f32.mrf.mxu0
        %v1511 = vadd.f32 0.0, %v1510
        %1512 = vmatmul.bf16.gmra.mxu0 %v581
        %v1513 = vpop.f32.mrf.mxu0
        %v1514 = vadd.f32 0.0, %v1513
        %v1515 = vpop.f32.mrf.mxu0
        %v1516 = vadd.f32 0.0, %v1515
        %1517 = vmatmul.bf16.gmra.mxu0 %v582
        %v1518 = vpop.f32.mrf.mxu0
        %v1519 = vadd.f32 0.0, %v1518
        %v1520 = vpop.f32.mrf.mxu0
        %v1521 = vadd.f32 0.0, %v1520
        %1522 = vmatmul.bf16.gmra.mxu0 %v583
        %v1523 = vpop.f32.mrf.mxu0
        %v1524 = vadd.f32 0.0, %v1523
        %v1525 = vpop.f32.mrf.mxu0
        %v1526 = vadd.f32 0.0, %v1525
        %1527 = vmatmul.bf16.gmra.mxu0 %v584
        %v1528 = vpop.f32.mrf.mxu0
        %v1529 = vadd.f32 0.0, %v1528
        %v1530 = vpop.f32.mrf.mxu0
        %v1531 = vadd.f32 0.0, %v1530
        %1532 = vmatmul.bf16.gmra.mxu0 %v585
        %v1533 = vpop.f32.mrf.mxu0
        %v1534 = vadd.f32 0.0, %v1533
        %v1535 = vpop.f32.mrf.mxu0
        %v1536 = vadd.f32 0.0, %v1535
        %1537 = vmatmul.bf16.gmra.mxu0 %v586
        %v1538 = vpop.f32.mrf.mxu0
        %v1539 = vadd.f32 0.0, %v1538
        %v1540 = vpop.f32.mrf.mxu0
        %v1541 = vadd.f32 0.0, %v1540
        %1542 = vmatmul.bf16.gmra.mxu0 %v587
        %v1543 = vpop.f32.mrf.mxu0
        %v1544 = vadd.f32 0.0, %v1543
        %v1545 = vpop.f32.mrf.mxu0
        %v1546 = vadd.f32 0.0, %v1545
        %1547 = vmatmul.bf16.gmra.mxu0 %v588
        %v1548 = vpop.f32.mrf.mxu0
        %v1549 = vadd.f32 0.0, %v1548
        %v1550 = vpop.f32.mrf.mxu0
        %v1551 = vadd.f32 0.0, %v1550
        %1552 = vmatmul.bf16.gmra.mxu0 %v589
        %v1553 = vpop.f32.mrf.mxu0
        %v1554 = vadd.f32 0.0, %v1553
        %v1555 = vpop.f32.mrf.mxu0
        %v1556 = vadd.f32 0.0, %v1555
        %1557 = vmatmul.bf16.gmra.mxu0 %v590
        %v1558 = vpop.f32.mrf.mxu0
        %v1559 = vadd.f32 0.0, %v1558
        %v1560 = vpop.f32.mrf.mxu0
        %v1561 = vadd.f32 0.0, %v1560
        %1562 = vdwg.mxu0
        %v1579 = vunpack.c.l.b16 %v1338
        %v1580 = vunpack.c.l.b16 %v1339
        %v1581 = vunpack.c.l.b16 %v1340
        %v1582 = vunpack.c.l.b16 %v1341
        %v1583 = vunpack.c.l.b16 %v1342
        %v1584 = vunpack.c.l.b16 %v1343
        %v1585 = vunpack.c.l.b16 %v1344
        %v1586 = vunpack.c.l.b16 %v1345
        %v1587 = vunpack.c.l.b16 %v1346
        %v1588 = vunpack.c.l.b16 %v1347
        %v1589 = vunpack.c.l.b16 %v1348
        %v1590 = vunpack.c.l.b16 %v1349
        %v1591 = vunpack.c.l.b16 %v1350
        %v1592 = vunpack.c.l.b16 %v1351
        %v1593 = vunpack.c.l.b16 %v1352
        %v1594 = vunpack.c.l.b16 %v1353
        %v1595 = vpack.c.b16 %v1580, %v1579
        %v1596 = vpack.c.b16 %v1582, %v1581
        %v1597 = vpack.c.b16 %v1584, %v1583
        %v1598 = vpack.c.b16 %v1586, %v1585
        %v1599 = vpack.c.b16 %v1588, %v1587
        %v1600 = vpack.c.b16 %v1590, %v1589
        %v1601 = vpack.c.b16 %v1592, %v1591
        %v1602 = vpack.c.b16 %v1594, %v1593
        %1611 = vmatpush.bf16.msra.mxu0 %v1602
        %1612 = vmatpush.bf16.msra.mxu0 %v1601
        %1613 = vmatpush.bf16.msra.mxu0 %v1600
        %1614 = vmatpush.bf16.msra.mxu0 %v1599
        %1615 = vmatpush.bf16.msra.mxu0 %v1598
        %1616 = vmatpush.bf16.msra.mxu0 %v1597
        %1617 = vmatpush.bf16.msra.mxu0 %v1596
        %1618 = vmatpush.bf16.msra.mxu0 %v1595
        %1619 = vmatmul.bf16.gmra.mxu0 %v816
        %v1620 = vpop.f32.mrf.mxu0
        %v1621 = vadd.f32 %v1429, %v1620
        %v1622 = vpop.f32.mrf.mxu0
        %v1623 = vadd.f32 %v1431, %v1622
        %1624 = vmatmul.bf16.gmra.mxu0 %v817
        %v1625 = vpop.f32.mrf.mxu0
        %v1626 = vadd.f32 %v1434, %v1625
        %v1627 = vpop.f32.mrf.mxu0
        %v1628 = vadd.f32 %v1436, %v1627
        %1629 = vmatmul.bf16.gmra.mxu0 %v818
        %v1630 = vpop.f32.mrf.mxu0
        %v1631 = vadd.f32 %v1439, %v1630
        %v1632 = vpop.f32.mrf.mxu0
        %v1633 = vadd.f32 %v1441, %v1632
        %1634 = vmatmul.bf16.gmra.mxu0 %v819
        %v1635 = vpop.f32.mrf.mxu0
        %v1636 = vadd.f32 %v1444, %v1635
        %v1637 = vpop.f32.mrf.mxu0
        %v1638 = vadd.f32 %v1446, %v1637
        %1639 = vmatmul.bf16.gmra.mxu0 %v820
        %v1640 = vpop.f32.mrf.mxu0
        %v1641 = vadd.f32 %v1449, %v1640
        %v1642 = vpop.f32.mrf.mxu0
        %v1643 = vadd.f32 %v1451, %v1642
        %1644 = vmatmul.bf16.gmra.mxu0 %v821
        %v1645 = vpop.f32.mrf.mxu0
        %v1646 = vadd.f32 %v1454, %v1645
        %v1647 = vpop.f32.mrf.mxu0
        %v1648 = vadd.f32 %v1456, %v1647
        %1649 = vmatmul.bf16.gmra.mxu0 %v822
        %v1650 = vpop.f32.mrf.mxu0
        %v1651 = vadd.f32 %v1459, %v1650
        %v1652 = vpop.f32.mrf.mxu0
        %v1653 = vadd.f32 %v1461, %v1652
        %1654 = vmatmul.bf16.gmra.mxu0 %v823
        %v1655 = vpop.f32.mrf.mxu0
        %v1656 = vadd.f32 %v1464, %v1655
        %v1657 = vpop.f32.mrf.mxu0
        %v1658 = vadd.f32 %v1466, %v1657
        %1659 = vmatmul.bf16.gmra.mxu0 %v824
        %v1660 = vpop.f32.mrf.mxu0
        %v1661 = vadd.f32 %v1469, %v1660
        %v1662 = vpop.f32.mrf.mxu0
        %v1663 = vadd.f32 %v1471, %v1662
        %1664 = vmatmul.bf16.gmra.mxu0 %v825
        %v1665 = vpop.f32.mrf.mxu0
        %v1666 = vadd.f32 %v1474, %v1665
        %v1667 = vpop.f32.mrf.mxu0
        %v1668 = vadd.f32 %v1476, %v1667
        %1669 = vmatmul.bf16.gmra.mxu0 %v826
        %v1670 = vpop.f32.mrf.mxu0
        %v1671 = vadd.f32 %v1479, %v1670
        %v1672 = vpop.f32.mrf.mxu0
        %v1673 = vadd.f32 %v1481, %v1672
        %1674 = vmatmul.bf16.gmra.mxu0 %v827
        %v1675 = vpop.f32.mrf.mxu0
        %v1676 = vadd.f32 %v1484, %v1675
        %v1677 = vpop.f32.mrf.mxu0
        %v1678 = vadd.f32 %v1486, %v1677
        %1679 = vmatmul.bf16.gmra.mxu0 %v828
        %v1680 = vpop.f32.mrf.mxu0
        %v1681 = vadd.f32 %v1489, %v1680
        %v1682 = vpop.f32.mrf.mxu0
        %v1683 = vadd.f32 %v1491, %v1682
        %1684 = vmatmul.bf16.gmra.mxu0 %v829
        %v1685 = vpop.f32.mrf.mxu0
        %v1686 = vadd.f32 %v1494, %v1685
        %v1687 = vpop.f32.mrf.mxu0
        %v1688 = vadd.f32 %v1496, %v1687
        %1689 = vmatmul.bf16.gmra.mxu0 %v830
        %v1690 = vpop.f32.mrf.mxu0
        %v1691 = vadd.f32 %v1499, %v1690
        %v1692 = vpop.f32.mrf.mxu0
        %v1693 = vadd.f32 %v1501, %v1692
        %1694 = vmatmul.bf16.gmra.mxu0 %v831
        %v1695 = vpop.f32.mrf.mxu0
        %v1696 = vadd.f32 %v1504, %v1695
        %v1697 = vpop.f32.mrf.mxu0
        %v1698 = vadd.f32 %v1506, %v1697
        %1699 = vmatmul.bf16.gmra.mxu0 %v832
        %v1700 = vpop.f32.mrf.mxu0
        %v1701 = vadd.f32 %v1509, %v1700
        %v1702 = vpop.f32.mrf.mxu0
        %v1703 = vadd.f32 %v1511, %v1702
        %1704 = vmatmul.bf16.gmra.mxu0 %v833
        %v1705 = vpop.f32.mrf.mxu0
        %v1706 = vadd.f32 %v1514, %v1705
        %v1707 = vpop.f32.mrf.mxu0
        %v1708 = vadd.f32 %v1516, %v1707
        %1709 = vmatmul.bf16.gmra.mxu0 %v834
        %v1710 = vpop.f32.mrf.mxu0
        %v1711 = vadd.f32 %v1519, %v1710
        %v1712 = vpop.f32.mrf.mxu0
        %v1713 = vadd.f32 %v1521, %v1712
        %1714 = vmatmul.bf16.gmra.mxu0 %v835
        %v1715 = vpop.f32.mrf.mxu0
        %v1716 = vadd.f32 %v1524, %v1715
        %v1717 = vpop.f32.mrf.mxu0
        %v1718 = vadd.f32 %v1526, %v1717
        %1719 = vmatmul.bf16.gmra.mxu0 %v836
        %v1720 = vpop.f32.mrf.mxu0
        %v1721 = vadd.f32 %v1529, %v1720
        %v1722 = vpop.f32.mrf.mxu0
        %v1723 = vadd.f32 %v1531, %v1722
        %1724 = vmatmul.bf16.gmra.mxu0 %v837
        %v1725 = vpop.f32.mrf.mxu0
        %v1726 = vadd.f32 %v1534, %v1725
        %v1727 = vpop.f32.mrf.mxu0
        %v1728 = vadd.f32 %v1536, %v1727
        %1729 = vmatmul.bf16.gmra.mxu0 %v838
        %v1730 = vpop.f32.mrf.mxu0
        %v1731 = vadd.f32 %v1539, %v1730
        %v1732 = vpop.f32.mrf.mxu0
        %v1733 = vadd.f32 %v1541, %v1732
        %1734 = vmatmul.bf16.gmra.mxu0 %v839
        %v1735 = vpop.f32.mrf.mxu0
        %v1736 = vadd.f32 %v1544, %v1735
        %v1737 = vpop.f32.mrf.mxu0
        %v1738 = vadd.f32 %v1546, %v1737
        %1739 = vmatmul.bf16.gmra.mxu0 %v840
        %v1740 = vpop.f32.mrf.mxu0
        %v1741 = vadd.f32 %v1549, %v1740
        %v1742 = vpop.f32.mrf.mxu0
        %v1743 = vadd.f32 %v1551, %v1742
        %1744 = vmatmul.bf16.gmra.mxu0 %v841
        %v1745 = vpop.f32.mrf.mxu0
        %v1746 = vadd.f32 %v1554, %v1745
        %v1747 = vpop.f32.mrf.mxu0
        %v1748 = vadd.f32 %v1556, %v1747
        %1749 = vmatmul.bf16.gmra.mxu0 %v842
        %v1750 = vpop.f32.mrf.mxu0
        %v1751 = vadd.f32 %v1559, %v1750
        %v1752 = vpop.f32.mrf.mxu0
        %v1753 = vadd.f32 %v1561, %v1752
        %1754 = vdwg.mxu0
        %s1755 = scalar_lea.vmem [#allocation4], 448
        %v1756 = vld [vmem:[%s1755] sm:$0xf]
        %v1757 = vld [vmem:[%s1755 + $0x4] sm:$0xf]
        %v1758 = vld [vmem:[%s1755 + $0x8] sm:$0xf]
        %v1759 = vld [vmem:[%s1755 + $0xc] sm:$0xf]
        %v1760 = vld [vmem:[%s1755 + $0x10] sm:$0xf]
        %v1761 = vld [vmem:[%s1755 + $0x14] sm:$0xf]
        %v1762 = vld [vmem:[%s1755 + $0x18] sm:$0xf]
        %v1763 = vld [vmem:[%s1755 + $0x1c] sm:$0xf]
        %v1764 = vld [vmem:[%s1755 + $0x20] sm:$0xf]
        %v1765 = vld [vmem:[%s1755 + $0x24] sm:$0xf]
        %v1766 = vld [vmem:[%s1755 + $0x28] sm:$0xf]
        %v1767 = vld [vmem:[%s1755 + $0x2c] sm:$0xf]
        %v1768 = vld [vmem:[%s1755 + $0x30] sm:$0xf]
        %v1769 = vld [vmem:[%s1755 + $0x34] sm:$0xf]
        %v1770 = vld [vmem:[%s1755 + $0x38] sm:$0xf]
        %v1771 = vld [vmem:[%s1755 + $0x3c] sm:$0xf]
        %v1788 = vunpack.c.l.b16 %v1756
        %v1789 = vunpack.c.l.b16 %v1757
        %v1790 = vunpack.c.l.b16 %v1758
        %v1791 = vunpack.c.l.b16 %v1759
        %v1792 = vunpack.c.l.b16 %v1760
        %v1793 = vunpack.c.l.b16 %v1761
        %v1794 = vunpack.c.l.b16 %v1762
        %v1795 = vunpack.c.l.b16 %v1763
        %v1796 = vunpack.c.l.b16 %v1764
        %v1797 = vunpack.c.l.b16 %v1765
        %v1798 = vunpack.c.l.b16 %v1766
        %v1799 = vunpack.c.l.b16 %v1767
        %v1800 = vunpack.c.l.b16 %v1768
        %v1801 = vunpack.c.l.b16 %v1769
        %v1802 = vunpack.c.l.b16 %v1770
        %v1803 = vunpack.c.l.b16 %v1771
        %v1804 = vpack.c.b16 %v1789, %v1788
        %v1805 = vpack.c.b16 %v1791, %v1790
        %v1806 = vpack.c.b16 %v1793, %v1792
        %v1807 = vpack.c.b16 %v1795, %v1794
        %v1808 = vpack.c.b16 %v1797, %v1796
        %v1809 = vpack.c.b16 %v1799, %v1798
        %v1810 = vpack.c.b16 %v1801, %v1800
        %v1811 = vpack.c.b16 %v1803, %v1802
        %1820 = vmatpush.bf16.msra.mxu0 %v1811
        %1821 = vmatpush.bf16.msra.mxu0 %v1810
        %1822 = vmatpush.bf16.msra.mxu0 %v1809
        %1823 = vmatpush.bf16.msra.mxu0 %v1808
        %1824 = vmatpush.bf16.msra.mxu0 %v1807
        %1825 = vmatpush.bf16.msra.mxu0 %v1806
        %1826 = vmatpush.bf16.msra.mxu0 %v1805
        %1827 = vmatpush.bf16.msra.mxu0 %v1804
        %1828 = vmatmul.bf16.gmra.mxu0 %v819
        %v1829 = vpop.f32.mrf.mxu0
        %v1830 = vadd.f32 0.0, %v1829
        %v1831 = vpop.f32.mrf.mxu0
        %v1832 = vadd.f32 0.0, %v1831
        %1833 = vmatmul.bf16.gmra.mxu0 %v820
        %v1834 = vpop.f32.mrf.mxu0
        %v1835 = vadd.f32 0.0, %v1834
        %v1836 = vpop.f32.mrf.mxu0
        %v1837 = vadd.f32 0.0, %v1836
        %1838 = vmatmul.bf16.gmra.mxu0 %v821
        %v1839 = vpop.f32.mrf.mxu0
        %v1840 = vadd.f32 0.0, %v1839
        %v1841 = vpop.f32.mrf.mxu0
        %v1842 = vadd.f32 0.0, %v1841
        %1843 = vmatmul.bf16.gmra.mxu0 %v822
        %v1844 = vpop.f32.mrf.mxu0
        %v1845 = vadd.f32 0.0, %v1844
        %v1846 = vpop.f32.mrf.mxu0
        %v1847 = vadd.f32 0.0, %v1846
        %1848 = vmatmul.bf16.gmra.mxu0 %v823
        %v1849 = vpop.f32.mrf.mxu0
        %v1850 = vadd.f32 0.0, %v1849
        %v1851 = vpop.f32.mrf.mxu0
        %v1852 = vadd.f32 0.0, %v1851
        %1853 = vmatmul.bf16.gmra.mxu0 %v824
        %v1854 = vpop.f32.mrf.mxu0
        %v1855 = vadd.f32 0.0, %v1854
        %v1856 = vpop.f32.mrf.mxu0
        %v1857 = vadd.f32 0.0, %v1856
        %1858 = vmatmul.bf16.gmra.mxu0 %v825
        %v1859 = vpop.f32.mrf.mxu0
        %v1860 = vadd.f32 0.0, %v1859
        %v1861 = vpop.f32.mrf.mxu0
        %v1862 = vadd.f32 0.0, %v1861
        %1863 = vmatmul.bf16.gmra.mxu0 %v826
        %v1864 = vpop.f32.mrf.mxu0
        %v1865 = vadd.f32 0.0, %v1864
        %v1866 = vpop.f32.mrf.mxu0
        %v1867 = vadd.f32 0.0, %v1866
        %1868 = vmatmul.bf16.gmra.mxu0 %v827
        %v1869 = vpop.f32.mrf.mxu0
        %v1870 = vadd.f32 0.0, %v1869
        %v1871 = vpop.f32.mrf.mxu0
        %v1872 = vadd.f32 0.0, %v1871
        %1873 = vmatmul.bf16.gmra.mxu0 %v828
        %v1874 = vpop.f32.mrf.mxu0
        %v1875 = vadd.f32 0.0, %v1874
        %v1876 = vpop.f32.mrf.mxu0
        %v1877 = vadd.f32 0.0, %v1876
        %1878 = vmatmul.bf16.gmra.mxu0 %v829
        %v1879 = vpop.f32.mrf.mxu0
        %v1880 = vadd.f32 0.0, %v1879
        %v1881 = vpop.f32.mrf.mxu0
        %v1882 = vadd.f32 0.0, %v1881
        %1883 = vmatmul.bf16.gmra.mxu0 %v830
        %v1884 = vpop.f32.mrf.mxu0
        %v1885 = vadd.f32 0.0, %v1884
        %v1886 = vpop.f32.mrf.mxu0
        %v1887 = vadd.f32 0.0, %v1886
        %1888 = vmatmul.bf16.gmra.mxu0 %v831
        %v1889 = vpop.f32.mrf.mxu0
        %v1890 = vadd.f32 0.0, %v1889
        %v1891 = vpop.f32.mrf.mxu0
        %v1892 = vadd.f32 0.0, %v1891
        %1893 = vmatmul.bf16.gmra.mxu0 %v832
        %v1894 = vpop.f32.mrf.mxu0
        %v1895 = vadd.f32 0.0, %v1894
        %v1896 = vpop.f32.mrf.mxu0
        %v1897 = vadd.f32 0.0, %v1896
        %1898 = vmatmul.bf16.gmra.mxu0 %v833
        %v1899 = vpop.f32.mrf.mxu0
        %v1900 = vadd.f32 0.0, %v1899
        %v1901 = vpop.f32.mrf.mxu0
        %v1902 = vadd.f32 0.0, %v1901
        %1903 = vmatmul.bf16.gmra.mxu0 %v834
        %v1904 = vpop.f32.mrf.mxu0
        %v1905 = vadd.f32 0.0, %v1904
        %v1906 = vpop.f32.mrf.mxu0
        %v1907 = vadd.f32 0.0, %v1906
        %1908 = vmatmul.bf16.gmra.mxu0 %v835
        %v1909 = vpop.f32.mrf.mxu0
        %v1910 = vadd.f32 0.0, %v1909
        %v1911 = vpop.f32.mrf.mxu0
        %v1912 = vadd.f32 0.0, %v1911
        %1913 = vmatmul.bf16.gmra.mxu0 %v836
        %v1914 = vpop.f32.mrf.mxu0
        %v1915 = vadd.f32 0.0, %v1914
        %v1916 = vpop.f32.mrf.mxu0
        %v1917 = vadd.f32 0.0, %v1916
        %1918 = vmatmul.bf16.gmra.mxu0 %v837
        %v1919 = vpop.f32.mrf.mxu0
        %v1920 = vadd.f32 0.0, %v1919
        %v1921 = vpop.f32.mrf.mxu0
        %v1922 = vadd.f32 0.0, %v1921
        %1923 = vmatmul.bf16.gmra.mxu0 %v838
        %v1924 = vpop.f32.mrf.mxu0
        %v1925 = vadd.f32 0.0, %v1924
        %v1926 = vpop.f32.mrf.mxu0
        %v1927 = vadd.f32 0.0, %v1926
        %1928 = vmatmul.bf16.gmra.mxu0 %v839
        %v1929 = vpop.f32.mrf.mxu0
        %v1930 = vadd.f32 0.0, %v1929
        %v1931 = vpop.f32.mrf.mxu0
        %v1932 = vadd.f32 0.0, %v1931
        %1933 = vmatmul.bf16.gmra.mxu0 %v840
        %v1934 = vpop.f32.mrf.mxu0
        %v1935 = vadd.f32 0.0, %v1934
        %v1936 = vpop.f32.mrf.mxu0
        %v1937 = vadd.f32 0.0, %v1936
        %1938 = vmatmul.bf16.gmra.mxu0 %v841
        %v1939 = vpop.f32.mrf.mxu0
        %v1940 = vadd.f32 0.0, %v1939
        %v1941 = vpop.f32.mrf.mxu0
        %v1942 = vadd.f32 0.0, %v1941
        %1943 = vmatmul.bf16.gmra.mxu0 %v842
        %v1944 = vpop.f32.mrf.mxu0
        %v1945 = vadd.f32 0.0, %v1944
        %v1946 = vpop.f32.mrf.mxu0
        %v1947 = vadd.f32 0.0, %v1946
        %1948 = vmatmul.bf16.gmra.mxu0 %v1085
        %v1949 = vpop.f32.mrf.mxu0
        %v1950 = vadd.f32 0.0, %v1949
        %v1951 = vpop.f32.mrf.mxu0
        %v1952 = vadd.f32 0.0, %v1951
        %1953 = vmatmul.bf16.gmra.mxu0 %v1086
        %v1954 = vpop.f32.mrf.mxu0
        %v1955 = vadd.f32 0.0, %v1954
        %v1956 = vpop.f32.mrf.mxu0
        %v1957 = vadd.f32 0.0, %v1956
        %1958 = vmatmul.bf16.gmra.mxu0 %v1087
        %v1959 = vpop.f32.mrf.mxu0
        %v1960 = vadd.f32 0.0, %v1959
        %v1961 = vpop.f32.mrf.mxu0
        %v1962 = vadd.f32 0.0, %v1961
        %1963 = vdwg.mxu0
        %v1964 = vadd.f32 %v1621, %v1830
        %v1965 = vadd.f32 %v1623, %v1832
        %v1966 = vadd.f32 %v1626, %v1835
        %v1967 = vadd.f32 %v1628, %v1837
        %v1968 = vadd.f32 %v1631, %v1840
        %v1969 = vadd.f32 %v1633, %v1842
        %v1970 = vadd.f32 %v1636, %v1845
        %v1971 = vadd.f32 %v1638, %v1847
        %v1972 = vadd.f32 %v1641, %v1850
        %v1973 = vadd.f32 %v1643, %v1852
        %v1974 = vadd.f32 %v1646, %v1855
        %v1975 = vadd.f32 %v1648, %v1857
        %v1976 = vadd.f32 %v1651, %v1860
        %v1977 = vadd.f32 %v1653, %v1862
        %v1978 = vadd.f32 %v1656, %v1865
        %v1979 = vadd.f32 %v1658, %v1867
        %v1980 = vadd.f32 %v1661, %v1870
        %v1981 = vadd.f32 %v1663, %v1872
        %v1982 = vadd.f32 %v1666, %v1875
        %v1983 = vadd.f32 %v1668, %v1877
        %v1984 = vadd.f32 %v1671, %v1880
        %v1985 = vadd.f32 %v1673, %v1882
        %v1986 = vadd.f32 %v1676, %v1885
        %v1987 = vadd.f32 %v1678, %v1887
        %v1988 = vadd.f32 %v1681, %v1890
        %v1989 = vadd.f32 %v1683, %v1892
        %v1990 = vadd.f32 %v1686, %v1895
        %v1991 = vadd.f32 %v1688, %v1897
        %v1992 = vadd.f32 %v1691, %v1900
        %v1993 = vadd.f32 %v1693, %v1902
        %v1994 = vadd.f32 %v1696, %v1905
        %v1995 = vadd.f32 %v1698, %v1907
        %v1996 = vadd.f32 %v1701, %v1910
        %v1997 = vadd.f32 %v1703, %v1912
        %v1998 = vadd.f32 %v1706, %v1915
        %v1999 = vadd.f32 %v1708, %v1917
        %v2000 = vadd.f32 %v1711, %v1920
        %v2001 = vadd.f32 %v1713, %v1922
        %v2002 = vadd.f32 %v1716, %v1925
        %v2003 = vadd.f32 %v1718, %v1927
        %v2004 = vadd.f32 %v1721, %v1930
        %v2005 = vadd.f32 %v1723, %v1932
        %v2006 = vadd.f32 %v1726, %v1935
        %v2007 = vadd.f32 %v1728, %v1937
        %v2008 = vadd.f32 %v1731, %v1940
        %v2009 = vadd.f32 %v1733, %v1942
        %v2010 = vadd.f32 %v1736, %v1945
        %v2011 = vadd.f32 %v1738, %v1947
        %v2012 = vadd.f32 %v1741, %v1950
        %v2013 = vadd.f32 %v1743, %v1952
        %v2014 = vadd.f32 %v1746, %v1955
        %v2015 = vadd.f32 %v1748, %v1957
        %v2016 = vadd.f32 %v1751, %v1960
        %v2017 = vadd.f32 %v1753, %v1962
        %s2018 = scalar_lea.vmem [#allocation4], 128
        %v2019 = vld [vmem:[%s2018] sm:$0xf]
        %v2020 = vld [vmem:[%s2018 + $0x4] sm:$0xf]
        %v2021 = vld [vmem:[%s2018 + $0x8] sm:$0xf]
        %v2022 = vld [vmem:[%s2018 + $0xc] sm:$0xf]
        %v2023 = vld [vmem:[%s2018 + $0x10] sm:$0xf]
        %v2024 = vld [vmem:[%s2018 + $0x14] sm:$0xf]
        %v2025 = vld [vmem:[%s2018 + $0x18] sm:$0xf]
        %v2026 = vld [vmem:[%s2018 + $0x1c] sm:$0xf]
        %v2027 = vld [vmem:[%s2018 + $0x20] sm:$0xf]
        %v2028 = vld [vmem:[%s2018 + $0x24] sm:$0xf]
        %v2029 = vld [vmem:[%s2018 + $0x28] sm:$0xf]
        %v2030 = vld [vmem:[%s2018 + $0x2c] sm:$0xf]
        %v2031 = vld [vmem:[%s2018 + $0x30] sm:$0xf]
        %v2032 = vld [vmem:[%s2018 + $0x34] sm:$0xf]
        %v2033 = vld [vmem:[%s2018 + $0x38] sm:$0xf]
        %v2034 = vld [vmem:[%s2018 + $0x3c] sm:$0xf]
        %s2035 = scalar_lea.vmem [#allocation4], 320
        %v2036 = vld [vmem:[%s2035] sm:$0xf]
        %v2037 = vld [vmem:[%s2035 + $0x4] sm:$0xf]
        %v2038 = vld [vmem:[%s2035 + $0x8] sm:$0xf]
        %v2039 = vld [vmem:[%s2035 + $0xc] sm:$0xf]
        %v2040 = vld [vmem:[%s2035 + $0x10] sm:$0xf]
        %v2041 = vld [vmem:[%s2035 + $0x14] sm:$0xf]
        %v2042 = vld [vmem:[%s2035 + $0x18] sm:$0xf]
        %v2043 = vld [vmem:[%s2035 + $0x1c] sm:$0xf]
        %v2044 = vld [vmem:[%s2035 + $0x20] sm:$0xf]
        %v2045 = vld [vmem:[%s2035 + $0x24] sm:$0xf]
        %v2046 = vld [vmem:[%s2035 + $0x28] sm:$0xf]
        %v2047 = vld [vmem:[%s2035 + $0x2c] sm:$0xf]
        %v2048 = vld [vmem:[%s2035 + $0x30] sm:$0xf]
        %v2049 = vld [vmem:[%s2035 + $0x34] sm:$0xf]
        %v2050 = vld [vmem:[%s2035 + $0x38] sm:$0xf]
        %v2051 = vld [vmem:[%s2035 + $0x3c] sm:$0xf]
        %v2068 = vunpack.c.l.b16 %v2036
        %v2069 = vunpack.c.l.b16 %v2037
        %v2070 = vunpack.c.l.b16 %v2038
        %v2071 = vunpack.c.l.b16 %v2039
        %v2072 = vunpack.c.l.b16 %v2040
        %v2073 = vunpack.c.l.b16 %v2041
        %v2074 = vunpack.c.l.b16 %v2042
        %v2075 = vunpack.c.l.b16 %v2043
        %v2076 = vunpack.c.l.b16 %v2044
        %v2077 = vunpack.c.l.b16 %v2045
        %v2078 = vunpack.c.l.b16 %v2046
        %v2079 = vunpack.c.l.b16 %v2047
        %v2080 = vunpack.c.l.b16 %v2048
        %v2081 = vunpack.c.l.b16 %v2049
        %v2082 = vunpack.c.l.b16 %v2050
        %v2083 = vunpack.c.l.b16 %v2051
        %v2084 = vpack.c.b16 %v2069, %v2068
        %v2085 = vpack.c.b16 %v2071, %v2070
        %v2086 = vpack.c.b16 %v2073, %v2072
        %v2087 = vpack.c.b16 %v2075, %v2074
        %v2088 = vpack.c.b16 %v2077, %v2076
        %v2089 = vpack.c.b16 %v2079, %v2078
        %v2090 = vpack.c.b16 %v2081, %v2080
        %v2091 = vpack.c.b16 %v2083, %v2082
        %2100 = vmatpush.bf16.msra.mxu0 %v2091
        %2101 = vmatpush.bf16.msra.mxu0 %v2090
        %2102 = vmatpush.bf16.msra.mxu0 %v2089
        %2103 = vmatpush.bf16.msra.mxu0 %v2088
        %2104 = vmatpush.bf16.msra.mxu0 %v2087
        %2105 = vmatpush.bf16.msra.mxu0 %v2086
        %2106 = vmatpush.bf16.msra.mxu0 %v2085
        %2107 = vmatpush.bf16.msra.mxu0 %v2084
        %2108 = vmatmul.bf16.gmra.mxu0 %v564
        %v2109 = vpop.f32.mrf.mxu0
        %v2110 = vadd.f32 0.0, %v2109
        %v2111 = vpop.f32.mrf.mxu0
        %v2112 = vadd.f32 0.0, %v2111
        %2113 = vmatmul.bf16.gmra.mxu0 %v565
        %v2114 = vpop.f32.mrf.mxu0
        %v2115 = vadd.f32 0.0, %v2114
        %v2116 = vpop.f32.mrf.mxu0
        %v2117 = vadd.f32 0.0, %v2116
        %2118 = vmatmul.bf16.gmra.mxu0 %v566
        %v2119 = vpop.f32.mrf.mxu0
        %v2120 = vadd.f32 0.0, %v2119
        %v2121 = vpop.f32.mrf.mxu0
        %v2122 = vadd.f32 0.0, %v2121
        %2123 = vmatmul.bf16.gmra.mxu0 %v567
        %v2124 = vpop.f32.mrf.mxu0
        %v2125 = vadd.f32 0.0, %v2124
        %v2126 = vpop.f32.mrf.mxu0
        %v2127 = vadd.f32 0.0, %v2126
        %2128 = vmatmul.bf16.gmra.mxu0 %v568
        %v2129 = vpop.f32.mrf.mxu0
        %v2130 = vadd.f32 0.0, %v2129
        %v2131 = vpop.f32.mrf.mxu0
        %v2132 = vadd.f32 0.0, %v2131
        %2133 = vmatmul.bf16.gmra.mxu0 %v569
        %v2134 = vpop.f32.mrf.mxu0
        %v2135 = vadd.f32 0.0, %v2134
        %v2136 = vpop.f32.mrf.mxu0
        %v2137 = vadd.f32 0.0, %v2136
        %2138 = vmatmul.bf16.gmra.mxu0 %v570
        %v2139 = vpop.f32.mrf.mxu0
        %v2140 = vadd.f32 0.0, %v2139
        %v2141 = vpop.f32.mrf.mxu0
        %v2142 = vadd.f32 0.0, %v2141
        %2143 = vmatmul.bf16.gmra.mxu0 %v571
        %v2144 = vpop.f32.mrf.mxu0
        %v2145 = vadd.f32 0.0, %v2144
        %v2146 = vpop.f32.mrf.mxu0
        %v2147 = vadd.f32 0.0, %v2146
        %2148 = vmatmul.bf16.gmra.mxu0 %v572
        %v2149 = vpop.f32.mrf.mxu0
        %v2150 = vadd.f32 0.0, %v2149
        %v2151 = vpop.f32.mrf.mxu0
        %v2152 = vadd.f32 0.0, %v2151
        %2153 = vmatmul.bf16.gmra.mxu0 %v573
        %v2154 = vpop.f32.mrf.mxu0
        %v2155 = vadd.f32 0.0, %v2154
        %v2156 = vpop.f32.mrf.mxu0
        %v2157 = vadd.f32 0.0, %v2156
        %2158 = vmatmul.bf16.gmra.mxu0 %v574
        %v2159 = vpop.f32.mrf.mxu0
        %v2160 = vadd.f32 0.0, %v2159
        %v2161 = vpop.f32.mrf.mxu0
        %v2162 = vadd.f32 0.0, %v2161
        %2163 = vmatmul.bf16.gmra.mxu0 %v575
        %v2164 = vpop.f32.mrf.mxu0
        %v2165 = vadd.f32 0.0, %v2164
        %v2166 = vpop.f32.mrf.mxu0
        %v2167 = vadd.f32 0.0, %v2166
        %2168 = vmatmul.bf16.gmra.mxu0 %v576
        %v2169 = vpop.f32.mrf.mxu0
        %v2170 = vadd.f32 0.0, %v2169
        %v2171 = vpop.f32.mrf.mxu0
        %v2172 = vadd.f32 0.0, %v2171
        %2173 = vmatmul.bf16.gmra.mxu0 %v577
        %v2174 = vpop.f32.mrf.mxu0
        %v2175 = vadd.f32 0.0, %v2174
        %v2176 = vpop.f32.mrf.mxu0
        %v2177 = vadd.f32 0.0, %v2176
        %2178 = vmatmul.bf16.gmra.mxu0 %v578
        %v2179 = vpop.f32.mrf.mxu0
        %v2180 = vadd.f32 0.0, %v2179
        %v2181 = vpop.f32.mrf.mxu0
        %v2182 = vadd.f32 0.0, %v2181
        %2183 = vmatmul.bf16.gmra.mxu0 %v579
        %v2184 = vpop.f32.mrf.mxu0
        %v2185 = vadd.f32 0.0, %v2184
        %v2186 = vpop.f32.mrf.mxu0
        %v2187 = vadd.f32 0.0, %v2186
        %2188 = vmatmul.bf16.gmra.mxu0 %v580
        %v2189 = vpop.f32.mrf.mxu0
        %v2190 = vadd.f32 0.0, %v2189
        %v2191 = vpop.f32.mrf.mxu0
        %v2192 = vadd.f32 0.0, %v2191
        %2193 = vmatmul.bf16.gmra.mxu0 %v581
        %v2194 = vpop.f32.mrf.mxu0
        %v2195 = vadd.f32 0.0, %v2194
        %v2196 = vpop.f32.mrf.mxu0
        %v2197 = vadd.f32 0.0, %v2196
        %2198 = vmatmul.bf16.gmra.mxu0 %v582
        %v2199 = vpop.f32.mrf.mxu0
        %v2200 = vadd.f32 0.0, %v2199
        %v2201 = vpop.f32.mrf.mxu0
        %v2202 = vadd.f32 0.0, %v2201
        %2203 = vmatmul.bf16.gmra.mxu0 %v583
        %v2204 = vpop.f32.mrf.mxu0
        %v2205 = vadd.f32 0.0, %v2204
        %v2206 = vpop.f32.mrf.mxu0
        %v2207 = vadd.f32 0.0, %v2206
        %2208 = vmatmul.bf16.gmra.mxu0 %v584
        %v2209 = vpop.f32.mrf.mxu0
        %v2210 = vadd.f32 0.0, %v2209
        %v2211 = vpop.f32.mrf.mxu0
        %v2212 = vadd.f32 0.0, %v2211
        %2213 = vmatmul.bf16.gmra.mxu0 %v585
        %v2214 = vpop.f32.mrf.mxu0
        %v2215 = vadd.f32 0.0, %v2214
        %v2216 = vpop.f32.mrf.mxu0
        %v2217 = vadd.f32 0.0, %v2216
        %2218 = vmatmul.bf16.gmra.mxu0 %v586
        %v2219 = vpop.f32.mrf.mxu0
        %v2220 = vadd.f32 0.0, %v2219
        %v2221 = vpop.f32.mrf.mxu0
        %v2222 = vadd.f32 0.0, %v2221
        %2223 = vmatmul.bf16.gmra.mxu0 %v587
        %v2224 = vpop.f32.mrf.mxu0
        %v2225 = vadd.f32 0.0, %v2224
        %v2226 = vpop.f32.mrf.mxu0
        %v2227 = vadd.f32 0.0, %v2226
        %2228 = vmatmul.bf16.gmra.mxu0 %v588
        %v2229 = vpop.f32.mrf.mxu0
        %v2230 = vadd.f32 0.0, %v2229
        %v2231 = vpop.f32.mrf.mxu0
        %v2232 = vadd.f32 0.0, %v2231
        %2233 = vmatmul.bf16.gmra.mxu0 %v589
        %v2234 = vpop.f32.mrf.mxu0
        %v2235 = vadd.f32 0.0, %v2234
        %v2236 = vpop.f32.mrf.mxu0
        %v2237 = vadd.f32 0.0, %v2236
        %2238 = vmatmul.bf16.gmra.mxu0 %v590
        %v2239 = vpop.f32.mrf.mxu0
        %v2240 = vadd.f32 0.0, %v2239
        %v2241 = vpop.f32.mrf.mxu0
        %v2242 = vadd.f32 0.0, %v2241
        %2243 = vdwg.mxu0
        %v2260 = vunpack.c.l.b16 %v2019
        %v2261 = vunpack.c.l.b16 %v2020
        %v2262 = vunpack.c.l.b16 %v2021
        %v2263 = vunpack.c.l.b16 %v2022
        %v2264 = vunpack.c.l.b16 %v2023
        %v2265 = vunpack.c.l.b16 %v2024
        %v2266 = vunpack.c.l.b16 %v2025
        %v2267 = vunpack.c.l.b16 %v2026
        %v2268 = vunpack.c.l.b16 %v2027
        %v2269 = vunpack.c.l.b16 %v2028
        %v2270 = vunpack.c.l.b16 %v2029
        %v2271 = vunpack.c.l.b16 %v2030
        %v2272 = vunpack.c.l.b16 %v2031
        %v2273 = vunpack.c.l.b16 %v2032
        %v2274 = vunpack.c.l.b16 %v2033
        %v2275 = vunpack.c.l.b16 %v2034
        %v2276 = vpack.c.b16 %v2261, %v2260
        %v2277 = vpack.c.b16 %v2263, %v2262
        %v2278 = vpack.c.b16 %v2265, %v2264
        %v2279 = vpack.c.b16 %v2267, %v2266
        %v2280 = vpack.c.b16 %v2269, %v2268
        %v2281 = vpack.c.b16 %v2271, %v2270
        %v2282 = vpack.c.b16 %v2273, %v2272
        %v2283 = vpack.c.b16 %v2275, %v2274
        %2292 = vmatpush.bf16.msra.mxu0 %v2283
        %2293 = vmatpush.bf16.msra.mxu0 %v2282
        %2294 = vmatpush.bf16.msra.mxu0 %v2281
        %2295 = vmatpush.bf16.msra.mxu0 %v2280
        %2296 = vmatpush.bf16.msra.mxu0 %v2279
        %2297 = vmatpush.bf16.msra.mxu0 %v2278
        %2298 = vmatpush.bf16.msra.mxu0 %v2277
        %2299 = vmatpush.bf16.msra.mxu0 %v2276
        %2300 = vmatmul.bf16.gmra.mxu0 %v816
        %v2301 = vpop.f32.mrf.mxu0
        %v2302 = vadd.f32 %v2110, %v2301
        %v2303 = vpop.f32.mrf.mxu0
        %v2304 = vadd.f32 %v2112, %v2303
        %2305 = vmatmul.bf16.gmra.mxu0 %v817
        %v2306 = vpop.f32.mrf.mxu0
        %v2307 = vadd.f32 %v2115, %v2306
        %v2308 = vpop.f32.mrf.mxu0
        %v2309 = vadd.f32 %v2117, %v2308
        %2310 = vmatmul.bf16.gmra.mxu0 %v818
        %v2311 = vpop.f32.mrf.mxu0
        %v2312 = vadd.f32 %v2120, %v2311
        %v2313 = vpop.f32.mrf.mxu0
        %v2314 = vadd.f32 %v2122, %v2313
        %2315 = vmatmul.bf16.gmra.mxu0 %v819
        %v2316 = vpop.f32.mrf.mxu0
        %v2317 = vadd.f32 %v2125, %v2316
        %v2318 = vpop.f32.mrf.mxu0
        %v2319 = vadd.f32 %v2127, %v2318
        %2320 = vmatmul.bf16.gmra.mxu0 %v820
        %v2321 = vpop.f32.mrf.mxu0
        %v2322 = vadd.f32 %v2130, %v2321
        %v2323 = vpop.f32.mrf.mxu0
        %v2324 = vadd.f32 %v2132, %v2323
        %2325 = vmatmul.bf16.gmra.mxu0 %v821
        %v2326 = vpop.f32.mrf.mxu0
        %v2327 = vadd.f32 %v2135, %v2326
        %v2328 = vpop.f32.mrf.mxu0
        %v2329 = vadd.f32 %v2137, %v2328
        %2330 = vmatmul.bf16.gmra.mxu0 %v822
        %v2331 = vpop.f32.mrf.mxu0
        %v2332 = vadd.f32 %v2140, %v2331
        %v2333 = vpop.f32.mrf.mxu0
        %v2334 = vadd.f32 %v2142, %v2333
        %2335 = vmatmul.bf16.gmra.mxu0 %v823
        %v2336 = vpop.f32.mrf.mxu0
        %v2337 = vadd.f32 %v2145, %v2336
        %v2338 = vpop.f32.mrf.mxu0
        %v2339 = vadd.f32 %v2147, %v2338
        %2340 = vmatmul.bf16.gmra.mxu0 %v824
        %v2341 = vpop.f32.mrf.mxu0
        %v2342 = vadd.f32 %v2150, %v2341
        %v2343 = vpop.f32.mrf.mxu0
        %v2344 = vadd.f32 %v2152, %v2343
        %2345 = vmatmul.bf16.gmra.mxu0 %v825
        %v2346 = vpop.f32.mrf.mxu0
        %v2347 = vadd.f32 %v2155, %v2346
        %v2348 = vpop.f32.mrf.mxu0
        %v2349 = vadd.f32 %v2157, %v2348
        %2350 = vmatmul.bf16.gmra.mxu0 %v826
        %v2351 = vpop.f32.mrf.mxu0
        %v2352 = vadd.f32 %v2160, %v2351
        %v2353 = vpop.f32.mrf.mxu0
        %v2354 = vadd.f32 %v2162, %v2353
        %2355 = vmatmul.bf16.gmra.mxu0 %v827
        %v2356 = vpop.f32.mrf.mxu0
        %v2357 = vadd.f32 %v2165, %v2356
        %v2358 = vpop.f32.mrf.mxu0
        %v2359 = vadd.f32 %v2167, %v2358
        %2360 = vmatmul.bf16.gmra.mxu0 %v828
        %v2361 = vpop.f32.mrf.mxu0
        %v2362 = vadd.f32 %v2170, %v2361
        %v2363 = vpop.f32.mrf.mxu0
        %v2364 = vadd.f32 %v2172, %v2363
        %2365 = vmatmul.bf16.gmra.mxu0 %v829
        %v2366 = vpop.f32.mrf.mxu0
        %v2367 = vadd.f32 %v2175, %v2366
        %v2368 = vpop.f32.mrf.mxu0
        %v2369 = vadd.f32 %v2177, %v2368
        %2370 = vmatmul.bf16.gmra.mxu0 %v830
        %v2371 = vpop.f32.mrf.mxu0
        %v2372 = vadd.f32 %v2180, %v2371
        %v2373 = vpop.f32.mrf.mxu0
        %v2374 = vadd.f32 %v2182, %v2373
        %2375 = vmatmul.bf16.gmra.mxu0 %v831
        %v2376 = vpop.f32.mrf.mxu0
        %v2377 = vadd.f32 %v2185, %v2376
        %v2378 = vpop.f32.mrf.mxu0
        %v2379 = vadd.f32 %v2187, %v2378
        %2380 = vmatmul.bf16.gmra.mxu0 %v832
        %v2381 = vpop.f32.mrf.mxu0
        %v2382 = vadd.f32 %v2190, %v2381
        %v2383 = vpop.f32.mrf.mxu0
        %v2384 = vadd.f32 %v2192, %v2383
        %2385 = vmatmul.bf16.gmra.mxu0 %v833
        %v2386 = vpop.f32.mrf.mxu0
        %v2387 = vadd.f32 %v2195, %v2386
        %v2388 = vpop.f32.mrf.mxu0
        %v2389 = vadd.f32 %v2197, %v2388
        %2390 = vmatmul.bf16.gmra.mxu0 %v834
        %v2391 = vpop.f32.mrf.mxu0
        %v2392 = vadd.f32 %v2200, %v2391
        %v2393 = vpop.f32.mrf.mxu0
        %v2394 = vadd.f32 %v2202, %v2393
        %2395 = vmatmul.bf16.gmra.mxu0 %v835
        %v2396 = vpop.f32.mrf.mxu0
        %v2397 = vadd.f32 %v2205, %v2396
        %v2398 = vpop.f32.mrf.mxu0
        %v2399 = vadd.f32 %v2207, %v2398
        %2400 = vmatmul.bf16.gmra.mxu0 %v836
        %v2401 = vpop.f32.mrf.mxu0
        %v2402 = vadd.f32 %v2210, %v2401
        %v2403 = vpop.f32.mrf.mxu0
        %v2404 = vadd.f32 %v2212, %v2403
        %2405 = vmatmul.bf16.gmra.mxu0 %v837
        %v2406 = vpop.f32.mrf.mxu0
        %v2407 = vadd.f32 %v2215, %v2406
        %v2408 = vpop.f32.mrf.mxu0
        %v2409 = vadd.f32 %v2217, %v2408
        %2410 = vmatmul.bf16.gmra.mxu0 %v838
        %v2411 = vpop.f32.mrf.mxu0
        %v2412 = vadd.f32 %v2220, %v2411
        %v2413 = vpop.f32.mrf.mxu0
        %v2414 = vadd.f32 %v2222, %v2413
        %2415 = vmatmul.bf16.gmra.mxu0 %v839
        %v2416 = vpop.f32.mrf.mxu0
        %v2417 = vadd.f32 %v2225, %v2416
        %v2418 = vpop.f32.mrf.mxu0
        %v2419 = vadd.f32 %v2227, %v2418
        %2420 = vmatmul.bf16.gmra.mxu0 %v840
        %v2421 = vpop.f32.mrf.mxu0
        %v2422 = vadd.f32 %v2230, %v2421
        %v2423 = vpop.f32.mrf.mxu0
        %v2424 = vadd.f32 %v2232, %v2423
        %2425 = vmatmul.bf16.gmra.mxu0 %v841
        %v2426 = vpop.f32.mrf.mxu0
        %v2427 = vadd.f32 %v2235, %v2426
        %v2428 = vpop.f32.mrf.mxu0
        %v2429 = vadd.f32 %v2237, %v2428
        %2430 = vmatmul.bf16.gmra.mxu0 %v842
        %v2431 = vpop.f32.mrf.mxu0
        %v2432 = vadd.f32 %v2240, %v2431
        %v2433 = vpop.f32.mrf.mxu0
        %v2434 = vadd.f32 %v2242, %v2433
        %2435 = vdwg.mxu0
        %s2436 = scalar_lea.vmem [#allocation4], 512
        %v2437 = vld [vmem:[%s2436] sm:$0xf]
        %v2438 = vld [vmem:[%s2436 + $0x4] sm:$0xf]
        %v2439 = vld [vmem:[%s2436 + $0x8] sm:$0xf]
        %v2440 = vld [vmem:[%s2436 + $0xc] sm:$0xf]
        %v2441 = vld [vmem:[%s2436 + $0x10] sm:$0xf]
        %v2442 = vld [vmem:[%s2436 + $0x14] sm:$0xf]
        %v2443 = vld [vmem:[%s2436 + $0x18] sm:$0xf]
        %v2444 = vld [vmem:[%s2436 + $0x1c] sm:$0xf]
        %v2445 = vld [vmem:[%s2436 + $0x20] sm:$0xf]
        %v2446 = vld [vmem:[%s2436 + $0x24] sm:$0xf]
        %v2447 = vld [vmem:[%s2436 + $0x28] sm:$0xf]
        %v2448 = vld [vmem:[%s2436 + $0x2c] sm:$0xf]
        %v2449 = vld [vmem:[%s2436 + $0x30] sm:$0xf]
        %v2450 = vld [vmem:[%s2436 + $0x34] sm:$0xf]
        %v2451 = vld [vmem:[%s2436 + $0x38] sm:$0xf]
        %v2452 = vld [vmem:[%s2436 + $0x3c] sm:$0xf]
        %v2469 = vunpack.c.l.b16 %v2437
        %v2470 = vunpack.c.l.b16 %v2438
        %v2471 = vunpack.c.l.b16 %v2439
        %v2472 = vunpack.c.l.b16 %v2440
        %v2473 = vunpack.c.l.b16 %v2441
        %v2474 = vunpack.c.l.b16 %v2442
        %v2475 = vunpack.c.l.b16 %v2443
        %v2476 = vunpack.c.l.b16 %v2444
        %v2477 = vunpack.c.l.b16 %v2445
        %v2478 = vunpack.c.l.b16 %v2446
        %v2479 = vunpack.c.l.b16 %v2447
        %v2480 = vunpack.c.l.b16 %v2448
        %v2481 = vunpack.c.l.b16 %v2449
        %v2482 = vunpack.c.l.b16 %v2450
        %v2483 = vunpack.c.l.b16 %v2451
        %v2484 = vunpack.c.l.b16 %v2452
        %v2485 = vpack.c.b16 %v2470, %v2469
        %v2486 = vpack.c.b16 %v2472, %v2471
        %v2487 = vpack.c.b16 %v2474, %v2473
        %v2488 = vpack.c.b16 %v2476, %v2475
        %v2489 = vpack.c.b16 %v2478, %v2477
        %v2490 = vpack.c.b16 %v2480, %v2479
        %v2491 = vpack.c.b16 %v2482, %v2481
        %v2492 = vpack.c.b16 %v2484, %v2483
        %2501 = vmatpush.bf16.msra.mxu0 %v2492
        %2502 = vmatpush.bf16.msra.mxu0 %v2491
        %2503 = vmatpush.bf16.msra.mxu0 %v2490
        %2504 = vmatpush.bf16.msra.mxu0 %v2489
        %2505 = vmatpush.bf16.msra.mxu0 %v2488
        %2506 = vmatpush.bf16.msra.mxu0 %v2487
        %2507 = vmatpush.bf16.msra.mxu0 %v2486
        %2508 = vmatpush.bf16.msra.mxu0 %v2485
        %2509 = vmatmul.bf16.gmra.mxu0 %v819
        %v2510 = vpop.f32.mrf.mxu0
        %v2511 = vadd.f32 0.0, %v2510
        %v2512 = vpop.f32.mrf.mxu0
        %v2513 = vadd.f32 0.0, %v2512
        %2514 = vmatmul.bf16.gmra.mxu0 %v820
        %v2515 = vpop.f32.mrf.mxu0
        %v2516 = vadd.f32 0.0, %v2515
        %v2517 = vpop.f32.mrf.mxu0
        %v2518 = vadd.f32 0.0, %v2517
        %2519 = vmatmul.bf16.gmra.mxu0 %v821
        %v2520 = vpop.f32.mrf.mxu0
        %v2521 = vadd.f32 0.0, %v2520
        %v2522 = vpop.f32.mrf.mxu0
        %v2523 = vadd.f32 0.0, %v2522
        %2524 = vmatmul.bf16.gmra.mxu0 %v822
        %v2525 = vpop.f32.mrf.mxu0
        %v2526 = vadd.f32 0.0, %v2525
        %v2527 = vpop.f32.mrf.mxu0
        %v2528 = vadd.f32 0.0, %v2527
        %2529 = vmatmul.bf16.gmra.mxu0 %v823
        %v2530 = vpop.f32.mrf.mxu0
        %v2531 = vadd.f32 0.0, %v2530
        %v2532 = vpop.f32.mrf.mxu0
        %v2533 = vadd.f32 0.0, %v2532
        %2534 = vmatmul.bf16.gmra.mxu0 %v824
        %v2535 = vpop.f32.mrf.mxu0
        %v2536 = vadd.f32 0.0, %v2535
        %v2537 = vpop.f32.mrf.mxu0
        %v2538 = vadd.f32 0.0, %v2537
        %2539 = vmatmul.bf16.gmra.mxu0 %v825
        %v2540 = vpop.f32.mrf.mxu0
        %v2541 = vadd.f32 0.0, %v2540
        %v2542 = vpop.f32.mrf.mxu0
        %v2543 = vadd.f32 0.0, %v2542
        %2544 = vmatmul.bf16.gmra.mxu0 %v826
        %v2545 = vpop.f32.mrf.mxu0
        %v2546 = vadd.f32 0.0, %v2545
        %v2547 = vpop.f32.mrf.mxu0
        %v2548 = vadd.f32 0.0, %v2547
        %2549 = vmatmul.bf16.gmra.mxu0 %v827
        %v2550 = vpop.f32.mrf.mxu0
        %v2551 = vadd.f32 0.0, %v2550
        %v2552 = vpop.f32.mrf.mxu0
        %v2553 = vadd.f32 0.0, %v2552
        %2554 = vmatmul.bf16.gmra.mxu0 %v828
        %v2555 = vpop.f32.mrf.mxu0
        %v2556 = vadd.f32 0.0, %v2555
        %v2557 = vpop.f32.mrf.mxu0
        %v2558 = vadd.f32 0.0, %v2557
        %2559 = vmatmul.bf16.gmra.mxu0 %v829
        %v2560 = vpop.f32.mrf.mxu0
        %v2561 = vadd.f32 0.0, %v2560
        %v2562 = vpop.f32.mrf.mxu0
        %v2563 = vadd.f32 0.0, %v2562
        %2564 = vmatmul.bf16.gmra.mxu0 %v830
        %v2565 = vpop.f32.mrf.mxu0
        %v2566 = vadd.f32 0.0, %v2565
        %v2567 = vpop.f32.mrf.mxu0
        %v2568 = vadd.f32 0.0, %v2567
        %2569 = vmatmul.bf16.gmra.mxu0 %v831
        %v2570 = vpop.f32.mrf.mxu0
        %v2571 = vadd.f32 0.0, %v2570
        %v2572 = vpop.f32.mrf.mxu0
        %v2573 = vadd.f32 0.0, %v2572
        %2574 = vmatmul.bf16.gmra.mxu0 %v832
        %v2575 = vpop.f32.mrf.mxu0
        %v2576 = vadd.f32 0.0, %v2575
        %v2577 = vpop.f32.mrf.mxu0
        %v2578 = vadd.f32 0.0, %v2577
        %2579 = vmatmul.bf16.gmra.mxu0 %v833
        %v2580 = vpop.f32.mrf.mxu0
        %v2581 = vadd.f32 0.0, %v2580
        %v2582 = vpop.f32.mrf.mxu0
        %v2583 = vadd.f32 0.0, %v2582
        %2584 = vmatmul.bf16.gmra.mxu0 %v834
        %v2585 = vpop.f32.mrf.mxu0
        %v2586 = vadd.f32 0.0, %v2585
        %v2587 = vpop.f32.mrf.mxu0
        %v2588 = vadd.f32 0.0, %v2587
        %2589 = vmatmul.bf16.gmra.mxu0 %v835
        %v2590 = vpop.f32.mrf.mxu0
        %v2591 = vadd.f32 0.0, %v2590
        %v2592 = vpop.f32.mrf.mxu0
        %v2593 = vadd.f32 0.0, %v2592
        %2594 = vmatmul.bf16.gmra.mxu0 %v836
        %v2595 = vpop.f32.mrf.mxu0
        %v2596 = vadd.f32 0.0, %v2595
        %v2597 = vpop.f32.mrf.mxu0
        %v2598 = vadd.f32 0.0, %v2597
        %2599 = vmatmul.bf16.gmra.mxu0 %v837
        %v2600 = vpop.f32.mrf.mxu0
        %v2601 = vadd.f32 0.0, %v2600
        %v2602 = vpop.f32.mrf.mxu0
        %v2603 = vadd.f32 0.0, %v2602
        %2604 = vmatmul.bf16.gmra.mxu0 %v838
        %v2605 = vpop.f32.mrf.mxu0
        %v2606 = vadd.f32 0.0, %v2605
        %v2607 = vpop.f32.mrf.mxu0
        %v2608 = vadd.f32 0.0, %v2607
        %2609 = vmatmul.bf16.gmra.mxu0 %v839
        %v2610 = vpop.f32.mrf.mxu0
        %v2611 = vadd.f32 0.0, %v2610
        %v2612 = vpop.f32.mrf.mxu0
        %v2613 = vadd.f32 0.0, %v2612
        %2614 = vmatmul.bf16.gmra.mxu0 %v840
        %v2615 = vpop.f32.mrf.mxu0
        %v2616 = vadd.f32 0.0, %v2615
        %v2617 = vpop.f32.mrf.mxu0
        %v2618 = vadd.f32 0.0, %v2617
        %2619 = vmatmul.bf16.gmra.mxu0 %v841
        %v2620 = vpop.f32.mrf.mxu0
        %v2621 = vadd.f32 0.0, %v2620
        %v2622 = vpop.f32.mrf.mxu0
        %v2623 = vadd.f32 0.0, %v2622
        %2624 = vmatmul.bf16.gmra.mxu0 %v842
        %v2625 = vpop.f32.mrf.mxu0
        %v2626 = vadd.f32 0.0, %v2625
        %v2627 = vpop.f32.mrf.mxu0
        %v2628 = vadd.f32 0.0, %v2627
        %2629 = vmatmul.bf16.gmra.mxu0 %v1085
        %v2630 = vpop.f32.mrf.mxu0
        %v2631 = vadd.f32 0.0, %v2630
        %v2632 = vpop.f32.mrf.mxu0
        %v2633 = vadd.f32 0.0, %v2632
        %2634 = vmatmul.bf16.gmra.mxu0 %v1086
        %v2635 = vpop.f32.mrf.mxu0
        %v2636 = vadd.f32 0.0, %v2635
        %v2637 = vpop.f32.mrf.mxu0
        %v2638 = vadd.f32 0.0, %v2637
        %2639 = vmatmul.bf16.gmra.mxu0 %v1087
        %v2640 = vpop.f32.mrf.mxu0
        %v2641 = vadd.f32 0.0, %v2640
        %v2642 = vpop.f32.mrf.mxu0
        %v2643 = vadd.f32 0.0, %v2642
        %2644 = vdwg.mxu0
        %v2645 = vadd.f32 %v2302, %v2511
        %v2646 = vadd.f32 %v2304, %v2513
        %v2647 = vadd.f32 %v2307, %v2516
        %v2648 = vadd.f32 %v2309, %v2518
        %v2649 = vadd.f32 %v2312, %v2521
        %v2650 = vadd.f32 %v2314, %v2523
        %v2651 = vadd.f32 %v2317, %v2526
        %v2652 = vadd.f32 %v2319, %v2528
        %v2653 = vadd.f32 %v2322, %v2531
        %v2654 = vadd.f32 %v2324, %v2533
        %v2655 = vadd.f32 %v2327, %v2536
        %v2656 = vadd.f32 %v2329, %v2538
        %v2657 = vadd.f32 %v2332, %v2541
        %v2658 = vadd.f32 %v2334, %v2543
        %v2659 = vadd.f32 %v2337, %v2546
        %v2660 = vadd.f32 %v2339, %v2548
        %v2661 = vadd.f32 %v2342, %v2551
        %v2662 = vadd.f32 %v2344, %v2553
        %v2663 = vadd.f32 %v2347, %v2556
        %v2664 = vadd.f32 %v2349, %v2558
        %v2665 = vadd.f32 %v2352, %v2561
        %v2666 = vadd.f32 %v2354, %v2563
        %v2667 = vadd.f32 %v2357, %v2566
        %v2668 = vadd.f32 %v2359, %v2568
        %v2669 = vadd.f32 %v2362, %v2571
        %v2670 = vadd.f32 %v2364, %v2573
        %v2671 = vadd.f32 %v2367, %v2576
        %v2672 = vadd.f32 %v2369, %v2578
        %v2673 = vadd.f32 %v2372, %v2581
        %v2674 = vadd.f32 %v2374, %v2583
        %v2675 = vadd.f32 %v2377, %v2586
        %v2676 = vadd.f32 %v2379, %v2588
        %v2677 = vadd.f32 %v2382, %v2591
        %v2678 = vadd.f32 %v2384, %v2593
        %v2679 = vadd.f32 %v2387, %v2596
        %v2680 = vadd.f32 %v2389, %v2598
        %v2681 = vadd.f32 %v2392, %v2601
        %v2682 = vadd.f32 %v2394, %v2603
        %v2683 = vadd.f32 %v2397, %v2606
        %v2684 = vadd.f32 %v2399, %v2608
        %v2685 = vadd.f32 %v2402, %v2611
        %v2686 = vadd.f32 %v2404, %v2613
        %v2687 = vadd.f32 %v2407, %v2616
        %v2688 = vadd.f32 %v2409, %v2618
        %v2689 = vadd.f32 %v2412, %v2621
        %v2690 = vadd.f32 %v2414, %v2623
        %v2691 = vadd.f32 %v2417, %v2626
        %v2692 = vadd.f32 %v2419, %v2628
        %v2693 = vadd.f32 %v2422, %v2631
        %v2694 = vadd.f32 %v2424, %v2633
        %v2695 = vadd.f32 %v2427, %v2636
        %v2696 = vadd.f32 %v2429, %v2638
        %v2697 = vadd.f32 %v2432, %v2641
        %v2698 = vadd.f32 %v2434, %v2643
        %v2699 = vrot.slane %v1283, 7
        %v2700 = vrot.slane %v1284, 7
        %v2701 = vrot.slane %v1285, 7
        %v2702 = vrot.slane %v1286, 7
        %v2703 = vrot.slane %v1287, 7
        %v2704 = vrot.slane %v1288, 7
        %v2705 = vrot.slane %v1289, 7
        %v2706 = vrot.slane %v1290, 7
        %v2707 = vrot.slane %v1291, 7
        %v2708 = vrot.slane %v1292, 7
        %v2709 = vrot.slane %v1293, 7
        %v2710 = vrot.slane %v1294, 7
        %v2711 = vrot.slane %v1295, 7
        %v2712 = vrot.slane %v1296, 7
        %v2713 = vrot.slane %v1297, 7
        %v2714 = vrot.slane %v1298, 7
        %v2715 = vrot.slane %v1299, 7
        %v2716 = vrot.slane %v1300, 7
        %v2717 = vrot.slane %v1301, 7
        %v2718 = vrot.slane %v1302, 7
        %v2719 = vrot.slane %v1303, 7
        %v2720 = vrot.slane %v1304, 7
        %v2721 = vrot.slane %v1305, 7
        %v2722 = vrot.slane %v1306, 7
        %v2723 = vrot.slane %v1307, 7
        %v2724 = vrot.slane %v1308, 7
        %v2725 = vrot.slane %v1309, 7
        %v2726 = vrot.slane %v1310, 7
        %v2727 = vrot.slane %v1311, 7
        %v2728 = vrot.slane %v1312, 7
        %v2729 = vrot.slane %v1313, 7
        %v2730 = vrot.slane %v1314, 7
        %v2731 = vrot.slane %v1315, 7
        %v2732 = vrot.slane %v1316, 7
        %v2733 = vrot.slane %v1317, 7
        %v2734 = vrot.slane %v1318, 7
        %v2735 = vrot.slane %v1319, 7
        %v2736 = vrot.slane %v1320, 7
        %v2737 = vrot.slane %v1321, 7
        %v2738 = vrot.slane %v1322, 7
        %v2739 = vrot.slane %v1323, 7
        %v2740 = vrot.slane %v1324, 7
        %v2741 = vrot.slane %v1325, 7
        %v2742 = vrot.slane %v1326, 7
        %v2743 = vrot.slane %v1327, 7
        %v2744 = vrot.slane %v1328, 7
        %v2745 = vrot.slane %v1329, 7
        %v2746 = vrot.slane %v1330, 7
        %v2747 = vrot.slane %v1331, 7
        %v2748 = vrot.slane %v1332, 7
        %v2749 = vrot.slane %v1333, 7
        %v2750 = vrot.slane %v1334, 7
        %v2751 = vrot.slane %v1335, 7
        %v2752 = vrot.slane %v1336, 7
        %v2753 = vlaneseq
        %v2754 = vshrl.u32 %v2753, 7
        %vm2755 = vcmp.lt.s32.totalorder %v2754, 1
        %v2756 = vsel %vm2755, %v2751, %v2752
        %v2757 = vsel %vm2755, %v2750, %v2751
        %v2758 = vsel %vm2755, %v2749, %v2750
        %v2759 = vsel %vm2755, %v2748, %v2749
        %v2760 = vsel %vm2755, %v2747, %v2748
        %v2761 = vsel %vm2755, %v2746, %v2747
        %v2762 = vsel %vm2755, %v2745, %v2746
        %v2763 = vsel %vm2755, %v2744, %v2745
        %v2764 = vsel %vm2755, %v2743, %v2744
        %v2765 = vsel %vm2755, %v2742, %v2743
        %v2766 = vsel %vm2755, %v2741, %v2742
        %v2767 = vsel %vm2755, %v2740, %v2741
        %v2768 = vsel %vm2755, %v2739, %v2740
        %v2769 = vsel %vm2755, %v2738, %v2739
        %v2770 = vsel %vm2755, %v2737, %v2738
        %v2771 = vsel %vm2755, %v2736, %v2737
        %v2772 = vsel %vm2755, %v2735, %v2736
        %v2773 = vsel %vm2755, %v2734, %v2735
        %v2774 = vsel %vm2755, %v2733, %v2734
        %v2775 = vsel %vm2755, %v2732, %v2733
        %v2776 = vsel %vm2755, %v2731, %v2732
        %v2777 = vsel %vm2755, %v2730, %v2731
        %v2778 = vsel %vm2755, %v2729, %v2730
        %v2779 = vsel %vm2755, %v2728, %v2729
        %v2780 = vsel %vm2755, %v2727, %v2728
        %v2781 = vsel %vm2755, %v2726, %v2727
        %v2782 = vsel %vm2755, %v2725, %v2726
        %v2783 = vsel %vm2755, %v2724, %v2725
        %v2784 = vsel %vm2755, %v2723, %v2724
        %v2785 = vsel %vm2755, %v2722, %v2723
        %v2786 = vsel %vm2755, %v2721, %v2722
        %v2787 = vsel %vm2755, %v2720, %v2721
        %v2788 = vsel %vm2755, %v2719, %v2720
        %v2789 = vsel %vm2755, %v2718, %v2719
        %v2790 = vsel %vm2755, %v2717, %v2718
        %v2791 = vsel %vm2755, %v2716, %v2717
        %v2792 = vsel %vm2755, %v2715, %v2716
        %v2793 = vsel %vm2755, %v2714, %v2715
        %v2794 = vsel %vm2755, %v2713, %v2714
        %v2795 = vsel %vm2755, %v2712, %v2713
        %v2796 = vsel %vm2755, %v2711, %v2712
        %v2797 = vsel %vm2755, %v2710, %v2711
        %v2798 = vsel %vm2755, %v2709, %v2710
        %v2799 = vsel %vm2755, %v2708, %v2709
        %v2800 = vsel %vm2755, %v2707, %v2708
        %v2801 = vsel %vm2755, %v2706, %v2707
        %v2802 = vsel %vm2755, %v2705, %v2706
        %v2803 = vsel %vm2755, %v2704, %v2705
        %v2804 = vsel %vm2755, %v2703, %v2704
        %v2805 = vsel %vm2755, %v2702, %v2703
        %v2806 = vsel %vm2755, %v2701, %v2702
        %v2807 = vsel %vm2755, %v2700, %v2701
        %v2808 = vsel %vm2755, %v2699, %v2700
        %v2809 = vsel %vm2755, %v2752, %v2699
        %v2810 = vadd.f32 %v1964, %v2809
        %v2811 = vadd.f32 %v1965, %v2808
        %v2812 = vadd.f32 %v1966, %v2807
        %v2813 = vadd.f32 %v1967, %v2806
        %v2814 = vadd.f32 %v1968, %v2805
        %v2815 = vadd.f32 %v1969, %v2804
        %v2816 = vadd.f32 %v1970, %v2803
        %v2817 = vadd.f32 %v1971, %v2802
        %v2818 = vadd.f32 %v1972, %v2801
        %v2819 = vadd.f32 %v1973, %v2800
        %v2820 = vadd.f32 %v1974, %v2799
        %v2821 = vadd.f32 %v1975, %v2798
        %v2822 = vadd.f32 %v1976, %v2797
        %v2823 = vadd.f32 %v1977, %v2796
        %v2824 = vadd.f32 %v1978, %v2795
        %v2825 = vadd.f32 %v1979, %v2794
        %v2826 = vadd.f32 %v1980, %v2793
        %v2827 = vadd.f32 %v1981, %v2792
        %v2828 = vadd.f32 %v1982, %v2791
        %v2829 = vadd.f32 %v1983, %v2790
        %v2830 = vadd.f32 %v1984, %v2789
        %v2831 = vadd.f32 %v1985, %v2788
        %v2832 = vadd.f32 %v1986, %v2787
        %v2833 = vadd.f32 %v1987, %v2786
        %v2834 = vadd.f32 %v1988, %v2785
        %v2835 = vadd.f32 %v1989, %v2784
        %v2836 = vadd.f32 %v1990, %v2783
        %v2837 = vadd.f32 %v1991, %v2782
        %v2838 = vadd.f32 %v1992, %v2781
        %v2839 = vadd.f32 %v1993, %v2780
        %v2840 = vadd.f32 %v1994, %v2779
        %v2841 = vadd.f32 %v1995, %v2778
        %v2842 = vadd.f32 %v1996, %v2777
        %v2843 = vadd.f32 %v1997, %v2776
        %v2844 = vadd.f32 %v1998, %v2775
        %v2845 = vadd.f32 %v1999, %v2774
        %v2846 = vadd.f32 %v2000, %v2773
        %v2847 = vadd.f32 %v2001, %v2772
        %v2848 = vadd.f32 %v2002, %v2771
        %v2849 = vadd.f32 %v2003, %v2770
        %v2850 = vadd.f32 %v2004, %v2769
        %v2851 = vadd.f32 %v2005, %v2768
        %v2852 = vadd.f32 %v2006, %v2767
        %v2853 = vadd.f32 %v2007, %v2766
        %v2854 = vadd.f32 %v2008, %v2765
        %v2855 = vadd.f32 %v2009, %v2764
        %v2856 = vadd.f32 %v2010, %v2763
        %v2857 = vadd.f32 %v2011, %v2762
        %v2858 = vadd.f32 %v2012, %v2761
        %v2859 = vadd.f32 %v2013, %v2760
        %v2860 = vadd.f32 %v2014, %v2759
        %v2861 = vadd.f32 %v2015, %v2758
        %v2862 = vadd.f32 %v2016, %v2757
        %v2863 = vadd.f32 %v2017, %v2756
        %v2864 = vrot.slane %v2645, 1
        %v2865 = vrot.slane %v2646, 1
        %v2866 = vrot.slane %v2647, 1
        %v2867 = vrot.slane %v2648, 1
        %v2868 = vrot.slane %v2649, 1
        %v2869 = vrot.slane %v2650, 1
        %v2870 = vrot.slane %v2651, 1
        %v2871 = vrot.slane %v2652, 1
        %v2872 = vrot.slane %v2653, 1
        %v2873 = vrot.slane %v2654, 1
        %v2874 = vrot.slane %v2655, 1
        %v2875 = vrot.slane %v2656, 1
        %v2876 = vrot.slane %v2657, 1
        %v2877 = vrot.slane %v2658, 1
        %v2878 = vrot.slane %v2659, 1
        %v2879 = vrot.slane %v2660, 1
        %v2880 = vrot.slane %v2661, 1
        %v2881 = vrot.slane %v2662, 1
        %v2882 = vrot.slane %v2663, 1
        %v2883 = vrot.slane %v2664, 1
        %v2884 = vrot.slane %v2665, 1
        %v2885 = vrot.slane %v2666, 1
        %v2886 = vrot.slane %v2667, 1
        %v2887 = vrot.slane %v2668, 1
        %v2888 = vrot.slane %v2669, 1
        %v2889 = vrot.slane %v2670, 1
        %v2890 = vrot.slane %v2671, 1
        %v2891 = vrot.slane %v2672, 1
        %v2892 = vrot.slane %v2673, 1
        %v2893 = vrot.slane %v2674, 1
        %v2894 = vrot.slane %v2675, 1
        %v2895 = vrot.slane %v2676, 1
        %v2896 = vrot.slane %v2677, 1
        %v2897 = vrot.slane %v2678, 1
        %v2898 = vrot.slane %v2679, 1
        %v2899 = vrot.slane %v2680, 1
        %v2900 = vrot.slane %v2681, 1
        %v2901 = vrot.slane %v2682, 1
        %v2902 = vrot.slane %v2683, 1
        %v2903 = vrot.slane %v2684, 1
        %v2904 = vrot.slane %v2685, 1
        %v2905 = vrot.slane %v2686, 1
        %v2906 = vrot.slane %v2687, 1
        %v2907 = vrot.slane %v2688, 1
        %v2908 = vrot.slane %v2689, 1
        %v2909 = vrot.slane %v2690, 1
        %v2910 = vrot.slane %v2691, 1
        %v2911 = vrot.slane %v2692, 1
        %v2912 = vrot.slane %v2693, 1
        %v2913 = vrot.slane %v2694, 1
        %v2914 = vrot.slane %v2695, 1
        %v2915 = vrot.slane %v2696, 1
        %v2916 = vrot.slane %v2697, 1
        %v2917 = vrot.slane %v2698, 1
        %vm2918 = vcmp.lt.s32.totalorder %v2754, 7
        %v2919 = vsel %vm2918, %v2916, %v2917
        %v2920 = vsel %vm2918, %v2915, %v2916
        %v2921 = vsel %vm2918, %v2914, %v2915
        %v2922 = vsel %vm2918, %v2913, %v2914
        %v2923 = vsel %vm2918, %v2912, %v2913
        %v2924 = vsel %vm2918, %v2911, %v2912
        %v2925 = vsel %vm2918, %v2910, %v2911
        %v2926 = vsel %vm2918, %v2909, %v2910
        %v2927 = vsel %vm2918, %v2908, %v2909
        %v2928 = vsel %vm2918, %v2907, %v2908
        %v2929 = vsel %vm2918, %v2906, %v2907
        %v2930 = vsel %vm2918, %v2905, %v2906
        %v2931 = vsel %vm2918, %v2904, %v2905
        %v2932 = vsel %vm2918, %v2903, %v2904
        %v2933 = vsel %vm2918, %v2902, %v2903
        %v2934 = vsel %vm2918, %v2901, %v2902
        %v2935 = vsel %vm2918, %v2900, %v2901
        %v2936 = vsel %vm2918, %v2899, %v2900
        %v2937 = vsel %vm2918, %v2898, %v2899
        %v2938 = vsel %vm2918, %v2897, %v2898
        %v2939 = vsel %vm2918, %v2896, %v2897
        %v2940 = vsel %vm2918, %v2895, %v2896
        %v2941 = vsel %vm2918, %v2894, %v2895
        %v2942 = vsel %vm2918, %v2893, %v2894
        %v2943 = vsel %vm2918, %v2892, %v2893
        %v2944 = vsel %vm2918, %v2891, %v2892
        %v2945 = vsel %vm2918, %v2890, %v2891
        %v2946 = vsel %vm2918, %v2889, %v2890
        %v2947 = vsel %vm2918, %v2888, %v2889
        %v2948 = vsel %vm2918, %v2887, %v2888
        %v2949 = vsel %vm2918, %v2886, %v2887
        %v2950 = vsel %vm2918, %v2885, %v2886
        %v2951 = vsel %vm2918, %v2884, %v2885
        %v2952 = vsel %vm2918, %v2883, %v2884
        %v2953 = vsel %vm2918, %v2882, %v2883
        %v2954 = vsel %vm2918, %v2881, %v2882
        %v2955 = vsel %vm2918, %v2880, %v2881
        %v2956 = vsel %vm2918, %v2879, %v2880
        %v2957 = vsel %vm2918, %v2878, %v2879
        %v2958 = vsel %vm2918, %v2877, %v2878
        %v2959 = vsel %vm2918, %v2876, %v2877
        %v2960 = vsel %vm2918, %v2875, %v2876
        %v2961 = vsel %vm2918, %v2874, %v2875
        %v2962 = vsel %vm2918, %v2873, %v2874
        %v2963 = vsel %vm2918, %v2872, %v2873
        %v2964 = vsel %vm2918, %v2871, %v2872
        %v2965 = vsel %vm2918, %v2870, %v2871
        %v2966 = vsel %vm2918, %v2869, %v2870
        %v2967 = vsel %vm2918, %v2868, %v2869
        %v2968 = vsel %vm2918, %v2867, %v2868
        %v2969 = vsel %vm2918, %v2866, %v2867
        %v2970 = vsel %vm2918, %v2865, %v2866
        %v2971 = vsel %vm2918, %v2864, %v2865
        %v2972 = vsel %vm2918, %v2917, %v2864
        %v2973 = vadd.f32 %v2810, %v2971
        %v2974 = vadd.f32 %v2811, %v2970
        %v2975 = vadd.f32 %v2812, %v2969
        %v2976 = vadd.f32 %v2813, %v2968
        %v2977 = vadd.f32 %v2814, %v2967
        %v2978 = vadd.f32 %v2815, %v2966
        %v2979 = vadd.f32 %v2816, %v2965
        %v2980 = vadd.f32 %v2817, %v2964
        %v2981 = vadd.f32 %v2818, %v2963
        %v2982 = vadd.f32 %v2819, %v2962
        %v2983 = vadd.f32 %v2820, %v2961
        %v2984 = vadd.f32 %v2821, %v2960
        %v2985 = vadd.f32 %v2822, %v2959
        %v2986 = vadd.f32 %v2823, %v2958
        %v2987 = vadd.f32 %v2824, %v2957
        %v2988 = vadd.f32 %v2825, %v2956
        %v2989 = vadd.f32 %v2826, %v2955
        %v2990 = vadd.f32 %v2827, %v2954
        %v2991 = vadd.f32 %v2828, %v2953
        %v2992 = vadd.f32 %v2829, %v2952
        %v2993 = vadd.f32 %v2830, %v2951
        %v2994 = vadd.f32 %v2831, %v2950
        %v2995 = vadd.f32 %v2832, %v2949
        %v2996 = vadd.f32 %v2833, %v2948
        %v2997 = vadd.f32 %v2834, %v2947
        %v2998 = vadd.f32 %v2835, %v2946
        %v2999 = vadd.f32 %v2836, %v2945
        %v3000 = vadd.f32 %v2837, %v2944
        %v3001 = vadd.f32 %v2838, %v2943
        %v3002 = vadd.f32 %v2839, %v2942
        %v3003 = vadd.f32 %v2840, %v2941
        %v3004 = vadd.f32 %v2841, %v2940
        %v3005 = vadd.f32 %v2842, %v2939
        %v3006 = vadd.f32 %v2843, %v2938
        %v3007 = vadd.f32 %v2844, %v2937
        %v3008 = vadd.f32 %v2845, %v2936
        %v3009 = vadd.f32 %v2846, %v2935
        %v3010 = vadd.f32 %v2847, %v2934
        %v3011 = vadd.f32 %v2848, %v2933
        %v3012 = vadd.f32 %v2849, %v2932
        %v3013 = vadd.f32 %v2850, %v2931
        %v3014 = vadd.f32 %v2851, %v2930
        %v3015 = vadd.f32 %v2852, %v2929
        %v3016 = vadd.f32 %v2853, %v2928
        %v3017 = vadd.f32 %v2854, %v2927
        %v3018 = vadd.f32 %v2855, %v2926
        %v3019 = vadd.f32 %v2856, %v2925
        %v3020 = vadd.f32 %v2857, %v2924
        %v3021 = vadd.f32 %v2858, %v2923
        %v3022 = vadd.f32 %v2859, %v2922
        %v3023 = vadd.f32 %v2860, %v2921
        %v3024 = vadd.f32 %v2861, %v2920
        %v3025 = vadd.f32 %v2862, %v2919
        %v3026 = vadd.f32 %v2863, %v2972
        %v3027 = vld [vmem:[%s2] sm:$0x1]
        %v3029 = vperm.slane %v3027, 0
        %v3031 = vmul.f32 %v2973, %v3029
        %v3032 = vmul.f32 %v2974, %v3029
        %v3033 = vmul.f32 %v2975, %v3029
        %v3034 = vmul.f32 %v2976, %v3029
        %v3035 = vmul.f32 %v2977, %v3029
        %v3036 = vmul.f32 %v2978, %v3029
        %v3037 = vmul.f32 %v2979, %v3029
        %v3038 = vmul.f32 %v2980, %v3029
        %v3039 = vmul.f32 %v2981, %v3029
        %v3040 = vmul.f32 %v2982, %v3029
        %v3041 = vmul.f32 %v2983, %v3029
        %v3042 = vmul.f32 %v2984, %v3029
        %v3043 = vmul.f32 %v2985, %v3029
        %v3044 = vmul.f32 %v2986, %v3029
        %v3045 = vmul.f32 %v2987, %v3029
        %v3046 = vmul.f32 %v2988, %v3029
        %v3047 = vmul.f32 %v2989, %v3029
        %v3048 = vmul.f32 %v2990, %v3029
        %v3049 = vmul.f32 %v2991, %v3029
        %v3050 = vmul.f32 %v2992, %v3029
        %v3051 = vmul.f32 %v2993, %v3029
        %v3052 = vmul.f32 %v2994, %v3029
        %v3053 = vmul.f32 %v2995, %v3029
        %v3054 = vmul.f32 %v2996, %v3029
        %v3055 = vmul.f32 %v2997, %v3029
        %v3056 = vmul.f32 %v2998, %v3029
        %v3057 = vmul.f32 %v2999, %v3029
        %v3058 = vmul.f32 %v3000, %v3029
        %v3059 = vmul.f32 %v3001, %v3029
        %v3060 = vmul.f32 %v3002, %v3029
        %v3061 = vmul.f32 %v3003, %v3029
        %v3062 = vmul.f32 %v3004, %v3029
        %v3063 = vmul.f32 %v3005, %v3029
        %v3064 = vmul.f32 %v3006, %v3029
        %v3065 = vmul.f32 %v3007, %v3029
        %v3066 = vmul.f32 %v3008, %v3029
        %v3067 = vmul.f32 %v3009, %v3029
        %v3068 = vmul.f32 %v3010, %v3029
        %v3069 = vmul.f32 %v3011, %v3029
        %v3070 = vmul.f32 %v3012, %v3029
        %v3071 = vmul.f32 %v3013, %v3029
        %v3072 = vmul.f32 %v3014, %v3029
        %v3073 = vmul.f32 %v3015, %v3029
        %v3074 = vmul.f32 %v3016, %v3029
        %v3075 = vmul.f32 %v3017, %v3029
        %v3076 = vmul.f32 %v3018, %v3029
        %v3077 = vmul.f32 %v3019, %v3029
        %v3078 = vmul.f32 %v3020, %v3029
        %v3079 = vmul.f32 %v3021, %v3029
        %v3080 = vmul.f32 %v3022, %v3029
        %v3081 = vmul.f32 %v3023, %v3029
        %v3082 = vmul.f32 %v3024, %v3029
        %v3083 = vmul.f32 %v3025, %v3029
        %v3084 = vmul.f32 %v3026, %v3029
        %v3085 = vld [vmem:[%s3] sm:$0x1]
        %v3087 = vperm.slane %v3085, 0
        %v3089 = vadd.f32 %v3031, %v3087
        %v3090 = vadd.f32 %v3032, %v3087
        %v3091 = vadd.f32 %v3033, %v3087
        %v3092 = vadd.f32 %v3034, %v3087
        %v3093 = vadd.f32 %v3035, %v3087
        %v3094 = vadd.f32 %v3036, %v3087
        %v3095 = vadd.f32 %v3037, %v3087
        %v3096 = vadd.f32 %v3038, %v3087
        %v3097 = vadd.f32 %v3039, %v3087
        %v3098 = vadd.f32 %v3040, %v3087
        %v3099 = vadd.f32 %v3041, %v3087
        %v3100 = vadd.f32 %v3042, %v3087
        %v3101 = vadd.f32 %v3043, %v3087
        %v3102 = vadd.f32 %v3044, %v3087
        %v3103 = vadd.f32 %v3045, %v3087
        %v3104 = vadd.f32 %v3046, %v3087
        %v3105 = vadd.f32 %v3047, %v3087
        %v3106 = vadd.f32 %v3048, %v3087
        %v3107 = vadd.f32 %v3049, %v3087
        %v3108 = vadd.f32 %v3050, %v3087
        %v3109 = vadd.f32 %v3051, %v3087
        %v3110 = vadd.f32 %v3052, %v3087
        %v3111 = vadd.f32 %v3053, %v3087
        %v3112 = vadd.f32 %v3054, %v3087
        %v3113 = vadd.f32 %v3055, %v3087
        %v3114 = vadd.f32 %v3056, %v3087
        %v3115 = vadd.f32 %v3057, %v3087
        %v3116 = vadd.f32 %v3058, %v3087
        %v3117 = vadd.f32 %v3059, %v3087
        %v3118 = vadd.f32 %v3060, %v3087
        %v3119 = vadd.f32 %v3061, %v3087
        %v3120 = vadd.f32 %v3062, %v3087
        %v3121 = vadd.f32 %v3063, %v3087
        %v3122 = vadd.f32 %v3064, %v3087
        %v3123 = vadd.f32 %v3065, %v3087
        %v3124 = vadd.f32 %v3066, %v3087
        %v3125 = vadd.f32 %v3067, %v3087
        %v3126 = vadd.f32 %v3068, %v3087
        %v3127 = vadd.f32 %v3069, %v3087
        %v3128 = vadd.f32 %v3070, %v3087
        %v3129 = vadd.f32 %v3071, %v3087
        %v3130 = vadd.f32 %v3072, %v3087
        %v3131 = vadd.f32 %v3073, %v3087
        %v3132 = vadd.f32 %v3074, %v3087
        %v3133 = vadd.f32 %v3075, %v3087
        %v3134 = vadd.f32 %v3076, %v3087
        %v3135 = vadd.f32 %v3077, %v3087
        %v3136 = vadd.f32 %v3078, %v3087
        %v3137 = vadd.f32 %v3079, %v3087
        %v3138 = vadd.f32 %v3080, %v3087
        %v3139 = vadd.f32 %v3081, %v3087
        %v3140 = vadd.f32 %v3082, %v3087
        %v3141 = vadd.f32 %v3083, %v3087
        %v3142 = vadd.f32 %v3084, %v3087
        %v3143 = vmax.f32 %v3089, 0.0
        %v3144 = vmax.f32 %v3090, 0.0
        %v3145 = vmax.f32 %v3091, 0.0
        %v3146 = vmax.f32 %v3092, 0.0
        %v3147 = vmax.f32 %v3093, 0.0
        %v3148 = vmax.f32 %v3094, 0.0
        %v3149 = vmax.f32 %v3095, 0.0
        %v3150 = vmax.f32 %v3096, 0.0
        %v3151 = vmax.f32 %v3097, 0.0
        %v3152 = vmax.f32 %v3098, 0.0
        %v3153 = vmax.f32 %v3099, 0.0
        %v3154 = vmax.f32 %v3100, 0.0
        %v3155 = vmax.f32 %v3101, 0.0
        %v3156 = vmax.f32 %v3102, 0.0
        %v3157 = vmax.f32 %v3103, 0.0
        %v3158 = vmax.f32 %v3104, 0.0
        %v3159 = vmax.f32 %v3105, 0.0
        %v3160 = vmax.f32 %v3106, 0.0
        %v3161 = vmax.f32 %v3107, 0.0
        %v3162 = vmax.f32 %v3108, 0.0
        %v3163 = vmax.f32 %v3109, 0.0
        %v3164 = vmax.f32 %v3110, 0.0
        %v3165 = vmax.f32 %v3111, 0.0
        %v3166 = vmax.f32 %v3112, 0.0
        %v3167 = vmax.f32 %v3113, 0.0
        %v3168 = vmax.f32 %v3114, 0.0
        %v3169 = vmax.f32 %v3115, 0.0
        %v3170 = vmax.f32 %v3116, 0.0
        %v3171 = vmax.f32 %v3117, 0.0
        %v3172 = vmax.f32 %v3118, 0.0
        %v3173 = vmax.f32 %v3119, 0.0
        %v3174 = vmax.f32 %v3120, 0.0
        %v3175 = vmax.f32 %v3121, 0.0
        %v3176 = vmax.f32 %v3122, 0.0
        %v3177 = vmax.f32 %v3123, 0.0
        %v3178 = vmax.f32 %v3124, 0.0
        %v3179 = vmax.f32 %v3125, 0.0
        %v3180 = vmax.f32 %v3126, 0.0
        %v3181 = vmax.f32 %v3127, 0.0
        %v3182 = vmax.f32 %v3128, 0.0
        %v3183 = vmax.f32 %v3129, 0.0
        %v3184 = vmax.f32 %v3130, 0.0
        %v3185 = vmax.f32 %v3131, 0.0
        %v3186 = vmax.f32 %v3132, 0.0
        %v3187 = vmax.f32 %v3133, 0.0
        %v3188 = vmax.f32 %v3134, 0.0
        %v3189 = vmax.f32 %v3135, 0.0
        %v3190 = vmax.f32 %v3136, 0.0
        %v3191 = vmax.f32 %v3137, 0.0
        %v3192 = vmax.f32 %v3138, 0.0
        %v3193 = vmax.f32 %v3139, 0.0
        %v3194 = vmax.f32 %v3140, 0.0
        %v3195 = vmax.f32 %v3141, 0.0
        %v3196 = vmax.f32 %v3142, 0.0
        %v3197 = vadd.s32 %v2754, 8
        %v3198 = vadd.s32 %v2754, 16
        %s3199 = smul.u32 %s28, 16
        %s3200 = ssub.s32 %s3199, 1
        %v3201 = vstv %s3200
        %v3202 = vadd.s32 %v3201, 1
        %v3203 = vadd.s32 %v3201, 2
        %v3204 = vadd.s32 %v3201, 3
        %v3205 = vadd.s32 %v3201, 4
        %v3206 = vadd.s32 %v3201, 5
        %v3207 = vadd.s32 %v3201, 6
        %v3208 = vadd.s32 %v3201, 7
        %v3209 = vadd.s32 %v3201, 8
        %v3210 = vadd.s32 %v3201, 9
        %v3211 = vadd.s32 %v3201, 10
        %v3212 = vadd.s32 %v3201, 11
        %v3213 = vadd.s32 %v3201, 12
        %v3214 = vadd.s32 %v3201, 13
        %v3215 = vadd.s32 %v3201, 14
        %v3216 = vadd.s32 %v3201, 15
        %v3217 = vadd.s32 %v3201, 16
        %v3218 = vadd.s32 %v3201, 17
        %vm3219 = vcmp.ge.s32.totalorder %v3201, 0
        %vm3220 = vcmp.ge.s32.totalorder %v3202, 0
        %vm3221 = vcmp.ge.s32.totalorder %v3203, 0
        %vm3222 = vcmp.ge.s32.totalorder %v3204, 0
        %vm3223 = vcmp.ge.s32.totalorder %v3205, 0
        %vm3224 = vcmp.ge.s32.totalorder %v3206, 0
        %vm3225 = vcmp.ge.s32.totalorder %v3207, 0
        %vm3226 = vcmp.ge.s32.totalorder %v3208, 0
        %vm3227 = vcmp.ge.s32.totalorder %v3209, 0
        %vm3228 = vcmp.ge.s32.totalorder %v3210, 0
        %vm3229 = vcmp.ge.s32.totalorder %v3211, 0
        %vm3230 = vcmp.ge.s32.totalorder %v3212, 0
        %vm3231 = vcmp.ge.s32.totalorder %v3213, 0
        %vm3232 = vcmp.ge.s32.totalorder %v3214, 0
        %vm3233 = vcmp.ge.s32.totalorder %v3215, 0
        %vm3234 = vcmp.ge.s32.totalorder %v3216, 0
        %vm3235 = vcmp.ge.s32.totalorder %v3217, 0
        %vm3236 = vcmp.ge.s32.totalorder %v3218, 0
        %vm3237 = vcmp.lt.s32.totalorder %v3201, 16
        %vm3238 = vcmp.lt.s32.totalorder %v3202, 16
        %vm3239 = vcmp.lt.s32.totalorder %v3203, 16
        %vm3240 = vcmp.lt.s32.totalorder %v3204, 16
        %vm3241 = vcmp.lt.s32.totalorder %v3205, 16
        %vm3242 = vcmp.lt.s32.totalorder %v3206, 16
        %vm3243 = vcmp.lt.s32.totalorder %v3207, 16
        %vm3244 = vcmp.lt.s32.totalorder %v3208, 16
        %vm3245 = vcmp.lt.s32.totalorder %v3209, 16
        %vm3246 = vcmp.lt.s32.totalorder %v3210, 16
        %vm3247 = vcmp.lt.s32.totalorder %v3211, 16
        %vm3248 = vcmp.lt.s32.totalorder %v3212, 16
        %vm3249 = vcmp.lt.s32.totalorder %v3213, 16
        %vm3250 = vcmp.lt.s32.totalorder %v3214, 16
        %vm3251 = vcmp.lt.s32.totalorder %v3215, 16
        %vm3252 = vcmp.lt.s32.totalorder %v3216, 16
        %vm3253 = vcmp.lt.s32.totalorder %v3217, 16
        %vm3254 = vcmp.lt.s32.totalorder %v3218, 16
        %vm3255 = vmand %vm3219, %vm3237
        %vm3256 = vmand %vm3220, %vm3238
        %vm3257 = vmand %vm3221, %vm3239
        %vm3258 = vmand %vm3222, %vm3240
        %vm3259 = vmand %vm3223, %vm3241
        %vm3260 = vmand %vm3224, %vm3242
        %vm3261 = vmand %vm3225, %vm3243
        %vm3262 = vmand %vm3226, %vm3244
        %vm3263 = vmand %vm3227, %vm3245
        %vm3264 = vmand %vm3228, %vm3246
        %vm3265 = vmand %vm3229, %vm3247
        %vm3266 = vmand %vm3230, %vm3248
        %vm3267 = vmand %vm3231, %vm3249
        %vm3268 = vmand %vm3232, %vm3250
        %vm3269 = vmand %vm3233, %vm3251
        %vm3270 = vmand %vm3234, %vm3252
        %vm3271 = vmand %vm3235, %vm3253
        %vm3272 = vmand %vm3236, %vm3254
        %vm3273 = vcmp.lt.s32.totalorder %v2754, 16
        %vm3274 = vcmp.lt.s32.totalorder %v3197, 16
        %vm3275 = vcmp.lt.s32.totalorder %v3198, 16
        %vm3276 = vmand %vm3255, %vm3273
        %vm3277 = vmand %vm3255, %vm3274
        %vm3278 = vmand %vm3255, %vm3275
        %vm3279 = vmand %vm3256, %vm3273
        %vm3280 = vmand %vm3256, %vm3274
        %vm3281 = vmand %vm3256, %vm3275
        %vm3282 = vmand %vm3257, %vm3273
        %vm3283 = vmand %vm3257, %vm3274
        %vm3284 = vmand %vm3257, %vm3275
        %vm3285 = vmand %vm3258, %vm3273
        %vm3286 = vmand %vm3258, %vm3274
        %vm3287 = vmand %vm3258, %vm3275
        %vm3288 = vmand %vm3259, %vm3273
        %vm3289 = vmand %vm3259, %vm3274
        %vm3290 = vmand %vm3259, %vm3275
        %vm3291 = vmand %vm3260, %vm3273
        %vm3292 = vmand %vm3260, %vm3274
        %vm3293 = vmand %vm3260, %vm3275
        %vm3294 = vmand %vm3261, %vm3273
        %vm3295 = vmand %vm3261, %vm3274
        %vm3296 = vmand %vm3261, %vm3275
        %vm3297 = vmand %vm3262, %vm3273
        %vm3298 = vmand %vm3262, %vm3274
        %vm3299 = vmand %vm3262, %vm3275
        %vm3300 = vmand %vm3263, %vm3273
        %vm3301 = vmand %vm3263, %vm3274
        %vm3302 = vmand %vm3263, %vm3275
        %vm3303 = vmand %vm3264, %vm3273
        %vm3304 = vmand %vm3264, %vm3274
        %vm3305 = vmand %vm3264, %vm3275
        %vm3306 = vmand %vm3265, %vm3273
        %vm3307 = vmand %vm3265, %vm3274
        %vm3308 = vmand %vm3265, %vm3275
        %vm3309 = vmand %vm3266, %vm3273
        %vm3310 = vmand %vm3266, %vm3274
        %vm3311 = vmand %vm3266, %vm3275
        %vm3312 = vmand %vm3267, %vm3273
        %vm3313 = vmand %vm3267, %vm3274
        %vm3314 = vmand %vm3267, %vm3275
        %vm3315 = vmand %vm3268, %vm3273
        %vm3316 = vmand %vm3268, %vm3274
        %vm3317 = vmand %vm3268, %vm3275
        %vm3318 = vmand %vm3269, %vm3273
        %vm3319 = vmand %vm3269, %vm3274
        %vm3320 = vmand %vm3269, %vm3275
        %vm3321 = vmand %vm3270, %vm3273
        %vm3322 = vmand %vm3270, %vm3274
        %vm3323 = vmand %vm3270, %vm3275
        %vm3324 = vmand %vm3271, %vm3273
        %vm3325 = vmand %vm3271, %vm3274
        %vm3326 = vmand %vm3271, %vm3275
        %vm3327 = vmand %vm3272, %vm3273
        %vm3328 = vmand %vm3272, %vm3274
        %vm3329 = vmand %vm3272, %vm3275
        %v3330 = vsel %vm3276, 1, 0
        %v3331 = vsel %vm3277, 1, 0
        %v3332 = vsel %vm3278, 1, 0
        %v3333 = vsel %vm3279, 1, 0
        %v3334 = vsel %vm3280, 1, 0
        %v3335 = vsel %vm3281, 1, 0
        %v3336 = vsel %vm3282, 1, 0
        %v3337 = vsel %vm3283, 1, 0
        %v3338 = vsel %vm3284, 1, 0
        %v3339 = vsel %vm3285, 1, 0
        %v3340 = vsel %vm3286, 1, 0
        %v3341 = vsel %vm3287, 1, 0
        %v3342 = vsel %vm3288, 1, 0
        %v3343 = vsel %vm3289, 1, 0
        %v3344 = vsel %vm3290, 1, 0
        %v3345 = vsel %vm3291, 1, 0
        %v3346 = vsel %vm3292, 1, 0
        %v3347 = vsel %vm3293, 1, 0
        %v3348 = vsel %vm3294, 1, 0
        %v3349 = vsel %vm3295, 1, 0
        %v3350 = vsel %vm3296, 1, 0
        %v3351 = vsel %vm3297, 1, 0
        %v3352 = vsel %vm3298, 1, 0
        %v3353 = vsel %vm3299, 1, 0
        %v3354 = vsel %vm3300, 1, 0
        %v3355 = vsel %vm3301, 1, 0
        %v3356 = vsel %vm3302, 1, 0
        %v3357 = vsel %vm3303, 1, 0
        %v3358 = vsel %vm3304, 1, 0
        %v3359 = vsel %vm3305, 1, 0
        %v3360 = vsel %vm3306, 1, 0
        %v3361 = vsel %vm3307, 1, 0
        %v3362 = vsel %vm3308, 1, 0
        %v3363 = vsel %vm3309, 1, 0
        %v3364 = vsel %vm3310, 1, 0
        %v3365 = vsel %vm3311, 1, 0
        %v3366 = vsel %vm3312, 1, 0
        %v3367 = vsel %vm3313, 1, 0
        %v3368 = vsel %vm3314, 1, 0
        %v3369 = vsel %vm3315, 1, 0
        %v3370 = vsel %vm3316, 1, 0
        %v3371 = vsel %vm3317, 1, 0
        %v3372 = vsel %vm3318, 1, 0
        %v3373 = vsel %vm3319, 1, 0
        %v3374 = vsel %vm3320, 1, 0
        %v3375 = vsel %vm3321, 1, 0
        %v3376 = vsel %vm3322, 1, 0
        %v3377 = vsel %vm3323, 1, 0
        %v3378 = vsel %vm3324, 1, 0
        %v3379 = vsel %vm3325, 1, 0
        %v3380 = vsel %vm3326, 1, 0
        %v3381 = vsel %vm3327, 1, 0
        %v3382 = vsel %vm3328, 1, 0
        %v3383 = vsel %vm3329, 1, 0
        %vm3384 = vcmp.eq.s32.totalorder %v3330, 1
        %vm3385 = vcmp.eq.s32.totalorder %v3331, 1
        %vm3386 = vcmp.eq.s32.totalorder %v3332, 1
        %vm3387 = vcmp.eq.s32.totalorder %v3333, 1
        %vm3388 = vcmp.eq.s32.totalorder %v3334, 1
        %vm3389 = vcmp.eq.s32.totalorder %v3335, 1
        %vm3390 = vcmp.eq.s32.totalorder %v3336, 1
        %vm3391 = vcmp.eq.s32.totalorder %v3337, 1
        %vm3392 = vcmp.eq.s32.totalorder %v3338, 1
        %vm3393 = vcmp.eq.s32.totalorder %v3339, 1
        %vm3394 = vcmp.eq.s32.totalorder %v3340, 1
        %vm3395 = vcmp.eq.s32.totalorder %v3341, 1
        %vm3396 = vcmp.eq.s32.totalorder %v3342, 1
        %vm3397 = vcmp.eq.s32.totalorder %v3343, 1
        %vm3398 = vcmp.eq.s32.totalorder %v3344, 1
        %vm3399 = vcmp.eq.s32.totalorder %v3345, 1
        %vm3400 = vcmp.eq.s32.totalorder %v3346, 1
        %vm3401 = vcmp.eq.s32.totalorder %v3347, 1
        %vm3402 = vcmp.eq.s32.totalorder %v3348, 1
        %vm3403 = vcmp.eq.s32.totalorder %v3349, 1
        %vm3404 = vcmp.eq.s32.totalorder %v3350, 1
        %vm3405 = vcmp.eq.s32.totalorder %v3351, 1
        %vm3406 = vcmp.eq.s32.totalorder %v3352, 1
        %vm3407 = vcmp.eq.s32.totalorder %v3353, 1
        %vm3408 = vcmp.eq.s32.totalorder %v3354, 1
        %vm3409 = vcmp.eq.s32.totalorder %v3355, 1
        %vm3410 = vcmp.eq.s32.totalorder %v3356, 1
        %vm3411 = vcmp.eq.s32.totalorder %v3357, 1
        %vm3412 = vcmp.eq.s32.totalorder %v3358, 1
        %vm3413 = vcmp.eq.s32.totalorder %v3359, 1
        %vm3414 = vcmp.eq.s32.totalorder %v3360, 1
        %vm3415 = vcmp.eq.s32.totalorder %v3361, 1
        %vm3416 = vcmp.eq.s32.totalorder %v3362, 1
        %vm3417 = vcmp.eq.s32.totalorder %v3363, 1
        %vm3418 = vcmp.eq.s32.totalorder %v3364, 1
        %vm3419 = vcmp.eq.s32.totalorder %v3365, 1
        %vm3420 = vcmp.eq.s32.totalorder %v3366, 1
        %vm3421 = vcmp.eq.s32.totalorder %v3367, 1
        %vm3422 = vcmp.eq.s32.totalorder %v3368, 1
        %vm3423 = vcmp.eq.s32.totalorder %v3369, 1
        %vm3424 = vcmp.eq.s32.totalorder %v3370, 1
        %vm3425 = vcmp.eq.s32.totalorder %v3371, 1
        %vm3426 = vcmp.eq.s32.totalorder %v3372, 1
        %vm3427 = vcmp.eq.s32.totalorder %v3373, 1
        %vm3428 = vcmp.eq.s32.totalorder %v3374, 1
        %vm3429 = vcmp.eq.s32.totalorder %v3375, 1
        %vm3430 = vcmp.eq.s32.totalorder %v3376, 1
        %vm3431 = vcmp.eq.s32.totalorder %v3377, 1
        %vm3432 = vcmp.eq.s32.totalorder %v3378, 1
        %vm3433 = vcmp.eq.s32.totalorder %v3379, 1
        %vm3434 = vcmp.eq.s32.totalorder %v3380, 1
        %vm3435 = vcmp.eq.s32.totalorder %v3381, 1
        %vm3436 = vcmp.eq.s32.totalorder %v3382, 1
        %vm3437 = vcmp.eq.s32.totalorder %v3383, 1
        %v3438 = vsel %vm3384, %v3143, 0.0
        %v3439 = vsel %vm3385, %v3144, 0.0
        %v3440 = vsel %vm3386, %v3145, 0.0
        %v3441 = vsel %vm3387, %v3146, 0.0
        %v3442 = vsel %vm3388, %v3147, 0.0
        %v3443 = vsel %vm3389, %v3148, 0.0
        %v3444 = vsel %vm3390, %v3149, 0.0
        %v3445 = vsel %vm3391, %v3150, 0.0
        %v3446 = vsel %vm3392, %v3151, 0.0
        %v3447 = vsel %vm3393, %v3152, 0.0
        %v3448 = vsel %vm3394, %v3153, 0.0
        %v3449 = vsel %vm3395, %v3154, 0.0
        %v3450 = vsel %vm3396, %v3155, 0.0
        %v3451 = vsel %vm3397, %v3156, 0.0
        %v3452 = vsel %vm3398, %v3157, 0.0
        %v3453 = vsel %vm3399, %v3158, 0.0
        %v3454 = vsel %vm3400, %v3159, 0.0
        %v3455 = vsel %vm3401, %v3160, 0.0
        %v3456 = vsel %vm3402, %v3161, 0.0
        %v3457 = vsel %vm3403, %v3162, 0.0
        %v3458 = vsel %vm3404, %v3163, 0.0
        %v3459 = vsel %vm3405, %v3164, 0.0
        %v3460 = vsel %vm3406, %v3165, 0.0
        %v3461 = vsel %vm3407, %v3166, 0.0
        %v3462 = vsel %vm3408, %v3167, 0.0
        %v3463 = vsel %vm3409, %v3168, 0.0
        %v3464 = vsel %vm3410, %v3169, 0.0
        %v3465 = vsel %vm3411, %v3170, 0.0
        %v3466 = vsel %vm3412, %v3171, 0.0
        %v3467 = vsel %vm3413, %v3172, 0.0
        %v3468 = vsel %vm3414, %v3173, 0.0
        %v3469 = vsel %vm3415, %v3174, 0.0
        %v3470 = vsel %vm3416, %v3175, 0.0
        %v3471 = vsel %vm3417, %v3176, 0.0
        %v3472 = vsel %vm3418, %v3177, 0.0
        %v3473 = vsel %vm3419, %v3178, 0.0
        %v3474 = vsel %vm3420, %v3179, 0.0
        %v3475 = vsel %vm3421, %v3180, 0.0
        %v3476 = vsel %vm3422, %v3181, 0.0
        %v3477 = vsel %vm3423, %v3182, 0.0
        %v3478 = vsel %vm3424, %v3183, 0.0
        %v3479 = vsel %vm3425, %v3184, 0.0
        %v3480 = vsel %vm3426, %v3185, 0.0
        %v3481 = vsel %vm3427, %v3186, 0.0
        %v3482 = vsel %vm3428, %v3187, 0.0
        %v3483 = vsel %vm3429, %v3188, 0.0
        %v3484 = vsel %vm3430, %v3189, 0.0
        %v3485 = vsel %vm3431, %v3190, 0.0
        %v3486 = vsel %vm3432, %v3191, 0.0
        %v3487 = vsel %vm3433, %v3192, 0.0
        %v3488 = vsel %vm3434, %v3193, 0.0
        %v3489 = vsel %vm3435, %v3194, 0.0
        %v3490 = vsel %vm3436, %v3195, 0.0
        %v3491 = vsel %vm3437, %v3196, 0.0
        %v3492 = vpack.c.bf16 %v3438, %v3438
        %v3493 = vpack.c.bf16 %v3439, %v3439
        %v3494 = vpack.c.bf16 %v3440, %v3440
        %v3495 = vpack.c.bf16 %v3441, %v3441
        %v3496 = vpack.c.bf16 %v3442, %v3442
        %v3497 = vpack.c.bf16 %v3443, %v3443
        %v3498 = vpack.c.bf16 %v3444, %v3444
        %v3499 = vpack.c.bf16 %v3445, %v3445
        %v3500 = vpack.c.bf16 %v3446, %v3446
        %v3501 = vpack.c.bf16 %v3447, %v3447
        %v3502 = vpack.c.bf16 %v3448, %v3448
        %v3503 = vpack.c.bf16 %v3449, %v3449
        %v3504 = vpack.c.bf16 %v3450, %v3450
        %v3505 = vpack.c.bf16 %v3451, %v3451
        %v3506 = vpack.c.bf16 %v3452, %v3452
        %v3507 = vpack.c.bf16 %v3453, %v3453
        %v3508 = vpack.c.bf16 %v3454, %v3454
        %v3509 = vpack.c.bf16 %v3455, %v3455
        %v3510 = vpack.c.bf16 %v3456, %v3456
        %v3511 = vpack.c.bf16 %v3457, %v3457
        %v3512 = vpack.c.bf16 %v3458, %v3458
        %v3513 = vpack.c.bf16 %v3459, %v3459
        %v3514 = vpack.c.bf16 %v3460, %v3460
        %v3515 = vpack.c.bf16 %v3461, %v3461
        %v3516 = vpack.c.bf16 %v3462, %v3462
        %v3517 = vpack.c.bf16 %v3463, %v3463
        %v3518 = vpack.c.bf16 %v3464, %v3464
        %v3519 = vpack.c.bf16 %v3465, %v3465
        %v3520 = vpack.c.bf16 %v3466, %v3466
        %v3521 = vpack.c.bf16 %v3467, %v3467
        %v3522 = vpack.c.bf16 %v3468, %v3468
        %v3523 = vpack.c.bf16 %v3469, %v3469
        %v3524 = vpack.c.bf16 %v3470, %v3470
        %v3525 = vpack.c.bf16 %v3471, %v3471
        %v3526 = vpack.c.bf16 %v3472, %v3472
        %v3527 = vpack.c.bf16 %v3473, %v3473
        %v3528 = vpack.c.bf16 %v3474, %v3474
        %v3529 = vpack.c.bf16 %v3475, %v3475
        %v3530 = vpack.c.bf16 %v3476, %v3476
        %v3531 = vpack.c.bf16 %v3477, %v3477
        %v3532 = vpack.c.bf16 %v3478, %v3478
        %v3533 = vpack.c.bf16 %v3479, %v3479
        %v3534 = vpack.c.bf16 %v3480, %v3480
        %v3535 = vpack.c.bf16 %v3481, %v3481
        %v3536 = vpack.c.bf16 %v3482, %v3482
        %v3537 = vpack.c.bf16 %v3483, %v3483
        %v3538 = vpack.c.bf16 %v3484, %v3484
        %v3539 = vpack.c.bf16 %v3485, %v3485
        %v3540 = vpack.c.bf16 %v3486, %v3486
        %v3541 = vpack.c.bf16 %v3487, %v3487
        %v3542 = vpack.c.bf16 %v3488, %v3488
        %v3543 = vpack.c.bf16 %v3489, %v3489
        %v3544 = vpack.c.bf16 %v3490, %v3490
        %v3545 = vpack.c.bf16 %v3491, %v3491
        %v3546 = vld [vmem:[#allocation7] sm:$0xf]
        %v3547 = vld [vmem:[#allocation7 + $0x4] sm:$0xf]
        %v3548 = vld [vmem:[#allocation7 + $0x8] sm:$0xf]
        %v3549 = vld [vmem:[#allocation7 + $0xc] sm:$0xf]
        %v3550 = vld [vmem:[#allocation7 + $0x10] sm:$0xf]
        %v3551 = vld [vmem:[#allocation7 + $0x14] sm:$0xf]
        %v3552 = vld [vmem:[#allocation7 + $0x18] sm:$0xf]
        %v3553 = vld [vmem:[#allocation7 + $0x1c] sm:$0xf]
        %v3554 = vld [vmem:[#allocation7 + $0x20] sm:$0xf]
        %v3555 = vld [vmem:[#allocation7 + $0x24] sm:$0xf]
        %v3556 = vld [vmem:[#allocation7 + $0x28] sm:$0xf]
        %v3557 = vld [vmem:[#allocation7 + $0x2c] sm:$0xf]
        %v3558 = vld [vmem:[#allocation7 + $0x30] sm:$0xf]
        %v3559 = vld [vmem:[#allocation7 + $0x34] sm:$0xf]
        %v3560 = vld [vmem:[#allocation7 + $0x38] sm:$0xf]
        %v3561 = vld [vmem:[#allocation7 + $0x3c] sm:$0xf]
        %s3562 = scalar_lea.vmem [#allocation7], 192
        %v3563 = vld [vmem:[%s3562] sm:$0xf]
        %v3564 = vld [vmem:[%s3562 + $0x4] sm:$0xf]
        %v3565 = vld [vmem:[%s3562 + $0x8] sm:$0xf]
        %v3566 = vld [vmem:[%s3562 + $0xc] sm:$0xf]
        %v3567 = vld [vmem:[%s3562 + $0x10] sm:$0xf]
        %v3568 = vld [vmem:[%s3562 + $0x14] sm:$0xf]
        %v3569 = vld [vmem:[%s3562 + $0x18] sm:$0xf]
        %v3570 = vld [vmem:[%s3562 + $0x1c] sm:$0xf]
        %v3571 = vld [vmem:[%s3562 + $0x20] sm:$0xf]
        %v3572 = vld [vmem:[%s3562 + $0x24] sm:$0xf]
        %v3573 = vld [vmem:[%s3562 + $0x28] sm:$0xf]
        %v3574 = vld [vmem:[%s3562 + $0x2c] sm:$0xf]
        %v3575 = vld [vmem:[%s3562 + $0x30] sm:$0xf]
        %v3576 = vld [vmem:[%s3562 + $0x34] sm:$0xf]
        %v3577 = vld [vmem:[%s3562 + $0x38] sm:$0xf]
        %v3578 = vld [vmem:[%s3562 + $0x3c] sm:$0xf]
        %v3627 = vunpack.c.l.b16 %v3495
        %v3628 = vunpack.c.l.b16 %v3496
        %v3629 = vunpack.c.l.b16 %v3497
        %v3630 = vunpack.c.l.b16 %v3498
        %v3631 = vunpack.c.l.b16 %v3499
        %v3632 = vunpack.c.l.b16 %v3500
        %v3633 = vunpack.c.l.b16 %v3501
        %v3634 = vunpack.c.l.b16 %v3502
        %v3635 = vunpack.c.l.b16 %v3503
        %v3636 = vunpack.c.l.b16 %v3504
        %v3637 = vunpack.c.l.b16 %v3505
        %v3638 = vunpack.c.l.b16 %v3506
        %v3639 = vunpack.c.l.b16 %v3507
        %v3640 = vunpack.c.l.b16 %v3508
        %v3641 = vunpack.c.l.b16 %v3509
        %v3642 = vunpack.c.l.b16 %v3510
        %v3643 = vunpack.c.l.b16 %v3511
        %v3644 = vunpack.c.l.b16 %v3512
        %v3645 = vunpack.c.l.b16 %v3513
        %v3646 = vunpack.c.l.b16 %v3514
        %v3647 = vunpack.c.l.b16 %v3515
        %v3648 = vunpack.c.l.b16 %v3516
        %v3649 = vunpack.c.l.b16 %v3517
        %v3650 = vunpack.c.l.b16 %v3518
        %v3651 = vunpack.c.l.b16 %v3519
        %v3652 = vunpack.c.l.b16 %v3520
        %v3653 = vunpack.c.l.b16 %v3521
        %v3654 = vunpack.c.l.b16 %v3522
        %v3655 = vunpack.c.l.b16 %v3523
        %v3656 = vunpack.c.l.b16 %v3524
        %v3657 = vunpack.c.l.b16 %v3525
        %v3658 = vunpack.c.l.b16 %v3526
        %v3659 = vunpack.c.l.b16 %v3527
        %v3660 = vunpack.c.l.b16 %v3528
        %v3661 = vunpack.c.l.b16 %v3529
        %v3662 = vunpack.c.l.b16 %v3530
        %v3663 = vunpack.c.l.b16 %v3531
        %v3664 = vunpack.c.l.b16 %v3532
        %v3665 = vunpack.c.l.b16 %v3533
        %v3666 = vunpack.c.l.b16 %v3534
        %v3667 = vunpack.c.l.b16 %v3535
        %v3668 = vunpack.c.l.b16 %v3536
        %v3669 = vunpack.c.l.b16 %v3537
        %v3670 = vunpack.c.l.b16 %v3538
        %v3671 = vunpack.c.l.b16 %v3539
        %v3672 = vunpack.c.l.b16 %v3540
        %v3673 = vunpack.c.l.b16 %v3541
        %v3674 = vunpack.c.l.b16 %v3542
        %v3675 = vpack.c.b16 %v3628, %v3627
        %v3676 = vpack.c.b16 %v3630, %v3629
        %v3677 = vpack.c.b16 %v3632, %v3631
        %v3678 = vpack.c.b16 %v3634, %v3633
        %v3679 = vpack.c.b16 %v3636, %v3635
        %v3680 = vpack.c.b16 %v3638, %v3637
        %v3681 = vpack.c.b16 %v3640, %v3639
        %v3682 = vpack.c.b16 %v3642, %v3641
        %v3683 = vpack.c.b16 %v3644, %v3643
        %v3684 = vpack.c.b16 %v3646, %v3645
        %v3685 = vpack.c.b16 %v3648, %v3647
        %v3686 = vpack.c.b16 %v3650, %v3649
        %v3687 = vpack.c.b16 %v3652, %v3651
        %v3688 = vpack.c.b16 %v3654, %v3653
        %v3689 = vpack.c.b16 %v3656, %v3655
        %v3690 = vpack.c.b16 %v3658, %v3657
        %v3691 = vpack.c.b16 %v3660, %v3659
        %v3692 = vpack.c.b16 %v3662, %v3661
        %v3693 = vpack.c.b16 %v3664, %v3663
        %v3694 = vpack.c.b16 %v3666, %v3665
        %v3695 = vpack.c.b16 %v3668, %v3667
        %v3696 = vpack.c.b16 %v3670, %v3669
        %v3697 = vpack.c.b16 %v3672, %v3671
        %v3698 = vpack.c.b16 %v3674, %v3673
        %v3739 = vunpack.c.l.b16 %v3563
        %v3740 = vunpack.c.l.b16 %v3564
        %v3741 = vunpack.c.l.b16 %v3565
        %v3742 = vunpack.c.l.b16 %v3566
        %v3743 = vunpack.c.l.b16 %v3567
        %v3744 = vunpack.c.l.b16 %v3568
        %v3745 = vunpack.c.l.b16 %v3569
        %v3746 = vunpack.c.l.b16 %v3570
        %v3747 = vunpack.c.l.b16 %v3571
        %v3748 = vunpack.c.l.b16 %v3572
        %v3749 = vunpack.c.l.b16 %v3573
        %v3750 = vunpack.c.l.b16 %v3574
        %v3751 = vunpack.c.l.b16 %v3575
        %v3752 = vunpack.c.l.b16 %v3576
        %v3753 = vunpack.c.l.b16 %v3577
        %v3754 = vunpack.c.l.b16 %v3578
        %v3755 = vpack.c.b16 %v3740, %v3739
        %v3756 = vpack.c.b16 %v3742, %v3741
        %v3757 = vpack.c.b16 %v3744, %v3743
        %v3758 = vpack.c.b16 %v3746, %v3745
        %v3759 = vpack.c.b16 %v3748, %v3747
        %v3760 = vpack.c.b16 %v3750, %v3749
        %v3761 = vpack.c.b16 %v3752, %v3751
        %v3762 = vpack.c.b16 %v3754, %v3753
        %3771 = vmatpush.bf16.msra.mxu0 %v3762
        %3772 = vmatpush.bf16.msra.mxu0 %v3761
        %3773 = vmatpush.bf16.msra.mxu0 %v3760
        %3774 = vmatpush.bf16.msra.mxu0 %v3759
        %3775 = vmatpush.bf16.msra.mxu0 %v3758
        %3776 = vmatpush.bf16.msra.mxu0 %v3757
        %3777 = vmatpush.bf16.msra.mxu0 %v3756
        %3778 = vmatpush.bf16.msra.mxu0 %v3755
        %3779 = vmatmul.bf16.gmra.mxu0 %v3675
        %v3780 = vpop.f32.mrf.mxu0
        %v3781 = vadd.f32 0.0, %v3780
        %v3782 = vpop.f32.mrf.mxu0
        %v3783 = vadd.f32 0.0, %v3782
        %3784 = vmatmul.bf16.gmra.mxu0 %v3676
        %v3785 = vpop.f32.mrf.mxu0
        %v3786 = vadd.f32 0.0, %v3785
        %v3787 = vpop.f32.mrf.mxu0
        %v3788 = vadd.f32 0.0, %v3787
        %3789 = vmatmul.bf16.gmra.mxu0 %v3677
        %v3790 = vpop.f32.mrf.mxu0
        %v3791 = vadd.f32 0.0, %v3790
        %v3792 = vpop.f32.mrf.mxu0
        %v3793 = vadd.f32 0.0, %v3792
        %3794 = vmatmul.bf16.gmra.mxu0 %v3678
        %v3795 = vpop.f32.mrf.mxu0
        %v3796 = vadd.f32 0.0, %v3795
        %v3797 = vpop.f32.mrf.mxu0
        %v3798 = vadd.f32 0.0, %v3797
        %3799 = vmatmul.bf16.gmra.mxu0 %v3679
        %v3800 = vpop.f32.mrf.mxu0
        %v3801 = vadd.f32 0.0, %v3800
        %v3802 = vpop.f32.mrf.mxu0
        %v3803 = vadd.f32 0.0, %v3802
        %3804 = vmatmul.bf16.gmra.mxu0 %v3680
        %v3805 = vpop.f32.mrf.mxu0
        %v3806 = vadd.f32 0.0, %v3805
        %v3807 = vpop.f32.mrf.mxu0
        %v3808 = vadd.f32 0.0, %v3807
        %3809 = vmatmul.bf16.gmra.mxu0 %v3681
        %v3810 = vpop.f32.mrf.mxu0
        %v3811 = vadd.f32 0.0, %v3810
        %v3812 = vpop.f32.mrf.mxu0
        %v3813 = vadd.f32 0.0, %v3812
        %3814 = vmatmul.bf16.gmra.mxu0 %v3682
        %v3815 = vpop.f32.mrf.mxu0
        %v3816 = vadd.f32 0.0, %v3815
        %v3817 = vpop.f32.mrf.mxu0
        %v3818 = vadd.f32 0.0, %v3817
        %3819 = vmatmul.bf16.gmra.mxu0 %v3683
        %v3820 = vpop.f32.mrf.mxu0
        %v3821 = vadd.f32 0.0, %v3820
        %v3822 = vpop.f32.mrf.mxu0
        %v3823 = vadd.f32 0.0, %v3822
        %3824 = vmatmul.bf16.gmra.mxu0 %v3684
        %v3825 = vpop.f32.mrf.mxu0
        %v3826 = vadd.f32 0.0, %v3825
        %v3827 = vpop.f32.mrf.mxu0
        %v3828 = vadd.f32 0.0, %v3827
        %3829 = vmatmul.bf16.gmra.mxu0 %v3685
        %v3830 = vpop.f32.mrf.mxu0
        %v3831 = vadd.f32 0.0, %v3830
        %v3832 = vpop.f32.mrf.mxu0
        %v3833 = vadd.f32 0.0, %v3832
        %3834 = vmatmul.bf16.gmra.mxu0 %v3686
        %v3835 = vpop.f32.mrf.mxu0
        %v3836 = vadd.f32 0.0, %v3835
        %v3837 = vpop.f32.mrf.mxu0
        %v3838 = vadd.f32 0.0, %v3837
        %3839 = vmatmul.bf16.gmra.mxu0 %v3687
        %v3840 = vpop.f32.mrf.mxu0
        %v3841 = vadd.f32 0.0, %v3840
        %v3842 = vpop.f32.mrf.mxu0
        %v3843 = vadd.f32 0.0, %v3842
        %3844 = vmatmul.bf16.gmra.mxu0 %v3688
        %v3845 = vpop.f32.mrf.mxu0
        %v3846 = vadd.f32 0.0, %v3845
        %v3847 = vpop.f32.mrf.mxu0
        %v3848 = vadd.f32 0.0, %v3847
        %3849 = vmatmul.bf16.gmra.mxu0 %v3689
        %v3850 = vpop.f32.mrf.mxu0
        %v3851 = vadd.f32 0.0, %v3850
        %v3852 = vpop.f32.mrf.mxu0
        %v3853 = vadd.f32 0.0, %v3852
        %3854 = vmatmul.bf16.gmra.mxu0 %v3690
        %v3855 = vpop.f32.mrf.mxu0
        %v3856 = vadd.f32 0.0, %v3855
        %v3857 = vpop.f32.mrf.mxu0
        %v3858 = vadd.f32 0.0, %v3857
        %3859 = vmatmul.bf16.gmra.mxu0 %v3691
        %v3860 = vpop.f32.mrf.mxu0
        %v3861 = vadd.f32 0.0, %v3860
        %v3862 = vpop.f32.mrf.mxu0
        %v3863 = vadd.f32 0.0, %v3862
        %3864 = vmatmul.bf16.gmra.mxu0 %v3692
        %v3865 = vpop.f32.mrf.mxu0
        %v3866 = vadd.f32 0.0, %v3865
        %v3867 = vpop.f32.mrf.mxu0
        %v3868 = vadd.f32 0.0, %v3867
        %3869 = vmatmul.bf16.gmra.mxu0 %v3693
        %v3870 = vpop.f32.mrf.mxu0
        %v3871 = vadd.f32 0.0, %v3870
        %v3872 = vpop.f32.mrf.mxu0
        %v3873 = vadd.f32 0.0, %v3872
        %3874 = vmatmul.bf16.gmra.mxu0 %v3694
        %v3875 = vpop.f32.mrf.mxu0
        %v3876 = vadd.f32 0.0, %v3875
        %v3877 = vpop.f32.mrf.mxu0
        %v3878 = vadd.f32 0.0, %v3877
        %3879 = vmatmul.bf16.gmra.mxu0 %v3695
        %v3880 = vpop.f32.mrf.mxu0
        %v3881 = vadd.f32 0.0, %v3880
        %v3882 = vpop.f32.mrf.mxu0
        %v3883 = vadd.f32 0.0, %v3882
        %3884 = vmatmul.bf16.gmra.mxu0 %v3696
        %v3885 = vpop.f32.mrf.mxu0
        %v3886 = vadd.f32 0.0, %v3885
        %v3887 = vpop.f32.mrf.mxu0
        %v3888 = vadd.f32 0.0, %v3887
        %3889 = vmatmul.bf16.gmra.mxu0 %v3697
        %v3890 = vpop.f32.mrf.mxu0
        %v3891 = vadd.f32 0.0, %v3890
        %v3892 = vpop.f32.mrf.mxu0
        %v3893 = vadd.f32 0.0, %v3892
        %3894 = vmatmul.bf16.gmra.mxu0 %v3698
        %v3895 = vpop.f32.mrf.mxu0
        %v3896 = vadd.f32 0.0, %v3895
        %v3897 = vpop.f32.mrf.mxu0
        %v3898 = vadd.f32 0.0, %v3897
        %3899 = vdwg.mxu0
        %v3903 = vunpack.c.l.b16 %v3492
        %v3904 = vunpack.c.l.b16 %v3493
        %v3905 = vunpack.c.l.b16 %v3494
        %v3906 = vpack.c.b16 %v3904, %v3903
        %v3907 = vpack.c.b16 %v3627, %v3905
        %v3908 = vpack.c.b16 %v3629, %v3628
        %v3909 = vpack.c.b16 %v3631, %v3630
        %v3910 = vpack.c.b16 %v3633, %v3632
        %v3911 = vpack.c.b16 %v3635, %v3634
        %v3912 = vpack.c.b16 %v3637, %v3636
        %v3913 = vpack.c.b16 %v3639, %v3638
        %v3914 = vpack.c.b16 %v3641, %v3640
        %v3915 = vpack.c.b16 %v3643, %v3642
        %v3916 = vpack.c.b16 %v3645, %v3644
        %v3917 = vpack.c.b16 %v3647, %v3646
        %v3918 = vpack.c.b16 %v3649, %v3648
        %v3919 = vpack.c.b16 %v3651, %v3650
        %v3920 = vpack.c.b16 %v3653, %v3652
        %v3921 = vpack.c.b16 %v3655, %v3654
        %v3922 = vpack.c.b16 %v3657, %v3656
        %v3923 = vpack.c.b16 %v3659, %v3658
        %v3924 = vpack.c.b16 %v3661, %v3660
        %v3925 = vpack.c.b16 %v3663, %v3662
        %v3926 = vpack.c.b16 %v3665, %v3664
        %v3927 = vpack.c.b16 %v3667, %v3666
        %v3928 = vpack.c.b16 %v3669, %v3668
        %v3929 = vpack.c.b16 %v3671, %v3670
        %v3970 = vunpack.c.l.b16 %v3546
        %v3971 = vunpack.c.l.b16 %v3547
        %v3972 = vunpack.c.l.b16 %v3548
        %v3973 = vunpack.c.l.b16 %v3549
        %v3974 = vunpack.c.l.b16 %v3550
        %v3975 = vunpack.c.l.b16 %v3551
        %v3976 = vunpack.c.l.b16 %v3552
        %v3977 = vunpack.c.l.b16 %v3553
        %v3978 = vunpack.c.l.b16 %v3554
        %v3979 = vunpack.c.l.b16 %v3555
        %v3980 = vunpack.c.l.b16 %v3556
        %v3981 = vunpack.c.l.b16 %v3557
        %v3982 = vunpack.c.l.b16 %v3558
        %v3983 = vunpack.c.l.b16 %v3559
        %v3984 = vunpack.c.l.b16 %v3560
        %v3985 = vunpack.c.l.b16 %v3561
        %v3986 = vpack.c.b16 %v3971, %v3970
        %v3987 = vpack.c.b16 %v3973, %v3972
        %v3988 = vpack.c.b16 %v3975, %v3974
        %v3989 = vpack.c.b16 %v3977, %v3976
        %v3990 = vpack.c.b16 %v3979, %v3978
        %v3991 = vpack.c.b16 %v3981, %v3980
        %v3992 = vpack.c.b16 %v3983, %v3982
        %v3993 = vpack.c.b16 %v3985, %v3984
        %4002 = vmatpush.bf16.msra.mxu0 %v3993
        %4003 = vmatpush.bf16.msra.mxu0 %v3992
        %4004 = vmatpush.bf16.msra.mxu0 %v3991
        %4005 = vmatpush.bf16.msra.mxu0 %v3990
        %4006 = vmatpush.bf16.msra.mxu0 %v3989
        %4007 = vmatpush.bf16.msra.mxu0 %v3988
        %4008 = vmatpush.bf16.msra.mxu0 %v3987
        %4009 = vmatpush.bf16.msra.mxu0 %v3986
        %4010 = vmatmul.bf16.gmra.mxu0 %v3906
        %v4011 = vpop.f32.mrf.mxu0
        %v4012 = vadd.f32 %v3781, %v4011
        %v4013 = vpop.f32.mrf.mxu0
        %v4014 = vadd.f32 %v3783, %v4013
        %4015 = vmatmul.bf16.gmra.mxu0 %v3907
        %v4016 = vpop.f32.mrf.mxu0
        %v4017 = vadd.f32 %v3786, %v4016
        %v4018 = vpop.f32.mrf.mxu0
        %v4019 = vadd.f32 %v3788, %v4018
        %4020 = vmatmul.bf16.gmra.mxu0 %v3908
        %v4021 = vpop.f32.mrf.mxu0
        %v4022 = vadd.f32 %v3791, %v4021
        %v4023 = vpop.f32.mrf.mxu0
        %v4024 = vadd.f32 %v3793, %v4023
        %4025 = vmatmul.bf16.gmra.mxu0 %v3909
        %v4026 = vpop.f32.mrf.mxu0
        %v4027 = vadd.f32 %v3796, %v4026
        %v4028 = vpop.f32.mrf.mxu0
        %v4029 = vadd.f32 %v3798, %v4028
        %4030 = vmatmul.bf16.gmra.mxu0 %v3910
        %v4031 = vpop.f32.mrf.mxu0
        %v4032 = vadd.f32 %v3801, %v4031
        %v4033 = vpop.f32.mrf.mxu0
        %v4034 = vadd.f32 %v3803, %v4033
        %4035 = vmatmul.bf16.gmra.mxu0 %v3911
        %v4036 = vpop.f32.mrf.mxu0
        %v4037 = vadd.f32 %v3806, %v4036
        %v4038 = vpop.f32.mrf.mxu0
        %v4039 = vadd.f32 %v3808, %v4038
        %4040 = vmatmul.bf16.gmra.mxu0 %v3912
        %v4041 = vpop.f32.mrf.mxu0
        %v4042 = vadd.f32 %v3811, %v4041
        %v4043 = vpop.f32.mrf.mxu0
        %v4044 = vadd.f32 %v3813, %v4043
        %4045 = vmatmul.bf16.gmra.mxu0 %v3913
        %v4046 = vpop.f32.mrf.mxu0
        %v4047 = vadd.f32 %v3816, %v4046
        %v4048 = vpop.f32.mrf.mxu0
        %v4049 = vadd.f32 %v3818, %v4048
        %4050 = vmatmul.bf16.gmra.mxu0 %v3914
        %v4051 = vpop.f32.mrf.mxu0
        %v4052 = vadd.f32 %v3821, %v4051
        %v4053 = vpop.f32.mrf.mxu0
        %v4054 = vadd.f32 %v3823, %v4053
        %4055 = vmatmul.bf16.gmra.mxu0 %v3915
        %v4056 = vpop.f32.mrf.mxu0
        %v4057 = vadd.f32 %v3826, %v4056
        %v4058 = vpop.f32.mrf.mxu0
        %v4059 = vadd.f32 %v3828, %v4058
        %4060 = vmatmul.bf16.gmra.mxu0 %v3916
        %v4061 = vpop.f32.mrf.mxu0
        %v4062 = vadd.f32 %v3831, %v4061
        %v4063 = vpop.f32.mrf.mxu0
        %v4064 = vadd.f32 %v3833, %v4063
        %4065 = vmatmul.bf16.gmra.mxu0 %v3917
        %v4066 = vpop.f32.mrf.mxu0
        %v4067 = vadd.f32 %v3836, %v4066
        %v4068 = vpop.f32.mrf.mxu0
        %v4069 = vadd.f32 %v3838, %v4068
        %4070 = vmatmul.bf16.gmra.mxu0 %v3918
        %v4071 = vpop.f32.mrf.mxu0
        %v4072 = vadd.f32 %v3841, %v4071
        %v4073 = vpop.f32.mrf.mxu0
        %v4074 = vadd.f32 %v3843, %v4073
        %4075 = vmatmul.bf16.gmra.mxu0 %v3919
        %v4076 = vpop.f32.mrf.mxu0
        %v4077 = vadd.f32 %v3846, %v4076
        %v4078 = vpop.f32.mrf.mxu0
        %v4079 = vadd.f32 %v3848, %v4078
        %4080 = vmatmul.bf16.gmra.mxu0 %v3920
        %v4081 = vpop.f32.mrf.mxu0
        %v4082 = vadd.f32 %v3851, %v4081
        %v4083 = vpop.f32.mrf.mxu0
        %v4084 = vadd.f32 %v3853, %v4083
        %4085 = vmatmul.bf16.gmra.mxu0 %v3921
        %v4086 = vpop.f32.mrf.mxu0
        %v4087 = vadd.f32 %v3856, %v4086
        %v4088 = vpop.f32.mrf.mxu0
        %v4089 = vadd.f32 %v3858, %v4088
        %4090 = vmatmul.bf16.gmra.mxu0 %v3922
        %v4091 = vpop.f32.mrf.mxu0
        %v4092 = vadd.f32 %v3861, %v4091
        %v4093 = vpop.f32.mrf.mxu0
        %v4094 = vadd.f32 %v3863, %v4093
        %4095 = vmatmul.bf16.gmra.mxu0 %v3923
        %v4096 = vpop.f32.mrf.mxu0
        %v4097 = vadd.f32 %v3866, %v4096
        %v4098 = vpop.f32.mrf.mxu0
        %v4099 = vadd.f32 %v3868, %v4098
        %4100 = vmatmul.bf16.gmra.mxu0 %v3924
        %v4101 = vpop.f32.mrf.mxu0
        %v4102 = vadd.f32 %v3871, %v4101
        %v4103 = vpop.f32.mrf.mxu0
        %v4104 = vadd.f32 %v3873, %v4103
        %4105 = vmatmul.bf16.gmra.mxu0 %v3925
        %v4106 = vpop.f32.mrf.mxu0
        %v4107 = vadd.f32 %v3876, %v4106
        %v4108 = vpop.f32.mrf.mxu0
        %v4109 = vadd.f32 %v3878, %v4108
        %4110 = vmatmul.bf16.gmra.mxu0 %v3926
        %v4111 = vpop.f32.mrf.mxu0
        %v4112 = vadd.f32 %v3881, %v4111
        %v4113 = vpop.f32.mrf.mxu0
        %v4114 = vadd.f32 %v3883, %v4113
        %4115 = vmatmul.bf16.gmra.mxu0 %v3927
        %v4116 = vpop.f32.mrf.mxu0
        %v4117 = vadd.f32 %v3886, %v4116
        %v4118 = vpop.f32.mrf.mxu0
        %v4119 = vadd.f32 %v3888, %v4118
        %4120 = vmatmul.bf16.gmra.mxu0 %v3928
        %v4121 = vpop.f32.mrf.mxu0
        %v4122 = vadd.f32 %v3891, %v4121
        %v4123 = vpop.f32.mrf.mxu0
        %v4124 = vadd.f32 %v3893, %v4123
        %4125 = vmatmul.bf16.gmra.mxu0 %v3929
        %v4126 = vpop.f32.mrf.mxu0
        %v4127 = vadd.f32 %v3896, %v4126
        %v4128 = vpop.f32.mrf.mxu0
        %v4129 = vadd.f32 %v3898, %v4128
        %4130 = vdwg.mxu0
        %s4131 = scalar_lea.vmem [#allocation7], 384
        %v4132 = vld [vmem:[%s4131] sm:$0xf]
        %v4133 = vld [vmem:[%s4131 + $0x4] sm:$0xf]
        %v4134 = vld [vmem:[%s4131 + $0x8] sm:$0xf]
        %v4135 = vld [vmem:[%s4131 + $0xc] sm:$0xf]
        %v4136 = vld [vmem:[%s4131 + $0x10] sm:$0xf]
        %v4137 = vld [vmem:[%s4131 + $0x14] sm:$0xf]
        %v4138 = vld [vmem:[%s4131 + $0x18] sm:$0xf]
        %v4139 = vld [vmem:[%s4131 + $0x1c] sm:$0xf]
        %v4140 = vld [vmem:[%s4131 + $0x20] sm:$0xf]
        %v4141 = vld [vmem:[%s4131 + $0x24] sm:$0xf]
        %v4142 = vld [vmem:[%s4131 + $0x28] sm:$0xf]
        %v4143 = vld [vmem:[%s4131 + $0x2c] sm:$0xf]
        %v4144 = vld [vmem:[%s4131 + $0x30] sm:$0xf]
        %v4145 = vld [vmem:[%s4131 + $0x34] sm:$0xf]
        %v4146 = vld [vmem:[%s4131 + $0x38] sm:$0xf]
        %v4147 = vld [vmem:[%s4131 + $0x3c] sm:$0xf]
        %v4151 = vunpack.c.l.b16 %v3543
        %v4152 = vunpack.c.l.b16 %v3544
        %v4153 = vunpack.c.l.b16 %v3545
        %v4154 = vpack.c.b16 %v3673, %v3672
        %v4155 = vpack.c.b16 %v4151, %v3674
        %v4156 = vpack.c.b16 %v4153, %v4152
        %v4176 = vunpack.c.l.b16 %v4132
        %v4177 = vunpack.c.l.b16 %v4133
        %v4178 = vunpack.c.l.b16 %v4134
        %v4179 = vunpack.c.l.b16 %v4135
        %v4180 = vunpack.c.l.b16 %v4136
        %v4181 = vunpack.c.l.b16 %v4137
        %v4182 = vunpack.c.l.b16 %v4138
        %v4183 = vunpack.c.l.b16 %v4139
        %v4184 = vunpack.c.l.b16 %v4140
        %v4185 = vunpack.c.l.b16 %v4141
        %v4186 = vunpack.c.l.b16 %v4142
        %v4187 = vunpack.c.l.b16 %v4143
        %v4188 = vunpack.c.l.b16 %v4144
        %v4189 = vunpack.c.l.b16 %v4145
        %v4190 = vunpack.c.l.b16 %v4146
        %v4191 = vunpack.c.l.b16 %v4147
        %v4192 = vpack.c.b16 %v4177, %v4176
        %v4193 = vpack.c.b16 %v4179, %v4178
        %v4194 = vpack.c.b16 %v4181, %v4180
        %v4195 = vpack.c.b16 %v4183, %v4182
        %v4196 = vpack.c.b16 %v4185, %v4184
        %v4197 = vpack.c.b16 %v4187, %v4186
        %v4198 = vpack.c.b16 %v4189, %v4188
        %v4199 = vpack.c.b16 %v4191, %v4190
        %4208 = vmatpush.bf16.msra.mxu0 %v4199
        %4209 = vmatpush.bf16.msra.mxu0 %v4198
        %4210 = vmatpush.bf16.msra.mxu0 %v4197
        %4211 = vmatpush.bf16.msra.mxu0 %v4196
        %4212 = vmatpush.bf16.msra.mxu0 %v4195
        %4213 = vmatpush.bf16.msra.mxu0 %v4194
        %4214 = vmatpush.bf16.msra.mxu0 %v4193
        %4215 = vmatpush.bf16.msra.mxu0 %v4192
        %4216 = vmatmul.bf16.gmra.mxu0 %v3909
        %v4217 = vpop.f32.mrf.mxu0
        %v4218 = vadd.f32 0.0, %v4217
        %v4219 = vpop.f32.mrf.mxu0
        %v4220 = vadd.f32 0.0, %v4219
        %4221 = vmatmul.bf16.gmra.mxu0 %v3910
        %v4222 = vpop.f32.mrf.mxu0
        %v4223 = vadd.f32 0.0, %v4222
        %v4224 = vpop.f32.mrf.mxu0
        %v4225 = vadd.f32 0.0, %v4224
        %4226 = vmatmul.bf16.gmra.mxu0 %v3911
        %v4227 = vpop.f32.mrf.mxu0
        %v4228 = vadd.f32 0.0, %v4227
        %v4229 = vpop.f32.mrf.mxu0
        %v4230 = vadd.f32 0.0, %v4229
        %4231 = vmatmul.bf16.gmra.mxu0 %v3912
        %v4232 = vpop.f32.mrf.mxu0
        %v4233 = vadd.f32 0.0, %v4232
        %v4234 = vpop.f32.mrf.mxu0
        %v4235 = vadd.f32 0.0, %v4234
        %4236 = vmatmul.bf16.gmra.mxu0 %v3913
        %v4237 = vpop.f32.mrf.mxu0
        %v4238 = vadd.f32 0.0, %v4237
        %v4239 = vpop.f32.mrf.mxu0
        %v4240 = vadd.f32 0.0, %v4239
        %4241 = vmatmul.bf16.gmra.mxu0 %v3914
        %v4242 = vpop.f32.mrf.mxu0
        %v4243 = vadd.f32 0.0, %v4242
        %v4244 = vpop.f32.mrf.mxu0
        %v4245 = vadd.f32 0.0, %v4244
        %4246 = vmatmul.bf16.gmra.mxu0 %v3915
        %v4247 = vpop.f32.mrf.mxu0
        %v4248 = vadd.f32 0.0, %v4247
        %v4249 = vpop.f32.mrf.mxu0
        %v4250 = vadd.f32 0.0, %v4249
        %4251 = vmatmul.bf16.gmra.mxu0 %v3916
        %v4252 = vpop.f32.mrf.mxu0
        %v4253 = vadd.f32 0.0, %v4252
        %v4254 = vpop.f32.mrf.mxu0
        %v4255 = vadd.f32 0.0, %v4254
        %4256 = vmatmul.bf16.gmra.mxu0 %v3917
        %v4257 = vpop.f32.mrf.mxu0
        %v4258 = vadd.f32 0.0, %v4257
        %v4259 = vpop.f32.mrf.mxu0
        %v4260 = vadd.f32 0.0, %v4259
        %4261 = vmatmul.bf16.gmra.mxu0 %v3918
        %v4262 = vpop.f32.mrf.mxu0
        %v4263 = vadd.f32 0.0, %v4262
        %v4264 = vpop.f32.mrf.mxu0
        %v4265 = vadd.f32 0.0, %v4264
        %4266 = vmatmul.bf16.gmra.mxu0 %v3919
        %v4267 = vpop.f32.mrf.mxu0
        %v4268 = vadd.f32 0.0, %v4267
        %v4269 = vpop.f32.mrf.mxu0
        %v4270 = vadd.f32 0.0, %v4269
        %4271 = vmatmul.bf16.gmra.mxu0 %v3920
        %v4272 = vpop.f32.mrf.mxu0
        %v4273 = vadd.f32 0.0, %v4272
        %v4274 = vpop.f32.mrf.mxu0
        %v4275 = vadd.f32 0.0, %v4274
        %4276 = vmatmul.bf16.gmra.mxu0 %v3921
        %v4277 = vpop.f32.mrf.mxu0
        %v4278 = vadd.f32 0.0, %v4277
        %v4279 = vpop.f32.mrf.mxu0
        %v4280 = vadd.f32 0.0, %v4279
        %4281 = vmatmul.bf16.gmra.mxu0 %v3922
        %v4282 = vpop.f32.mrf.mxu0
        %v4283 = vadd.f32 0.0, %v4282
        %v4284 = vpop.f32.mrf.mxu0
        %v4285 = vadd.f32 0.0, %v4284
        %4286 = vmatmul.bf16.gmra.mxu0 %v3923
        %v4287 = vpop.f32.mrf.mxu0
        %v4288 = vadd.f32 0.0, %v4287
        %v4289 = vpop.f32.mrf.mxu0
        %v4290 = vadd.f32 0.0, %v4289
        %4291 = vmatmul.bf16.gmra.mxu0 %v3924
        %v4292 = vpop.f32.mrf.mxu0
        %v4293 = vadd.f32 0.0, %v4292
        %v4294 = vpop.f32.mrf.mxu0
        %v4295 = vadd.f32 0.0, %v4294
        %4296 = vmatmul.bf16.gmra.mxu0 %v3925
        %v4297 = vpop.f32.mrf.mxu0
        %v4298 = vadd.f32 0.0, %v4297
        %v4299 = vpop.f32.mrf.mxu0
        %v4300 = vadd.f32 0.0, %v4299
        %4301 = vmatmul.bf16.gmra.mxu0 %v3926
        %v4302 = vpop.f32.mrf.mxu0
        %v4303 = vadd.f32 0.0, %v4302
        %v4304 = vpop.f32.mrf.mxu0
        %v4305 = vadd.f32 0.0, %v4304
        %4306 = vmatmul.bf16.gmra.mxu0 %v3927
        %v4307 = vpop.f32.mrf.mxu0
        %v4308 = vadd.f32 0.0, %v4307
        %v4309 = vpop.f32.mrf.mxu0
        %v4310 = vadd.f32 0.0, %v4309
        %4311 = vmatmul.bf16.gmra.mxu0 %v3928
        %v4312 = vpop.f32.mrf.mxu0
        %v4313 = vadd.f32 0.0, %v4312
        %v4314 = vpop.f32.mrf.mxu0
        %v4315 = vadd.f32 0.0, %v4314
        %4316 = vmatmul.bf16.gmra.mxu0 %v3929
        %v4317 = vpop.f32.mrf.mxu0
        %v4318 = vadd.f32 0.0, %v4317
        %v4319 = vpop.f32.mrf.mxu0
        %v4320 = vadd.f32 0.0, %v4319
        %4321 = vmatmul.bf16.gmra.mxu0 %v4154
        %v4322 = vpop.f32.mrf.mxu0
        %v4323 = vadd.f32 0.0, %v4322
        %v4324 = vpop.f32.mrf.mxu0
        %v4325 = vadd.f32 0.0, %v4324
        %4326 = vmatmul.bf16.gmra.mxu0 %v4155
        %v4327 = vpop.f32.mrf.mxu0
        %v4328 = vadd.f32 0.0, %v4327
        %v4329 = vpop.f32.mrf.mxu0
        %v4330 = vadd.f32 0.0, %v4329
        %4331 = vmatmul.bf16.gmra.mxu0 %v4156
        %v4332 = vpop.f32.mrf.mxu0
        %v4333 = vadd.f32 0.0, %v4332
        %v4334 = vpop.f32.mrf.mxu0
        %v4335 = vadd.f32 0.0, %v4334
        %4336 = vdwg.mxu0
        %v4337 = vadd.f32 %v4012, %v4218
        %v4338 = vadd.f32 %v4014, %v4220
        %v4339 = vadd.f32 %v4017, %v4223
        %v4340 = vadd.f32 %v4019, %v4225
        %v4341 = vadd.f32 %v4022, %v4228
        %v4342 = vadd.f32 %v4024, %v4230
        %v4343 = vadd.f32 %v4027, %v4233
        %v4344 = vadd.f32 %v4029, %v4235
        %v4345 = vadd.f32 %v4032, %v4238
        %v4346 = vadd.f32 %v4034, %v4240
        %v4347 = vadd.f32 %v4037, %v4243
        %v4348 = vadd.f32 %v4039, %v4245
        %v4349 = vadd.f32 %v4042, %v4248
        %v4350 = vadd.f32 %v4044, %v4250
        %v4351 = vadd.f32 %v4047, %v4253
        %v4352 = vadd.f32 %v4049, %v4255
        %v4353 = vadd.f32 %v4052, %v4258
        %v4354 = vadd.f32 %v4054, %v4260
        %v4355 = vadd.f32 %v4057, %v4263
        %v4356 = vadd.f32 %v4059, %v4265
        %v4357 = vadd.f32 %v4062, %v4268
        %v4358 = vadd.f32 %v4064, %v4270
        %v4359 = vadd.f32 %v4067, %v4273
        %v4360 = vadd.f32 %v4069, %v4275
        %v4361 = vadd.f32 %v4072, %v4278
        %v4362 = vadd.f32 %v4074, %v4280
        %v4363 = vadd.f32 %v4077, %v4283
        %v4364 = vadd.f32 %v4079, %v4285
        %v4365 = vadd.f32 %v4082, %v4288
        %v4366 = vadd.f32 %v4084, %v4290
        %v4367 = vadd.f32 %v4087, %v4293
        %v4368 = vadd.f32 %v4089, %v4295
        %v4369 = vadd.f32 %v4092, %v4298
        %v4370 = vadd.f32 %v4094, %v4300
        %v4371 = vadd.f32 %v4097, %v4303
        %v4372 = vadd.f32 %v4099, %v4305
        %v4373 = vadd.f32 %v4102, %v4308
        %v4374 = vadd.f32 %v4104, %v4310
        %v4375 = vadd.f32 %v4107, %v4313
        %v4376 = vadd.f32 %v4109, %v4315
        %v4377 = vadd.f32 %v4112, %v4318
        %v4378 = vadd.f32 %v4114, %v4320
        %v4379 = vadd.f32 %v4117, %v4323
        %v4380 = vadd.f32 %v4119, %v4325
        %v4381 = vadd.f32 %v4122, %v4328
        %v4382 = vadd.f32 %v4124, %v4330
        %v4383 = vadd.f32 %v4127, %v4333
        %v4384 = vadd.f32 %v4129, %v4335
        %s4385 = scalar_lea.vmem [#allocation7], 64
        %v4386 = vld [vmem:[%s4385] sm:$0xf]
        %v4387 = vld [vmem:[%s4385 + $0x4] sm:$0xf]
        %v4388 = vld [vmem:[%s4385 + $0x8] sm:$0xf]
        %v4389 = vld [vmem:[%s4385 + $0xc] sm:$0xf]
        %v4390 = vld [vmem:[%s4385 + $0x10] sm:$0xf]
        %v4391 = vld [vmem:[%s4385 + $0x14] sm:$0xf]
        %v4392 = vld [vmem:[%s4385 + $0x18] sm:$0xf]
        %v4393 = vld [vmem:[%s4385 + $0x1c] sm:$0xf]
        %v4394 = vld [vmem:[%s4385 + $0x20] sm:$0xf]
        %v4395 = vld [vmem:[%s4385 + $0x24] sm:$0xf]
        %v4396 = vld [vmem:[%s4385 + $0x28] sm:$0xf]
        %v4397 = vld [vmem:[%s4385 + $0x2c] sm:$0xf]
        %v4398 = vld [vmem:[%s4385 + $0x30] sm:$0xf]
        %v4399 = vld [vmem:[%s4385 + $0x34] sm:$0xf]
        %v4400 = vld [vmem:[%s4385 + $0x38] sm:$0xf]
        %v4401 = vld [vmem:[%s4385 + $0x3c] sm:$0xf]
        %s4402 = scalar_lea.vmem [#allocation7], 256
        %v4403 = vld [vmem:[%s4402] sm:$0xf]
        %v4404 = vld [vmem:[%s4402 + $0x4] sm:$0xf]
        %v4405 = vld [vmem:[%s4402 + $0x8] sm:$0xf]
        %v4406 = vld [vmem:[%s4402 + $0xc] sm:$0xf]
        %v4407 = vld [vmem:[%s4402 + $0x10] sm:$0xf]
        %v4408 = vld [vmem:[%s4402 + $0x14] sm:$0xf]
        %v4409 = vld [vmem:[%s4402 + $0x18] sm:$0xf]
        %v4410 = vld [vmem:[%s4402 + $0x1c] sm:$0xf]
        %v4411 = vld [vmem:[%s4402 + $0x20] sm:$0xf]
        %v4412 = vld [vmem:[%s4402 + $0x24] sm:$0xf]
        %v4413 = vld [vmem:[%s4402 + $0x28] sm:$0xf]
        %v4414 = vld [vmem:[%s4402 + $0x2c] sm:$0xf]
        %v4415 = vld [vmem:[%s4402 + $0x30] sm:$0xf]
        %v4416 = vld [vmem:[%s4402 + $0x34] sm:$0xf]
        %v4417 = vld [vmem:[%s4402 + $0x38] sm:$0xf]
        %v4418 = vld [vmem:[%s4402 + $0x3c] sm:$0xf]
        %v4435 = vunpack.c.l.b16 %v4403
        %v4436 = vunpack.c.l.b16 %v4404
        %v4437 = vunpack.c.l.b16 %v4405
        %v4438 = vunpack.c.l.b16 %v4406
        %v4439 = vunpack.c.l.b16 %v4407
        %v4440 = vunpack.c.l.b16 %v4408
        %v4441 = vunpack.c.l.b16 %v4409
        %v4442 = vunpack.c.l.b16 %v4410
        %v4443 = vunpack.c.l.b16 %v4411
        %v4444 = vunpack.c.l.b16 %v4412
        %v4445 = vunpack.c.l.b16 %v4413
        %v4446 = vunpack.c.l.b16 %v4414
        %v4447 = vunpack.c.l.b16 %v4415
        %v4448 = vunpack.c.l.b16 %v4416
        %v4449 = vunpack.c.l.b16 %v4417
        %v4450 = vunpack.c.l.b16 %v4418
        %v4451 = vpack.c.b16 %v4436, %v4435
        %v4452 = vpack.c.b16 %v4438, %v4437
        %v4453 = vpack.c.b16 %v4440, %v4439
        %v4454 = vpack.c.b16 %v4442, %v4441
        %v4455 = vpack.c.b16 %v4444, %v4443
        %v4456 = vpack.c.b16 %v4446, %v4445
        %v4457 = vpack.c.b16 %v4448, %v4447
        %v4458 = vpack.c.b16 %v4450, %v4449
        %4467 = vmatpush.bf16.msra.mxu0 %v4458
        %4468 = vmatpush.bf16.msra.mxu0 %v4457
        %4469 = vmatpush.bf16.msra.mxu0 %v4456
        %4470 = vmatpush.bf16.msra.mxu0 %v4455
        %4471 = vmatpush.bf16.msra.mxu0 %v4454
        %4472 = vmatpush.bf16.msra.mxu0 %v4453
        %4473 = vmatpush.bf16.msra.mxu0 %v4452
        %4474 = vmatpush.bf16.msra.mxu0 %v4451
        %4475 = vmatmul.bf16.gmra.mxu0 %v3675
        %v4476 = vpop.f32.mrf.mxu0
        %v4477 = vadd.f32 0.0, %v4476
        %v4478 = vpop.f32.mrf.mxu0
        %v4479 = vadd.f32 0.0, %v4478
        %4480 = vmatmul.bf16.gmra.mxu0 %v3676
        %v4481 = vpop.f32.mrf.mxu0
        %v4482 = vpop.f32.mrf.mxu0
        %v4483 = vadd.f32 0.0, %v4482
        %4484 = vmatmul.bf16.gmra.mxu0 %v3677
        %v4485 = vpop.f32.mrf.mxu0
        %v4486 = vadd.f32 0.0, %v4485
        %v4487 = vpop.f32.mrf.mxu0
        %4488 = vmatmul.bf16.gmra.mxu0 %v3678
        %v4489 = vpop.f32.mrf.mxu0
        %v4490 = vadd.f32 0.0, %v4489
        %v4491 = vpop.f32.mrf.mxu0
        %v4492 = vadd.f32 0.0, %v4491
        %4493 = vmatmul.bf16.gmra.mxu0 %v3679
        %v4494 = vpop.f32.mrf.mxu0
        %v4495 = vpop.f32.mrf.mxu0
        %v4496 = vadd.f32 0.0, %v4495
        %4497 = vmatmul.bf16.gmra.mxu0 %v3680
        %v4498 = vpop.f32.mrf.mxu0
        %v4499 = vadd.f32 0.0, %v4498
        %v4500 = vpop.f32.mrf.mxu0
        %4501 = vmatmul.bf16.gmra.mxu0 %v3681
        %v4502 = vpop.f32.mrf.mxu0
        %v4503 = vadd.f32 0.0, %v4502
        %v4504 = vpop.f32.mrf.mxu0
        %v4505 = vadd.f32 0.0, %v4504
        %4506 = vmatmul.bf16.gmra.mxu0 %v3682
        %v4507 = vpop.f32.mrf.mxu0
        %v4508 = vpop.f32.mrf.mxu0
        %v4509 = vadd.f32 0.0, %v4508
        %4510 = vmatmul.bf16.gmra.mxu0 %v3683
        %v4511 = vpop.f32.mrf.mxu0
        %v4512 = vadd.f32 0.0, %v4511
        %v4513 = vpop.f32.mrf.mxu0
        %4514 = vmatmul.bf16.gmra.mxu0 %v3684
        %v4515 = vpop.f32.mrf.mxu0
        %v4516 = vadd.f32 0.0, %v4515
        %v4517 = vpop.f32.mrf.mxu0
        %v4518 = vadd.f32 0.0, %v4517
        %4519 = vmatmul.bf16.gmra.mxu0 %v3685
        %v4520 = vpop.f32.mrf.mxu0
        %v4521 = vpop.f32.mrf.mxu0
        %v4522 = vadd.f32 0.0, %v4521
        %4523 = vmatmul.bf16.gmra.mxu0 %v3686
        %v4524 = vpop.f32.mrf.mxu0
        %v4525 = vadd.f32 0.0, %v4524
        %v4526 = vpop.f32.mrf.mxu0
        %4527 = vmatmul.bf16.gmra.mxu0 %v3687
        %v4528 = vpop.f32.mrf.mxu0
        %v4529 = vadd.f32 0.0, %v4528
        %v4530 = vpop.f32.mrf.mxu0
        %v4531 = vadd.f32 0.0, %v4530
        %4532 = vmatmul.bf16.gmra.mxu0 %v3688
        %v4533 = vpop.f32.mrf.mxu0
        %v4534 = vpop.f32.mrf.mxu0
        %v4535 = vadd.f32 0.0, %v4534
        %4536 = vmatmul.bf16.gmra.mxu0 %v3689
        %v4537 = vpop.f32.mrf.mxu0
        %v4538 = vadd.f32 0.0, %v4537
        %v4539 = vpop.f32.mrf.mxu0
        %4540 = vmatmul.bf16.gmra.mxu0 %v3690
        %v4541 = vpop.f32.mrf.mxu0
        %v4542 = vadd.f32 0.0, %v4541
        %v4543 = vpop.f32.mrf.mxu0
        %v4544 = vadd.f32 0.0, %v4543
        %4545 = vmatmul.bf16.gmra.mxu0 %v3691
        %v4546 = vpop.f32.mrf.mxu0
        %v4547 = vpop.f32.mrf.mxu0
        %v4548 = vadd.f32 0.0, %v4547
        %4549 = vmatmul.bf16.gmra.mxu0 %v3692
        %v4550 = vpop.f32.mrf.mxu0
        %v4551 = vadd.f32 0.0, %v4550
        %v4552 = vpop.f32.mrf.mxu0
        %4553 = vmatmul.bf16.gmra.mxu0 %v3693
        %v4554 = vpop.f32.mrf.mxu0
        %v4555 = vadd.f32 0.0, %v4554
        %v4556 = vpop.f32.mrf.mxu0
        %v4557 = vadd.f32 0.0, %v4556
        %4558 = vmatmul.bf16.gmra.mxu0 %v3694
        %v4559 = vpop.f32.mrf.mxu0
        %v4560 = vpop.f32.mrf.mxu0
        %v4561 = vadd.f32 0.0, %v4560
        %4562 = vmatmul.bf16.gmra.mxu0 %v3695
        %v4563 = vpop.f32.mrf.mxu0
        %v4564 = vadd.f32 0.0, %v4563
        %v4565 = vpop.f32.mrf.mxu0
        %4566 = vmatmul.bf16.gmra.mxu0 %v3696
        %v4567 = vpop.f32.mrf.mxu0
        %v4568 = vadd.f32 0.0, %v4567
        %v4569 = vpop.f32.mrf.mxu0
        %v4570 = vadd.f32 0.0, %v4569
        %4571 = vmatmul.bf16.gmra.mxu0 %v3697
        %v4572 = vpop.f32.mrf.mxu0
        %v4573 = vpop.f32.mrf.mxu0
        %v4574 = vadd.f32 0.0, %v4573
        %4575 = vmatmul.bf16.gmra.mxu0 %v3698
        %v4576 = vpop.f32.mrf.mxu0
        %v4577 = vadd.f32 0.0, %v4576
        %v4578 = vpop.f32.mrf.mxu0
        %4579 = vdwg.mxu0
        %v4596 = vunpack.c.l.b16 %v4386
        %v4597 = vunpack.c.l.b16 %v4387
        %v4598 = vunpack.c.l.b16 %v4388
        %v4599 = vunpack.c.l.b16 %v4389
        %v4600 = vunpack.c.l.b16 %v4390
        %v4601 = vunpack.c.l.b16 %v4391
        %v4602 = vunpack.c.l.b16 %v4392
        %v4603 = vunpack.c.l.b16 %v4393
        %v4604 = vunpack.c.l.b16 %v4394
        %v4605 = vunpack.c.l.b16 %v4395
        %v4606 = vunpack.c.l.b16 %v4396
        %v4607 = vunpack.c.l.b16 %v4397
        %v4608 = vunpack.c.l.b16 %v4398
        %v4609 = vunpack.c.l.b16 %v4399
        %v4610 = vunpack.c.l.b16 %v4400
        %v4611 = vunpack.c.l.b16 %v4401
        %v4612 = vpack.c.b16 %v4597, %v4596
        %v4613 = vpack.c.b16 %v4599, %v4598
        %v4614 = vpack.c.b16 %v4601, %v4600
        %v4615 = vpack.c.b16 %v4603, %v4602
        %v4616 = vpack.c.b16 %v4605, %v4604
        %v4617 = vpack.c.b16 %v4607, %v4606
        %v4618 = vpack.c.b16 %v4609, %v4608
        %v4619 = vpack.c.b16 %v4611, %v4610
        %4628 = vmatpush.bf16.msra.mxu0 %v4619
        %4629 = vmatpush.bf16.msra.mxu0 %v4618
        %4630 = vmatpush.bf16.msra.mxu0 %v4617
        %4631 = vmatpush.bf16.msra.mxu0 %v4616
        %4632 = vmatpush.bf16.msra.mxu0 %v4615
        %4633 = vmatpush.bf16.msra.mxu0 %v4614
        %4634 = vmatpush.bf16.msra.mxu0 %v4613
        %4635 = vmatpush.bf16.msra.mxu0 %v4612
        %4636 = vmatmul.bf16.gmra.mxu0 %v3906
        %v4637 = vpop.f32.mrf.mxu0
        %v4638 = vadd.f32 %v4477, %v4637
        %v4639 = vpop.f32.mrf.mxu0
        %v4640 = vadd.f32 %v4479, %v4639
        %4641 = vmatmul.bf16.gmra.mxu0 %v3907
        %v4642 = vpop.f32.mrf.mxu0
        %v4643 = vpop.f32.mrf.mxu0
        %v4644 = vadd.f32 %v4483, %v4643
        %4645 = vmatmul.bf16.gmra.mxu0 %v3908
        %v4646 = vpop.f32.mrf.mxu0
        %v4647 = vadd.f32 %v4486, %v4646
        %v4648 = vpop.f32.mrf.mxu0
        %4649 = vmatmul.bf16.gmra.mxu0 %v3909
        %v4650 = vpop.f32.mrf.mxu0
        %v4651 = vadd.f32 %v4490, %v4650
        %v4652 = vpop.f32.mrf.mxu0
        %v4653 = vadd.f32 %v4492, %v4652
        %4654 = vmatmul.bf16.gmra.mxu0 %v3910
        %v4655 = vpop.f32.mrf.mxu0
        %v4656 = vpop.f32.mrf.mxu0
        %v4657 = vadd.f32 %v4496, %v4656
        %4658 = vmatmul.bf16.gmra.mxu0 %v3911
        %v4659 = vpop.f32.mrf.mxu0
        %v4660 = vadd.f32 %v4499, %v4659
        %v4661 = vpop.f32.mrf.mxu0
        %4662 = vmatmul.bf16.gmra.mxu0 %v3912
        %v4663 = vpop.f32.mrf.mxu0
        %v4664 = vadd.f32 %v4503, %v4663
        %v4665 = vpop.f32.mrf.mxu0
        %v4666 = vadd.f32 %v4505, %v4665
        %4667 = vmatmul.bf16.gmra.mxu0 %v3913
        %v4668 = vpop.f32.mrf.mxu0
        %v4669 = vpop.f32.mrf.mxu0
        %v4670 = vadd.f32 %v4509, %v4669
        %4671 = vmatmul.bf16.gmra.mxu0 %v3914
        %v4672 = vpop.f32.mrf.mxu0
        %v4673 = vadd.f32 %v4512, %v4672
        %v4674 = vpop.f32.mrf.mxu0
        %4675 = vmatmul.bf16.gmra.mxu0 %v3915
        %v4676 = vpop.f32.mrf.mxu0
        %v4677 = vadd.f32 %v4516, %v4676
        %v4678 = vpop.f32.mrf.mxu0
        %v4679 = vadd.f32 %v4518, %v4678
        %4680 = vmatmul.bf16.gmra.mxu0 %v3916
        %v4681 = vpop.f32.mrf.mxu0
        %v4682 = vpop.f32.mrf.mxu0
        %v4683 = vadd.f32 %v4522, %v4682
        %4684 = vmatmul.bf16.gmra.mxu0 %v3917
        %v4685 = vpop.f32.mrf.mxu0
        %v4686 = vadd.f32 %v4525, %v4685
        %v4687 = vpop.f32.mrf.mxu0
        %4688 = vmatmul.bf16.gmra.mxu0 %v3918
        %v4689 = vpop.f32.mrf.mxu0
        %v4690 = vadd.f32 %v4529, %v4689
        %v4691 = vpop.f32.mrf.mxu0
        %v4692 = vadd.f32 %v4531, %v4691
        %4693 = vmatmul.bf16.gmra.mxu0 %v3919
        %v4694 = vpop.f32.mrf.mxu0
        %v4695 = vpop.f32.mrf.mxu0
        %v4696 = vadd.f32 %v4535, %v4695
        %4697 = vmatmul.bf16.gmra.mxu0 %v3920
        %v4698 = vpop.f32.mrf.mxu0
        %v4699 = vadd.f32 %v4538, %v4698
        %v4700 = vpop.f32.mrf.mxu0
        %4701 = vmatmul.bf16.gmra.mxu0 %v3921
        %v4702 = vpop.f32.mrf.mxu0
        %v4703 = vadd.f32 %v4542, %v4702
        %v4704 = vpop.f32.mrf.mxu0
        %v4705 = vadd.f32 %v4544, %v4704
        %4706 = vmatmul.bf16.gmra.mxu0 %v3922
        %v4707 = vpop.f32.mrf.mxu0
        %v4708 = vpop.f32.mrf.mxu0
        %v4709 = vadd.f32 %v4548, %v4708
        %4710 = vmatmul.bf16.gmra.mxu0 %v3923
        %v4711 = vpop.f32.mrf.mxu0
        %v4712 = vadd.f32 %v4551, %v4711
        %v4713 = vpop.f32.mrf.mxu0
        %4714 = vmatmul.bf16.gmra.mxu0 %v3924
        %v4715 = vpop.f32.mrf.mxu0
        %v4716 = vadd.f32 %v4555, %v4715
        %v4717 = vpop.f32.mrf.mxu0
        %v4718 = vadd.f32 %v4557, %v4717
        %4719 = vmatmul.bf16.gmra.mxu0 %v3925
        %v4720 = vpop.f32.mrf.mxu0
        %v4721 = vpop.f32.mrf.mxu0
        %v4722 = vadd.f32 %v4561, %v4721
        %4723 = vmatmul.bf16.gmra.mxu0 %v3926
        %v4724 = vpop.f32.mrf.mxu0
        %v4725 = vadd.f32 %v4564, %v4724
        %v4726 = vpop.f32.mrf.mxu0
        %4727 = vmatmul.bf16.gmra.mxu0 %v3927
        %v4728 = vpop.f32.mrf.mxu0
        %v4729 = vadd.f32 %v4568, %v4728
        %v4730 = vpop.f32.mrf.mxu0
        %v4731 = vadd.f32 %v4570, %v4730
        %4732 = vmatmul.bf16.gmra.mxu0 %v3928
        %v4733 = vpop.f32.mrf.mxu0
        %v4734 = vpop.f32.mrf.mxu0
        %v4735 = vadd.f32 %v4574, %v4734
        %4736 = vmatmul.bf16.gmra.mxu0 %v3929
        %v4737 = vpop.f32.mrf.mxu0
        %v4738 = vadd.f32 %v4577, %v4737
        %v4739 = vpop.f32.mrf.mxu0
        %4740 = vdwg.mxu0
        %s4741 = scalar_lea.vmem [#allocation7], 448
        %v4742 = vld [vmem:[%s4741] sm:$0xf]
        %v4743 = vld [vmem:[%s4741 + $0x4] sm:$0xf]
        %v4744 = vld [vmem:[%s4741 + $0x8] sm:$0xf]
        %v4745 = vld [vmem:[%s4741 + $0xc] sm:$0xf]
        %v4746 = vld [vmem:[%s4741 + $0x10] sm:$0xf]
        %v4747 = vld [vmem:[%s4741 + $0x14] sm:$0xf]
        %v4748 = vld [vmem:[%s4741 + $0x18] sm:$0xf]
        %v4749 = vld [vmem:[%s4741 + $0x1c] sm:$0xf]
        %v4750 = vld [vmem:[%s4741 + $0x20] sm:$0xf]
        %v4751 = vld [vmem:[%s4741 + $0x24] sm:$0xf]
        %v4752 = vld [vmem:[%s4741 + $0x28] sm:$0xf]
        %v4753 = vld [vmem:[%s4741 + $0x2c] sm:$0xf]
        %v4754 = vld [vmem:[%s4741 + $0x30] sm:$0xf]
        %v4755 = vld [vmem:[%s4741 + $0x34] sm:$0xf]
        %v4756 = vld [vmem:[%s4741 + $0x38] sm:$0xf]
        %v4757 = vld [vmem:[%s4741 + $0x3c] sm:$0xf]
        %v4774 = vunpack.c.l.b16 %v4742
        %v4775 = vunpack.c.l.b16 %v4743
        %v4776 = vunpack.c.l.b16 %v4744
        %v4777 = vunpack.c.l.b16 %v4745
        %v4778 = vunpack.c.l.b16 %v4746
        %v4779 = vunpack.c.l.b16 %v4747
        %v4780 = vunpack.c.l.b16 %v4748
        %v4781 = vunpack.c.l.b16 %v4749
        %v4782 = vunpack.c.l.b16 %v4750
        %v4783 = vunpack.c.l.b16 %v4751
        %v4784 = vunpack.c.l.b16 %v4752
        %v4785 = vunpack.c.l.b16 %v4753
        %v4786 = vunpack.c.l.b16 %v4754
        %v4787 = vunpack.c.l.b16 %v4755
        %v4788 = vunpack.c.l.b16 %v4756
        %v4789 = vunpack.c.l.b16 %v4757
        %v4790 = vpack.c.b16 %v4775, %v4774
        %v4791 = vpack.c.b16 %v4777, %v4776
        %v4792 = vpack.c.b16 %v4779, %v4778
        %v4793 = vpack.c.b16 %v4781, %v4780
        %v4794 = vpack.c.b16 %v4783, %v4782
        %v4795 = vpack.c.b16 %v4785, %v4784
        %v4796 = vpack.c.b16 %v4787, %v4786
        %v4797 = vpack.c.b16 %v4789, %v4788
        %4806 = vmatpush.bf16.msra.mxu0 %v4797
        %4807 = vmatpush.bf16.msra.mxu0 %v4796
        %4808 = vmatpush.bf16.msra.mxu0 %v4795
        %4809 = vmatpush.bf16.msra.mxu0 %v4794
        %4810 = vmatpush.bf16.msra.mxu0 %v4793
        %4811 = vmatpush.bf16.msra.mxu0 %v4792
        %4812 = vmatpush.bf16.msra.mxu0 %v4791
        %4813 = vmatpush.bf16.msra.mxu0 %v4790
        %4814 = vmatmul.bf16.gmra.mxu0 %v3909
        %v4815 = vpop.f32.mrf.mxu0
        %v4816 = vadd.f32 0.0, %v4815
        %v4817 = vpop.f32.mrf.mxu0
        %v4818 = vadd.f32 0.0, %v4817
        %4819 = vmatmul.bf16.gmra.mxu0 %v3910
        %v4820 = vpop.f32.mrf.mxu0
        %v4821 = vpop.f32.mrf.mxu0
        %v4822 = vadd.f32 0.0, %v4821
        %4823 = vmatmul.bf16.gmra.mxu0 %v3911
        %v4824 = vpop.f32.mrf.mxu0
        %v4825 = vadd.f32 0.0, %v4824
        %v4826 = vpop.f32.mrf.mxu0
        %4827 = vmatmul.bf16.gmra.mxu0 %v3912
        %v4828 = vpop.f32.mrf.mxu0
        %v4829 = vadd.f32 0.0, %v4828
        %v4830 = vpop.f32.mrf.mxu0
        %v4831 = vadd.f32 0.0, %v4830
        %4832 = vmatmul.bf16.gmra.mxu0 %v3913
        %v4833 = vpop.f32.mrf.mxu0
        %v4834 = vpop.f32.mrf.mxu0
        %v4835 = vadd.f32 0.0, %v4834
        %4836 = vmatmul.bf16.gmra.mxu0 %v3914
        %v4837 = vpop.f32.mrf.mxu0
        %v4838 = vadd.f32 0.0, %v4837
        %v4839 = vpop.f32.mrf.mxu0
        %4840 = vmatmul.bf16.gmra.mxu0 %v3915
        %v4841 = vpop.f32.mrf.mxu0
        %v4842 = vadd.f32 0.0, %v4841
        %v4843 = vpop.f32.mrf.mxu0
        %v4844 = vadd.f32 0.0, %v4843
        %4845 = vmatmul.bf16.gmra.mxu0 %v3916
        %v4846 = vpop.f32.mrf.mxu0
        %v4847 = vpop.f32.mrf.mxu0
        %v4848 = vadd.f32 0.0, %v4847
        %4849 = vmatmul.bf16.gmra.mxu0 %v3917
        %v4850 = vpop.f32.mrf.mxu0
        %v4851 = vadd.f32 0.0, %v4850
        %v4852 = vpop.f32.mrf.mxu0
        %4853 = vmatmul.bf16.gmra.mxu0 %v3918
        %v4854 = vpop.f32.mrf.mxu0
        %v4855 = vadd.f32 0.0, %v4854
        %v4856 = vpop.f32.mrf.mxu0
        %v4857 = vadd.f32 0.0, %v4856
        %4858 = vmatmul.bf16.gmra.mxu0 %v3919
        %v4859 = vpop.f32.mrf.mxu0
        %v4860 = vpop.f32.mrf.mxu0
        %v4861 = vadd.f32 0.0, %v4860
        %4862 = vmatmul.bf16.gmra.mxu0 %v3920
        %v4863 = vpop.f32.mrf.mxu0
        %v4864 = vadd.f32 0.0, %v4863
        %v4865 = vpop.f32.mrf.mxu0
        %4866 = vmatmul.bf16.gmra.mxu0 %v3921
        %v4867 = vpop.f32.mrf.mxu0
        %v4868 = vadd.f32 0.0, %v4867
        %v4869 = vpop.f32.mrf.mxu0
        %v4870 = vadd.f32 0.0, %v4869
        %4871 = vmatmul.bf16.gmra.mxu0 %v3922
        %v4872 = vpop.f32.mrf.mxu0
        %v4873 = vpop.f32.mrf.mxu0
        %v4874 = vadd.f32 0.0, %v4873
        %4875 = vmatmul.bf16.gmra.mxu0 %v3923
        %v4876 = vpop.f32.mrf.mxu0
        %v4877 = vadd.f32 0.0, %v4876
        %v4878 = vpop.f32.mrf.mxu0
        %4879 = vmatmul.bf16.gmra.mxu0 %v3924
        %v4880 = vpop.f32.mrf.mxu0
        %v4881 = vadd.f32 0.0, %v4880
        %v4882 = vpop.f32.mrf.mxu0
        %v4883 = vadd.f32 0.0, %v4882
        %4884 = vmatmul.bf16.gmra.mxu0 %v3925
        %v4885 = vpop.f32.mrf.mxu0
        %v4886 = vpop.f32.mrf.mxu0
        %v4887 = vadd.f32 0.0, %v4886
        %4888 = vmatmul.bf16.gmra.mxu0 %v3926
        %v4889 = vpop.f32.mrf.mxu0
        %v4890 = vadd.f32 0.0, %v4889
        %v4891 = vpop.f32.mrf.mxu0
        %4892 = vmatmul.bf16.gmra.mxu0 %v3927
        %v4893 = vpop.f32.mrf.mxu0
        %v4894 = vadd.f32 0.0, %v4893
        %v4895 = vpop.f32.mrf.mxu0
        %v4896 = vadd.f32 0.0, %v4895
        %4897 = vmatmul.bf16.gmra.mxu0 %v3928
        %v4898 = vpop.f32.mrf.mxu0
        %v4899 = vpop.f32.mrf.mxu0
        %v4900 = vadd.f32 0.0, %v4899
        %4901 = vmatmul.bf16.gmra.mxu0 %v3929
        %v4902 = vpop.f32.mrf.mxu0
        %v4903 = vadd.f32 0.0, %v4902
        %v4904 = vpop.f32.mrf.mxu0
        %4905 = vmatmul.bf16.gmra.mxu0 %v4154
        %v4906 = vpop.f32.mrf.mxu0
        %v4907 = vadd.f32 0.0, %v4906
        %v4908 = vpop.f32.mrf.mxu0
        %v4909 = vadd.f32 0.0, %v4908
        %4910 = vmatmul.bf16.gmra.mxu0 %v4155
        %v4911 = vpop.f32.mrf.mxu0
        %v4912 = vpop.f32.mrf.mxu0
        %v4913 = vadd.f32 0.0, %v4912
        %4914 = vmatmul.bf16.gmra.mxu0 %v4156
        %v4915 = vpop.f32.mrf.mxu0
        %v4916 = vadd.f32 0.0, %v4915
        %v4917 = vpop.f32.mrf.mxu0
        %4918 = vdwg.mxu0
        %v4919 = vadd.f32 %v4638, %v4816
        %v4920 = vadd.f32 %v4640, %v4818
        %v4921 = vadd.f32 %v4644, %v4822
        %v4922 = vadd.f32 %v4647, %v4825
        %v4923 = vadd.f32 %v4651, %v4829
        %v4924 = vadd.f32 %v4653, %v4831
        %v4925 = vadd.f32 %v4657, %v4835
        %v4926 = vadd.f32 %v4660, %v4838
        %v4927 = vadd.f32 %v4664, %v4842
        %v4928 = vadd.f32 %v4666, %v4844
        %v4929 = vadd.f32 %v4670, %v4848
        %v4930 = vadd.f32 %v4673, %v4851
        %v4931 = vadd.f32 %v4677, %v4855
        %v4932 = vadd.f32 %v4679, %v4857
        %v4933 = vadd.f32 %v4683, %v4861
        %v4934 = vadd.f32 %v4686, %v4864
        %v4935 = vadd.f32 %v4690, %v4868
        %v4936 = vadd.f32 %v4692, %v4870
        %v4937 = vadd.f32 %v4696, %v4874
        %v4938 = vadd.f32 %v4699, %v4877
        %v4939 = vadd.f32 %v4703, %v4881
        %v4940 = vadd.f32 %v4705, %v4883
        %v4941 = vadd.f32 %v4709, %v4887
        %v4942 = vadd.f32 %v4712, %v4890
        %v4943 = vadd.f32 %v4716, %v4894
        %v4944 = vadd.f32 %v4718, %v4896
        %v4945 = vadd.f32 %v4722, %v4900
        %v4946 = vadd.f32 %v4725, %v4903
        %v4947 = vadd.f32 %v4729, %v4907
        %v4948 = vadd.f32 %v4731, %v4909
        %v4949 = vadd.f32 %v4735, %v4913
        %v4950 = vadd.f32 %v4738, %v4916
        %s4951 = scalar_lea.vmem [#allocation7], 128
        %v4952 = vld [vmem:[%s4951] sm:$0xf]
        %v4953 = vld [vmem:[%s4951 + $0x4] sm:$0xf]
        %v4954 = vld [vmem:[%s4951 + $0x8] sm:$0xf]
        %v4955 = vld [vmem:[%s4951 + $0xc] sm:$0xf]
        %v4956 = vld [vmem:[%s4951 + $0x10] sm:$0xf]
        %v4957 = vld [vmem:[%s4951 + $0x14] sm:$0xf]
        %v4958 = vld [vmem:[%s4951 + $0x18] sm:$0xf]
        %v4959 = vld [vmem:[%s4951 + $0x1c] sm:$0xf]
        %v4960 = vld [vmem:[%s4951 + $0x20] sm:$0xf]
        %v4961 = vld [vmem:[%s4951 + $0x24] sm:$0xf]
        %v4962 = vld [vmem:[%s4951 + $0x28] sm:$0xf]
        %v4963 = vld [vmem:[%s4951 + $0x2c] sm:$0xf]
        %v4964 = vld [vmem:[%s4951 + $0x30] sm:$0xf]
        %v4965 = vld [vmem:[%s4951 + $0x34] sm:$0xf]
        %v4966 = vld [vmem:[%s4951 + $0x38] sm:$0xf]
        %v4967 = vld [vmem:[%s4951 + $0x3c] sm:$0xf]
        %s4968 = scalar_lea.vmem [#allocation7], 320
        %v4969 = vld [vmem:[%s4968] sm:$0xf]
        %v4970 = vld [vmem:[%s4968 + $0x4] sm:$0xf]
        %v4971 = vld [vmem:[%s4968 + $0x8] sm:$0xf]
        %v4972 = vld [vmem:[%s4968 + $0xc] sm:$0xf]
        %v4973 = vld [vmem:[%s4968 + $0x10] sm:$0xf]
        %v4974 = vld [vmem:[%s4968 + $0x14] sm:$0xf]
        %v4975 = vld [vmem:[%s4968 + $0x18] sm:$0xf]
        %v4976 = vld [vmem:[%s4968 + $0x1c] sm:$0xf]
        %v4977 = vld [vmem:[%s4968 + $0x20] sm:$0xf]
        %v4978 = vld [vmem:[%s4968 + $0x24] sm:$0xf]
        %v4979 = vld [vmem:[%s4968 + $0x28] sm:$0xf]
        %v4980 = vld [vmem:[%s4968 + $0x2c] sm:$0xf]
        %v4981 = vld [vmem:[%s4968 + $0x30] sm:$0xf]
        %v4982 = vld [vmem:[%s4968 + $0x34] sm:$0xf]
        %v4983 = vld [vmem:[%s4968 + $0x38] sm:$0xf]
        %v4984 = vld [vmem:[%s4968 + $0x3c] sm:$0xf]
        %v5001 = vunpack.c.l.b16 %v4969
        %v5002 = vunpack.c.l.b16 %v4970
        %v5003 = vunpack.c.l.b16 %v4971
        %v5004 = vunpack.c.l.b16 %v4972
        %v5005 = vunpack.c.l.b16 %v4973
        %v5006 = vunpack.c.l.b16 %v4974
        %v5007 = vunpack.c.l.b16 %v4975
        %v5008 = vunpack.c.l.b16 %v4976
        %v5009 = vunpack.c.l.b16 %v4977
        %v5010 = vunpack.c.l.b16 %v4978
        %v5011 = vunpack.c.l.b16 %v4979
        %v5012 = vunpack.c.l.b16 %v4980
        %v5013 = vunpack.c.l.b16 %v4981
        %v5014 = vunpack.c.l.b16 %v4982
        %v5015 = vunpack.c.l.b16 %v4983
        %v5016 = vunpack.c.l.b16 %v4984
        %v5017 = vpack.c.b16 %v5002, %v5001
        %v5018 = vpack.c.b16 %v5004, %v5003
        %v5019 = vpack.c.b16 %v5006, %v5005
        %v5020 = vpack.c.b16 %v5008, %v5007
        %v5021 = vpack.c.b16 %v5010, %v5009
        %v5022 = vpack.c.b16 %v5012, %v5011
        %v5023 = vpack.c.b16 %v5014, %v5013
        %v5024 = vpack.c.b16 %v5016, %v5015
        %5033 = vmatpush.bf16.msra.mxu0 %v5024
        %5034 = vmatpush.bf16.msra.mxu0 %v5023
        %5035 = vmatpush.bf16.msra.mxu0 %v5022
        %5036 = vmatpush.bf16.msra.mxu0 %v5021
        %5037 = vmatpush.bf16.msra.mxu0 %v5020
        %5038 = vmatpush.bf16.msra.mxu0 %v5019
        %5039 = vmatpush.bf16.msra.mxu0 %v5018
        %5040 = vmatpush.bf16.msra.mxu0 %v5017
        %5041 = vmatmul.bf16.gmra.mxu0 %v3675
        %v5042 = vpop.f32.mrf.mxu0
        %v5043 = vadd.f32 0.0, %v5042
        %v5044 = vpop.f32.mrf.mxu0
        %v5045 = vadd.f32 0.0, %v5044
        %5046 = vmatmul.bf16.gmra.mxu0 %v3676
        %v5047 = vpop.f32.mrf.mxu0
        %v5048 = vadd.f32 0.0, %v5047
        %v5049 = vpop.f32.mrf.mxu0
        %v5050 = vadd.f32 0.0, %v5049
        %5051 = vmatmul.bf16.gmra.mxu0 %v3677
        %v5052 = vpop.f32.mrf.mxu0
        %v5053 = vadd.f32 0.0, %v5052
        %v5054 = vpop.f32.mrf.mxu0
        %v5055 = vadd.f32 0.0, %v5054
        %5056 = vmatmul.bf16.gmra.mxu0 %v3678
        %v5057 = vpop.f32.mrf.mxu0
        %v5058 = vadd.f32 0.0, %v5057
        %v5059 = vpop.f32.mrf.mxu0
        %v5060 = vadd.f32 0.0, %v5059
        %5061 = vmatmul.bf16.gmra.mxu0 %v3679
        %v5062 = vpop.f32.mrf.mxu0
        %v5063 = vadd.f32 0.0, %v5062
        %v5064 = vpop.f32.mrf.mxu0
        %v5065 = vadd.f32 0.0, %v5064
        %5066 = vmatmul.bf16.gmra.mxu0 %v3680
        %v5067 = vpop.f32.mrf.mxu0
        %v5068 = vadd.f32 0.0, %v5067
        %v5069 = vpop.f32.mrf.mxu0
        %v5070 = vadd.f32 0.0, %v5069
        %5071 = vmatmul.bf16.gmra.mxu0 %v3681
        %v5072 = vpop.f32.mrf.mxu0
        %v5073 = vadd.f32 0.0, %v5072
        %v5074 = vpop.f32.mrf.mxu0
        %v5075 = vadd.f32 0.0, %v5074
        %5076 = vmatmul.bf16.gmra.mxu0 %v3682
        %v5077 = vpop.f32.mrf.mxu0
        %v5078 = vadd.f32 0.0, %v5077
        %v5079 = vpop.f32.mrf.mxu0
        %v5080 = vadd.f32 0.0, %v5079
        %5081 = vmatmul.bf16.gmra.mxu0 %v3683
        %v5082 = vpop.f32.mrf.mxu0
        %v5083 = vadd.f32 0.0, %v5082
        %v5084 = vpop.f32.mrf.mxu0
        %v5085 = vadd.f32 0.0, %v5084
        %5086 = vmatmul.bf16.gmra.mxu0 %v3684
        %v5087 = vpop.f32.mrf.mxu0
        %v5088 = vadd.f32 0.0, %v5087
        %v5089 = vpop.f32.mrf.mxu0
        %v5090 = vadd.f32 0.0, %v5089
        %5091 = vmatmul.bf16.gmra.mxu0 %v3685
        %v5092 = vpop.f32.mrf.mxu0
        %v5093 = vadd.f32 0.0, %v5092
        %v5094 = vpop.f32.mrf.mxu0
        %v5095 = vadd.f32 0.0, %v5094
        %5096 = vmatmul.bf16.gmra.mxu0 %v3686
        %v5097 = vpop.f32.mrf.mxu0
        %v5098 = vadd.f32 0.0, %v5097
        %v5099 = vpop.f32.mrf.mxu0
        %v5100 = vadd.f32 0.0, %v5099
        %5101 = vmatmul.bf16.gmra.mxu0 %v3687
        %v5102 = vpop.f32.mrf.mxu0
        %v5103 = vadd.f32 0.0, %v5102
        %v5104 = vpop.f32.mrf.mxu0
        %v5105 = vadd.f32 0.0, %v5104
        %5106 = vmatmul.bf16.gmra.mxu0 %v3688
        %v5107 = vpop.f32.mrf.mxu0
        %v5108 = vadd.f32 0.0, %v5107
        %v5109 = vpop.f32.mrf.mxu0
        %v5110 = vadd.f32 0.0, %v5109
        %5111 = vmatmul.bf16.gmra.mxu0 %v3689
        %v5112 = vpop.f32.mrf.mxu0
        %v5113 = vadd.f32 0.0, %v5112
        %v5114 = vpop.f32.mrf.mxu0
        %v5115 = vadd.f32 0.0, %v5114
        %5116 = vmatmul.bf16.gmra.mxu0 %v3690
        %v5117 = vpop.f32.mrf.mxu0
        %v5118 = vadd.f32 0.0, %v5117
        %v5119 = vpop.f32.mrf.mxu0
        %v5120 = vadd.f32 0.0, %v5119
        %5121 = vmatmul.bf16.gmra.mxu0 %v3691
        %v5122 = vpop.f32.mrf.mxu0
        %v5123 = vadd.f32 0.0, %v5122
        %v5124 = vpop.f32.mrf.mxu0
        %v5125 = vadd.f32 0.0, %v5124
        %5126 = vmatmul.bf16.gmra.mxu0 %v3692
        %v5127 = vpop.f32.mrf.mxu0
        %v5128 = vadd.f32 0.0, %v5127
        %v5129 = vpop.f32.mrf.mxu0
        %v5130 = vadd.f32 0.0, %v5129
        %5131 = vmatmul.bf16.gmra.mxu0 %v3693
        %v5132 = vpop.f32.mrf.mxu0
        %v5133 = vadd.f32 0.0, %v5132
        %v5134 = vpop.f32.mrf.mxu0
        %v5135 = vadd.f32 0.0, %v5134
        %5136 = vmatmul.bf16.gmra.mxu0 %v3694
        %v5137 = vpop.f32.mrf.mxu0
        %v5138 = vadd.f32 0.0, %v5137
        %v5139 = vpop.f32.mrf.mxu0
        %v5140 = vadd.f32 0.0, %v5139
        %5141 = vmatmul.bf16.gmra.mxu0 %v3695
        %v5142 = vpop.f32.mrf.mxu0
        %v5143 = vadd.f32 0.0, %v5142
        %v5144 = vpop.f32.mrf.mxu0
        %v5145 = vadd.f32 0.0, %v5144
        %5146 = vmatmul.bf16.gmra.mxu0 %v3696
        %v5147 = vpop.f32.mrf.mxu0
        %v5148 = vadd.f32 0.0, %v5147
        %v5149 = vpop.f32.mrf.mxu0
        %v5150 = vadd.f32 0.0, %v5149
        %5151 = vmatmul.bf16.gmra.mxu0 %v3697
        %v5152 = vpop.f32.mrf.mxu0
        %v5153 = vadd.f32 0.0, %v5152
        %v5154 = vpop.f32.mrf.mxu0
        %v5155 = vadd.f32 0.0, %v5154
        %5156 = vmatmul.bf16.gmra.mxu0 %v3698
        %v5157 = vpop.f32.mrf.mxu0
        %v5158 = vadd.f32 0.0, %v5157
        %v5159 = vpop.f32.mrf.mxu0
        %v5160 = vadd.f32 0.0, %v5159
        %5161 = vdwg.mxu0
        %v5178 = vunpack.c.l.b16 %v4952
        %v5179 = vunpack.c.l.b16 %v4953
        %v5180 = vunpack.c.l.b16 %v4954
        %v5181 = vunpack.c.l.b16 %v4955
        %v5182 = vunpack.c.l.b16 %v4956
        %v5183 = vunpack.c.l.b16 %v4957
        %v5184 = vunpack.c.l.b16 %v4958
        %v5185 = vunpack.c.l.b16 %v4959
        %v5186 = vunpack.c.l.b16 %v4960
        %v5187 = vunpack.c.l.b16 %v4961
        %v5188 = vunpack.c.l.b16 %v4962
        %v5189 = vunpack.c.l.b16 %v4963
        %v5190 = vunpack.c.l.b16 %v4964
        %v5191 = vunpack.c.l.b16 %v4965
        %v5192 = vunpack.c.l.b16 %v4966
        %v5193 = vunpack.c.l.b16 %v4967
        %v5194 = vpack.c.b16 %v5179, %v5178
        %v5195 = vpack.c.b16 %v5181, %v5180
        %v5196 = vpack.c.b16 %v5183, %v5182
        %v5197 = vpack.c.b16 %v5185, %v5184
        %v5198 = vpack.c.b16 %v5187, %v5186
        %v5199 = vpack.c.b16 %v5189, %v5188
        %v5200 = vpack.c.b16 %v5191, %v5190
        %v5201 = vpack.c.b16 %v5193, %v5192
        %5210 = vmatpush.bf16.msra.mxu0 %v5201
        %5211 = vmatpush.bf16.msra.mxu0 %v5200
        %5212 = vmatpush.bf16.msra.mxu0 %v5199
        %5213 = vmatpush.bf16.msra.mxu0 %v5198
        %5214 = vmatpush.bf16.msra.mxu0 %v5197
        %5215 = vmatpush.bf16.msra.mxu0 %v5196
        %5216 = vmatpush.bf16.msra.mxu0 %v5195
        %5217 = vmatpush.bf16.msra.mxu0 %v5194
        %5218 = vmatmul.bf16.gmra.mxu0 %v3906
        %v5219 = vpop.f32.mrf.mxu0
        %v5220 = vadd.f32 %v5043, %v5219
        %v5221 = vpop.f32.mrf.mxu0
        %v5222 = vadd.f32 %v5045, %v5221
        %5223 = vmatmul.bf16.gmra.mxu0 %v3907
        %v5224 = vpop.f32.mrf.mxu0
        %v5225 = vadd.f32 %v5048, %v5224
        %v5226 = vpop.f32.mrf.mxu0
        %v5227 = vadd.f32 %v5050, %v5226
        %5228 = vmatmul.bf16.gmra.mxu0 %v3908
        %v5229 = vpop.f32.mrf.mxu0
        %v5230 = vadd.f32 %v5053, %v5229
        %v5231 = vpop.f32.mrf.mxu0
        %v5232 = vadd.f32 %v5055, %v5231
        %5233 = vmatmul.bf16.gmra.mxu0 %v3909
        %v5234 = vpop.f32.mrf.mxu0
        %v5235 = vadd.f32 %v5058, %v5234
        %v5236 = vpop.f32.mrf.mxu0
        %v5237 = vadd.f32 %v5060, %v5236
        %5238 = vmatmul.bf16.gmra.mxu0 %v3910
        %v5239 = vpop.f32.mrf.mxu0
        %v5240 = vadd.f32 %v5063, %v5239
        %v5241 = vpop.f32.mrf.mxu0
        %v5242 = vadd.f32 %v5065, %v5241
        %5243 = vmatmul.bf16.gmra.mxu0 %v3911
        %v5244 = vpop.f32.mrf.mxu0
        %v5245 = vadd.f32 %v5068, %v5244
        %v5246 = vpop.f32.mrf.mxu0
        %v5247 = vadd.f32 %v5070, %v5246
        %5248 = vmatmul.bf16.gmra.mxu0 %v3912
        %v5249 = vpop.f32.mrf.mxu0
        %v5250 = vadd.f32 %v5073, %v5249
        %v5251 = vpop.f32.mrf.mxu0
        %v5252 = vadd.f32 %v5075, %v5251
        %5253 = vmatmul.bf16.gmra.mxu0 %v3913
        %v5254 = vpop.f32.mrf.mxu0
        %v5255 = vadd.f32 %v5078, %v5254
        %v5256 = vpop.f32.mrf.mxu0
        %v5257 = vadd.f32 %v5080, %v5256
        %5258 = vmatmul.bf16.gmra.mxu0 %v3914
        %v5259 = vpop.f32.mrf.mxu0
        %v5260 = vadd.f32 %v5083, %v5259
        %v5261 = vpop.f32.mrf.mxu0
        %v5262 = vadd.f32 %v5085, %v5261
        %5263 = vmatmul.bf16.gmra.mxu0 %v3915
        %v5264 = vpop.f32.mrf.mxu0
        %v5265 = vadd.f32 %v5088, %v5264
        %v5266 = vpop.f32.mrf.mxu0
        %v5267 = vadd.f32 %v5090, %v5266
        %5268 = vmatmul.bf16.gmra.mxu0 %v3916
        %v5269 = vpop.f32.mrf.mxu0
        %v5270 = vadd.f32 %v5093, %v5269
        %v5271 = vpop.f32.mrf.mxu0
        %v5272 = vadd.f32 %v5095, %v5271
        %5273 = vmatmul.bf16.gmra.mxu0 %v3917
        %v5274 = vpop.f32.mrf.mxu0
        %v5275 = vadd.f32 %v5098, %v5274
        %v5276 = vpop.f32.mrf.mxu0
        %v5277 = vadd.f32 %v5100, %v5276
        %5278 = vmatmul.bf16.gmra.mxu0 %v3918
        %v5279 = vpop.f32.mrf.mxu0
        %v5280 = vadd.f32 %v5103, %v5279
        %v5281 = vpop.f32.mrf.mxu0
        %v5282 = vadd.f32 %v5105, %v5281
        %5283 = vmatmul.bf16.gmra.mxu0 %v3919
        %v5284 = vpop.f32.mrf.mxu0
        %v5285 = vadd.f32 %v5108, %v5284
        %v5286 = vpop.f32.mrf.mxu0
        %v5287 = vadd.f32 %v5110, %v5286
        %5288 = vmatmul.bf16.gmra.mxu0 %v3920
        %v5289 = vpop.f32.mrf.mxu0
        %v5290 = vadd.f32 %v5113, %v5289
        %v5291 = vpop.f32.mrf.mxu0
        %v5292 = vadd.f32 %v5115, %v5291
        %5293 = vmatmul.bf16.gmra.mxu0 %v3921
        %v5294 = vpop.f32.mrf.mxu0
        %v5295 = vadd.f32 %v5118, %v5294
        %v5296 = vpop.f32.mrf.mxu0
        %v5297 = vadd.f32 %v5120, %v5296
        %5298 = vmatmul.bf16.gmra.mxu0 %v3922
        %v5299 = vpop.f32.mrf.mxu0
        %v5300 = vadd.f32 %v5123, %v5299
        %v5301 = vpop.f32.mrf.mxu0
        %v5302 = vadd.f32 %v5125, %v5301
        %5303 = vmatmul.bf16.gmra.mxu0 %v3923
        %v5304 = vpop.f32.mrf.mxu0
        %v5305 = vadd.f32 %v5128, %v5304
        %v5306 = vpop.f32.mrf.mxu0
        %v5307 = vadd.f32 %v5130, %v5306
        %5308 = vmatmul.bf16.gmra.mxu0 %v3924
        %v5309 = vpop.f32.mrf.mxu0
        %v5310 = vadd.f32 %v5133, %v5309
        %v5311 = vpop.f32.mrf.mxu0
        %v5312 = vadd.f32 %v5135, %v5311
        %5313 = vmatmul.bf16.gmra.mxu0 %v3925
        %v5314 = vpop.f32.mrf.mxu0
        %v5315 = vadd.f32 %v5138, %v5314
        %v5316 = vpop.f32.mrf.mxu0
        %v5317 = vadd.f32 %v5140, %v5316
        %5318 = vmatmul.bf16.gmra.mxu0 %v3926
        %v5319 = vpop.f32.mrf.mxu0
        %v5320 = vadd.f32 %v5143, %v5319
        %v5321 = vpop.f32.mrf.mxu0
        %v5322 = vadd.f32 %v5145, %v5321
        %5323 = vmatmul.bf16.gmra.mxu0 %v3927
        %v5324 = vpop.f32.mrf.mxu0
        %v5325 = vadd.f32 %v5148, %v5324
        %v5326 = vpop.f32.mrf.mxu0
        %v5327 = vadd.f32 %v5150, %v5326
        %5328 = vmatmul.bf16.gmra.mxu0 %v3928
        %v5329 = vpop.f32.mrf.mxu0
        %v5330 = vadd.f32 %v5153, %v5329
        %v5331 = vpop.f32.mrf.mxu0
        %v5332 = vadd.f32 %v5155, %v5331
        %5333 = vmatmul.bf16.gmra.mxu0 %v3929
        %v5334 = vpop.f32.mrf.mxu0
        %v5335 = vadd.f32 %v5158, %v5334
        %v5336 = vpop.f32.mrf.mxu0
        %v5337 = vadd.f32 %v5160, %v5336
        %5338 = vdwg.mxu0
        %s5339 = scalar_lea.vmem [#allocation7], 512
        %v5340 = vld [vmem:[%s5339] sm:$0xf]
        %v5341 = vld [vmem:[%s5339 + $0x4] sm:$0xf]
        %v5342 = vld [vmem:[%s5339 + $0x8] sm:$0xf]
        %v5343 = vld [vmem:[%s5339 + $0xc] sm:$0xf]
        %v5344 = vld [vmem:[%s5339 + $0x10] sm:$0xf]
        %v5345 = vld [vmem:[%s5339 + $0x14] sm:$0xf]
        %v5346 = vld [vmem:[%s5339 + $0x18] sm:$0xf]
        %v5347 = vld [vmem:[%s5339 + $0x1c] sm:$0xf]
        %v5348 = vld [vmem:[%s5339 + $0x20] sm:$0xf]
        %v5349 = vld [vmem:[%s5339 + $0x24] sm:$0xf]
        %v5350 = vld [vmem:[%s5339 + $0x28] sm:$0xf]
        %v5351 = vld [vmem:[%s5339 + $0x2c] sm:$0xf]
        %v5352 = vld [vmem:[%s5339 + $0x30] sm:$0xf]
        %v5353 = vld [vmem:[%s5339 + $0x34] sm:$0xf]
        %v5354 = vld [vmem:[%s5339 + $0x38] sm:$0xf]
        %v5355 = vld [vmem:[%s5339 + $0x3c] sm:$0xf]
        %v5372 = vunpack.c.l.b16 %v5340
        %v5373 = vunpack.c.l.b16 %v5341
        %v5374 = vunpack.c.l.b16 %v5342
        %v5375 = vunpack.c.l.b16 %v5343
        %v5376 = vunpack.c.l.b16 %v5344
        %v5377 = vunpack.c.l.b16 %v5345
        %v5378 = vunpack.c.l.b16 %v5346
        %v5379 = vunpack.c.l.b16 %v5347
        %v5380 = vunpack.c.l.b16 %v5348
        %v5381 = vunpack.c.l.b16 %v5349
        %v5382 = vunpack.c.l.b16 %v5350
        %v5383 = vunpack.c.l.b16 %v5351
        %v5384 = vunpack.c.l.b16 %v5352
        %v5385 = vunpack.c.l.b16 %v5353
        %v5386 = vunpack.c.l.b16 %v5354
        %v5387 = vunpack.c.l.b16 %v5355
        %v5388 = vpack.c.b16 %v5373, %v5372
        %v5389 = vpack.c.b16 %v5375, %v5374
        %v5390 = vpack.c.b16 %v5377, %v5376
        %v5391 = vpack.c.b16 %v5379, %v5378
        %v5392 = vpack.c.b16 %v5381, %v5380
        %v5393 = vpack.c.b16 %v5383, %v5382
        %v5394 = vpack.c.b16 %v5385, %v5384
        %v5395 = vpack.c.b16 %v5387, %v5386
        %5404 = vmatpush.bf16.msra.mxu0 %v5395
        %5405 = vmatpush.bf16.msra.mxu0 %v5394
        %5406 = vmatpush.bf16.msra.mxu0 %v5393
        %5407 = vmatpush.bf16.msra.mxu0 %v5392
        %5408 = vmatpush.bf16.msra.mxu0 %v5391
        %5409 = vmatpush.bf16.msra.mxu0 %v5390
        %5410 = vmatpush.bf16.msra.mxu0 %v5389
        %5411 = vmatpush.bf16.msra.mxu0 %v5388
        %5412 = vmatmul.bf16.gmra.mxu0 %v3909
        %v5413 = vpop.f32.mrf.mxu0
        %v5414 = vadd.f32 0.0, %v5413
        %v5415 = vpop.f32.mrf.mxu0
        %v5416 = vadd.f32 0.0, %v5415
        %5417 = vmatmul.bf16.gmra.mxu0 %v3910
        %v5418 = vpop.f32.mrf.mxu0
        %v5419 = vadd.f32 0.0, %v5418
        %v5420 = vpop.f32.mrf.mxu0
        %v5421 = vadd.f32 0.0, %v5420
        %5422 = vmatmul.bf16.gmra.mxu0 %v3911
        %v5423 = vpop.f32.mrf.mxu0
        %v5424 = vadd.f32 0.0, %v5423
        %v5425 = vpop.f32.mrf.mxu0
        %v5426 = vadd.f32 0.0, %v5425
        %5427 = vmatmul.bf16.gmra.mxu0 %v3912
        %v5428 = vpop.f32.mrf.mxu0
        %v5429 = vadd.f32 0.0, %v5428
        %v5430 = vpop.f32.mrf.mxu0
        %v5431 = vadd.f32 0.0, %v5430
        %5432 = vmatmul.bf16.gmra.mxu0 %v3913
        %v5433 = vpop.f32.mrf.mxu0
        %v5434 = vadd.f32 0.0, %v5433
        %v5435 = vpop.f32.mrf.mxu0
        %v5436 = vadd.f32 0.0, %v5435
        %5437 = vmatmul.bf16.gmra.mxu0 %v3914
        %v5438 = vpop.f32.mrf.mxu0
        %v5439 = vadd.f32 0.0, %v5438
        %v5440 = vpop.f32.mrf.mxu0
        %v5441 = vadd.f32 0.0, %v5440
        %5442 = vmatmul.bf16.gmra.mxu0 %v3915
        %v5443 = vpop.f32.mrf.mxu0
        %v5444 = vadd.f32 0.0, %v5443
        %v5445 = vpop.f32.mrf.mxu0
        %v5446 = vadd.f32 0.0, %v5445
        %5447 = vmatmul.bf16.gmra.mxu0 %v3916
        %v5448 = vpop.f32.mrf.mxu0
        %v5449 = vadd.f32 0.0, %v5448
        %v5450 = vpop.f32.mrf.mxu0
        %v5451 = vadd.f32 0.0, %v5450
        %5452 = vmatmul.bf16.gmra.mxu0 %v3917
        %v5453 = vpop.f32.mrf.mxu0
        %v5454 = vadd.f32 0.0, %v5453
        %v5455 = vpop.f32.mrf.mxu0
        %v5456 = vadd.f32 0.0, %v5455
        %5457 = vmatmul.bf16.gmra.mxu0 %v3918
        %v5458 = vpop.f32.mrf.mxu0
        %v5459 = vadd.f32 0.0, %v5458
        %v5460 = vpop.f32.mrf.mxu0
        %v5461 = vadd.f32 0.0, %v5460
        %5462 = vmatmul.bf16.gmra.mxu0 %v3919
        %v5463 = vpop.f32.mrf.mxu0
        %v5464 = vadd.f32 0.0, %v5463
        %v5465 = vpop.f32.mrf.mxu0
        %v5466 = vadd.f32 0.0, %v5465
        %5467 = vmatmul.bf16.gmra.mxu0 %v3920
        %v5468 = vpop.f32.mrf.mxu0
        %v5469 = vadd.f32 0.0, %v5468
        %v5470 = vpop.f32.mrf.mxu0
        %v5471 = vadd.f32 0.0, %v5470
        %5472 = vmatmul.bf16.gmra.mxu0 %v3921
        %v5473 = vpop.f32.mrf.mxu0
        %v5474 = vadd.f32 0.0, %v5473
        %v5475 = vpop.f32.mrf.mxu0
        %v5476 = vadd.f32 0.0, %v5475
        %5477 = vmatmul.bf16.gmra.mxu0 %v3922
        %v5478 = vpop.f32.mrf.mxu0
        %v5479 = vadd.f32 0.0, %v5478
        %v5480 = vpop.f32.mrf.mxu0
        %v5481 = vadd.f32 0.0, %v5480
        %5482 = vmatmul.bf16.gmra.mxu0 %v3923
        %v5483 = vpop.f32.mrf.mxu0
        %v5484 = vadd.f32 0.0, %v5483
        %v5485 = vpop.f32.mrf.mxu0
        %v5486 = vadd.f32 0.0, %v5485
        %5487 = vmatmul.bf16.gmra.mxu0 %v3924
        %v5488 = vpop.f32.mrf.mxu0
        %v5489 = vadd.f32 0.0, %v5488
        %v5490 = vpop.f32.mrf.mxu0
        %v5491 = vadd.f32 0.0, %v5490
        %5492 = vmatmul.bf16.gmra.mxu0 %v3925
        %v5493 = vpop.f32.mrf.mxu0
        %v5494 = vadd.f32 0.0, %v5493
        %v5495 = vpop.f32.mrf.mxu0
        %v5496 = vadd.f32 0.0, %v5495
        %5497 = vmatmul.bf16.gmra.mxu0 %v3926
        %v5498 = vpop.f32.mrf.mxu0
        %v5499 = vadd.f32 0.0, %v5498
        %v5500 = vpop.f32.mrf.mxu0
        %v5501 = vadd.f32 0.0, %v5500
        %5502 = vmatmul.bf16.gmra.mxu0 %v3927
        %v5503 = vpop.f32.mrf.mxu0
        %v5504 = vadd.f32 0.0, %v5503
        %v5505 = vpop.f32.mrf.mxu0
        %v5506 = vadd.f32 0.0, %v5505
        %5507 = vmatmul.bf16.gmra.mxu0 %v3928
        %v5508 = vpop.f32.mrf.mxu0
        %v5509 = vadd.f32 0.0, %v5508
        %v5510 = vpop.f32.mrf.mxu0
        %v5511 = vadd.f32 0.0, %v5510
        %5512 = vmatmul.bf16.gmra.mxu0 %v3929
        %v5513 = vpop.f32.mrf.mxu0
        %v5514 = vadd.f32 0.0, %v5513
        %v5515 = vpop.f32.mrf.mxu0
        %v5516 = vadd.f32 0.0, %v5515
        %5517 = vmatmul.bf16.gmra.mxu0 %v4154
        %v5518 = vpop.f32.mrf.mxu0
        %v5519 = vadd.f32 0.0, %v5518
        %v5520 = vpop.f32.mrf.mxu0
        %v5521 = vadd.f32 0.0, %v5520
        %5522 = vmatmul.bf16.gmra.mxu0 %v4155
        %v5523 = vpop.f32.mrf.mxu0
        %v5524 = vadd.f32 0.0, %v5523
        %v5525 = vpop.f32.mrf.mxu0
        %v5526 = vadd.f32 0.0, %v5525
        %5527 = vmatmul.bf16.gmra.mxu0 %v4156
        %v5528 = vpop.f32.mrf.mxu0
        %v5529 = vadd.f32 0.0, %v5528
        %v5530 = vpop.f32.mrf.mxu0
        %v5531 = vadd.f32 0.0, %v5530
        %5532 = vdwg.mxu0
        %v5533 = vadd.f32 %v5220, %v5414
        %v5534 = vadd.f32 %v5222, %v5416
        %v5535 = vadd.f32 %v5225, %v5419
        %v5536 = vadd.f32 %v5227, %v5421
        %v5537 = vadd.f32 %v5230, %v5424
        %v5538 = vadd.f32 %v5232, %v5426
        %v5539 = vadd.f32 %v5235, %v5429
        %v5540 = vadd.f32 %v5237, %v5431
        %v5541 = vadd.f32 %v5240, %v5434
        %v5542 = vadd.f32 %v5242, %v5436
        %v5543 = vadd.f32 %v5245, %v5439
        %v5544 = vadd.f32 %v5247, %v5441
        %v5545 = vadd.f32 %v5250, %v5444
        %v5546 = vadd.f32 %v5252, %v5446
        %v5547 = vadd.f32 %v5255, %v5449
        %v5548 = vadd.f32 %v5257, %v5451
        %v5549 = vadd.f32 %v5260, %v5454
        %v5550 = vadd.f32 %v5262, %v5456
        %v5551 = vadd.f32 %v5265, %v5459
        %v5552 = vadd.f32 %v5267, %v5461
        %v5553 = vadd.f32 %v5270, %v5464
        %v5554 = vadd.f32 %v5272, %v5466
        %v5555 = vadd.f32 %v5275, %v5469
        %v5556 = vadd.f32 %v5277, %v5471
        %v5557 = vadd.f32 %v5280, %v5474
        %v5558 = vadd.f32 %v5282, %v5476
        %v5559 = vadd.f32 %v5285, %v5479
        %v5560 = vadd.f32 %v5287, %v5481
        %v5561 = vadd.f32 %v5290, %v5484
        %v5562 = vadd.f32 %v5292, %v5486
        %v5563 = vadd.f32 %v5295, %v5489
        %v5564 = vadd.f32 %v5297, %v5491
        %v5565 = vadd.f32 %v5300, %v5494
        %v5566 = vadd.f32 %v5302, %v5496
        %v5567 = vadd.f32 %v5305, %v5499
        %v5568 = vadd.f32 %v5307, %v5501
        %v5569 = vadd.f32 %v5310, %v5504
        %v5570 = vadd.f32 %v5312, %v5506
        %v5571 = vadd.f32 %v5315, %v5509
        %v5572 = vadd.f32 %v5317, %v5511
        %v5573 = vadd.f32 %v5320, %v5514
        %v5574 = vadd.f32 %v5322, %v5516
        %v5575 = vadd.f32 %v5325, %v5519
        %v5576 = vadd.f32 %v5327, %v5521
        %v5577 = vadd.f32 %v5330, %v5524
        %v5578 = vadd.f32 %v5332, %v5526
        %v5579 = vadd.f32 %v5335, %v5529
        %v5580 = vadd.f32 %v5337, %v5531
        %v5581 = vrot.slane %v4337, 7
        %v5582 = vrot.slane %v4338, 7
        %v5583 = vrot.slane %v4339, 7
        %v5584 = vrot.slane %v4340, 7
        %v5585 = vrot.slane %v4341, 7
        %v5586 = vrot.slane %v4342, 7
        %v5587 = vrot.slane %v4343, 7
        %v5588 = vrot.slane %v4344, 7
        %v5589 = vrot.slane %v4345, 7
        %v5590 = vrot.slane %v4346, 7
        %v5591 = vrot.slane %v4347, 7
        %v5592 = vrot.slane %v4348, 7
        %v5593 = vrot.slane %v4349, 7
        %v5594 = vrot.slane %v4350, 7
        %v5595 = vrot.slane %v4351, 7
        %v5596 = vrot.slane %v4352, 7
        %v5597 = vrot.slane %v4353, 7
        %v5598 = vrot.slane %v4354, 7
        %v5599 = vrot.slane %v4355, 7
        %v5600 = vrot.slane %v4356, 7
        %v5601 = vrot.slane %v4357, 7
        %v5602 = vrot.slane %v4358, 7
        %v5603 = vrot.slane %v4359, 7
        %v5604 = vrot.slane %v4360, 7
        %v5605 = vrot.slane %v4361, 7
        %v5606 = vrot.slane %v4362, 7
        %v5607 = vrot.slane %v4363, 7
        %v5608 = vrot.slane %v4364, 7
        %v5609 = vrot.slane %v4365, 7
        %v5610 = vrot.slane %v4366, 7
        %v5611 = vrot.slane %v4367, 7
        %v5612 = vrot.slane %v4368, 7
        %v5613 = vrot.slane %v4369, 7
        %v5614 = vrot.slane %v4370, 7
        %v5615 = vrot.slane %v4371, 7
        %v5616 = vrot.slane %v4372, 7
        %v5617 = vrot.slane %v4373, 7
        %v5618 = vrot.slane %v4374, 7
        %v5619 = vrot.slane %v4375, 7
        %v5620 = vrot.slane %v4376, 7
        %v5621 = vrot.slane %v4377, 7
        %v5622 = vrot.slane %v4378, 7
        %v5623 = vrot.slane %v4379, 7
        %v5624 = vrot.slane %v4380, 7
        %v5625 = vrot.slane %v4381, 7
        %v5626 = vrot.slane %v4382, 7
        %v5627 = vrot.slane %v4383, 7
        %v5628 = vrot.slane %v4384, 7
        %v5629 = vsel %vm2755, %v5626, %v5627
        %v5630 = vsel %vm2755, %v5625, %v5626
        %v5631 = vsel %vm2755, %v5623, %v5624
        %v5632 = vsel %vm2755, %v5622, %v5623
        %v5633 = vsel %vm2755, %v5620, %v5621
        %v5634 = vsel %vm2755, %v5619, %v5620
        %v5635 = vsel %vm2755, %v5617, %v5618
        %v5636 = vsel %vm2755, %v5616, %v5617
        %v5637 = vsel %vm2755, %v5614, %v5615
        %v5638 = vsel %vm2755, %v5613, %v5614
        %v5639 = vsel %vm2755, %v5611, %v5612
        %v5640 = vsel %vm2755, %v5610, %v5611
        %v5641 = vsel %vm2755, %v5608, %v5609
        %v5642 = vsel %vm2755, %v5607, %v5608
        %v5643 = vsel %vm2755, %v5605, %v5606
        %v5644 = vsel %vm2755, %v5604, %v5605
        %v5645 = vsel %vm2755, %v5602, %v5603
        %v5646 = vsel %vm2755, %v5601, %v5602
        %v5647 = vsel %vm2755, %v5599, %v5600
        %v5648 = vsel %vm2755, %v5598, %v5599
        %v5649 = vsel %vm2755, %v5596, %v5597
        %v5650 = vsel %vm2755, %v5595, %v5596
        %v5651 = vsel %vm2755, %v5593, %v5594
        %v5652 = vsel %vm2755, %v5592, %v5593
        %v5653 = vsel %vm2755, %v5590, %v5591
        %v5654 = vsel %vm2755, %v5589, %v5590
        %v5655 = vsel %vm2755, %v5587, %v5588
        %v5656 = vsel %vm2755, %v5586, %v5587
        %v5657 = vsel %vm2755, %v5584, %v5585
        %v5658 = vsel %vm2755, %v5583, %v5584
        %v5659 = vsel %vm2755, %v5581, %v5582
        %v5660 = vsel %vm2755, %v5628, %v5581
        %v5661 = vadd.f32 %v4919, %v5660
        %v5662 = vadd.f32 %v4920, %v5659
        %v5663 = vadd.f32 %v4921, %v5658
        %v5664 = vadd.f32 %v4922, %v5657
        %v5665 = vadd.f32 %v4923, %v5656
        %v5666 = vadd.f32 %v4924, %v5655
        %v5667 = vadd.f32 %v4925, %v5654
        %v5668 = vadd.f32 %v4926, %v5653
        %v5669 = vadd.f32 %v4927, %v5652
        %v5670 = vadd.f32 %v4928, %v5651
        %v5671 = vadd.f32 %v4929, %v5650
        %v5672 = vadd.f32 %v4930, %v5649
        %v5673 = vadd.f32 %v4931, %v5648
        %v5674 = vadd.f32 %v4932, %v5647
        %v5675 = vadd.f32 %v4933, %v5646
        %v5676 = vadd.f32 %v4934, %v5645
        %v5677 = vadd.f32 %v4935, %v5644
        %v5678 = vadd.f32 %v4936, %v5643
        %v5679 = vadd.f32 %v4937, %v5642
        %v5680 = vadd.f32 %v4938, %v5641
        %v5681 = vadd.f32 %v4939, %v5640
        %v5682 = vadd.f32 %v4940, %v5639
        %v5683 = vadd.f32 %v4941, %v5638
        %v5684 = vadd.f32 %v4942, %v5637
        %v5685 = vadd.f32 %v4943, %v5636
        %v5686 = vadd.f32 %v4944, %v5635
        %v5687 = vadd.f32 %v4945, %v5634
        %v5688 = vadd.f32 %v4946, %v5633
        %v5689 = vadd.f32 %v4947, %v5632
        %v5690 = vadd.f32 %v4948, %v5631
        %v5691 = vadd.f32 %v4949, %v5630
        %v5692 = vadd.f32 %v4950, %v5629
        %v5693 = vrot.slane %v5533, 1
        %v5694 = vrot.slane %v5534, 1
        %v5695 = vrot.slane %v5535, 1
        %v5696 = vrot.slane %v5536, 1
        %v5697 = vrot.slane %v5537, 1
        %v5698 = vrot.slane %v5538, 1
        %v5699 = vrot.slane %v5539, 1
        %v5700 = vrot.slane %v5540, 1
        %v5701 = vrot.slane %v5541, 1
        %v5702 = vrot.slane %v5542, 1
        %v5703 = vrot.slane %v5543, 1
        %v5704 = vrot.slane %v5544, 1
        %v5705 = vrot.slane %v5545, 1
        %v5706 = vrot.slane %v5546, 1
        %v5707 = vrot.slane %v5547, 1
        %v5708 = vrot.slane %v5548, 1
        %v5709 = vrot.slane %v5549, 1
        %v5710 = vrot.slane %v5550, 1
        %v5711 = vrot.slane %v5551, 1
        %v5712 = vrot.slane %v5552, 1
        %v5713 = vrot.slane %v5553, 1
        %v5714 = vrot.slane %v5554, 1
        %v5715 = vrot.slane %v5555, 1
        %v5716 = vrot.slane %v5556, 1
        %v5717 = vrot.slane %v5557, 1
        %v5718 = vrot.slane %v5558, 1
        %v5719 = vrot.slane %v5559, 1
        %v5720 = vrot.slane %v5560, 1
        %v5721 = vrot.slane %v5561, 1
        %v5722 = vrot.slane %v5562, 1
        %v5723 = vrot.slane %v5563, 1
        %v5724 = vrot.slane %v5564, 1
        %v5725 = vrot.slane %v5565, 1
        %v5726 = vrot.slane %v5566, 1
        %v5727 = vrot.slane %v5567, 1
        %v5728 = vrot.slane %v5568, 1
        %v5729 = vrot.slane %v5569, 1
        %v5730 = vrot.slane %v5570, 1
        %v5731 = vrot.slane %v5571, 1
        %v5732 = vrot.slane %v5572, 1
        %v5733 = vrot.slane %v5573, 1
        %v5734 = vrot.slane %v5574, 1
        %v5735 = vrot.slane %v5575, 1
        %v5736 = vrot.slane %v5576, 1
        %v5737 = vrot.slane %v5577, 1
        %v5738 = vrot.slane %v5578, 1
        %v5739 = vrot.slane %v5579, 1
        %v5740 = vrot.slane %v5580, 1
        %v5741 = vsel %vm2918, %v5739, %v5740
        %v5742 = vsel %vm2918, %v5738, %v5739
        %v5743 = vsel %vm2918, %v5736, %v5737
        %v5744 = vsel %vm2918, %v5735, %v5736
        %v5745 = vsel %vm2918, %v5733, %v5734
        %v5746 = vsel %vm2918, %v5732, %v5733
        %v5747 = vsel %vm2918, %v5730, %v5731
        %v5748 = vsel %vm2918, %v5729, %v5730
        %v5749 = vsel %vm2918, %v5727, %v5728
        %v5750 = vsel %vm2918, %v5726, %v5727
        %v5751 = vsel %vm2918, %v5724, %v5725
        %v5752 = vsel %vm2918, %v5723, %v5724
        %v5753 = vsel %vm2918, %v5721, %v5722
        %v5754 = vsel %vm2918, %v5720, %v5721
        %v5755 = vsel %vm2918, %v5718, %v5719
        %v5756 = vsel %vm2918, %v5717, %v5718
        %v5757 = vsel %vm2918, %v5715, %v5716
        %v5758 = vsel %vm2918, %v5714, %v5715
        %v5759 = vsel %vm2918, %v5712, %v5713
        %v5760 = vsel %vm2918, %v5711, %v5712
        %v5761 = vsel %vm2918, %v5709, %v5710
        %v5762 = vsel %vm2918, %v5708, %v5709
        %v5763 = vsel %vm2918, %v5706, %v5707
        %v5764 = vsel %vm2918, %v5705, %v5706
        %v5765 = vsel %vm2918, %v5703, %v5704
        %v5766 = vsel %vm2918, %v5702, %v5703
        %v5767 = vsel %vm2918, %v5700, %v5701
        %v5768 = vsel %vm2918, %v5699, %v5700
        %v5769 = vsel %vm2918, %v5697, %v5698
        %v5770 = vsel %vm2918, %v5696, %v5697
        %v5771 = vsel %vm2918, %v5694, %v5695
        %v5772 = vsel %vm2918, %v5693, %v5694
        %v5773 = vadd.f32 %v5661, %v5772
        %v5774 = vadd.f32 %v5662, %v5771
        %v5775 = vadd.f32 %v5663, %v5770
        %v5776 = vadd.f32 %v5664, %v5769
        %v5777 = vadd.f32 %v5665, %v5768
        %v5778 = vadd.f32 %v5666, %v5767
        %v5779 = vadd.f32 %v5667, %v5766
        %v5780 = vadd.f32 %v5668, %v5765
        %v5781 = vadd.f32 %v5669, %v5764
        %v5782 = vadd.f32 %v5670, %v5763
        %v5783 = vadd.f32 %v5671, %v5762
        %v5784 = vadd.f32 %v5672, %v5761
        %v5785 = vadd.f32 %v5673, %v5760
        %v5786 = vadd.f32 %v5674, %v5759
        %v5787 = vadd.f32 %v5675, %v5758
        %v5788 = vadd.f32 %v5676, %v5757
        %v5789 = vadd.f32 %v5677, %v5756
        %v5790 = vadd.f32 %v5678, %v5755
        %v5791 = vadd.f32 %v5679, %v5754
        %v5792 = vadd.f32 %v5680, %v5753
        %v5793 = vadd.f32 %v5681, %v5752
        %v5794 = vadd.f32 %v5682, %v5751
        %v5795 = vadd.f32 %v5683, %v5750
        %v5796 = vadd.f32 %v5684, %v5749
        %v5797 = vadd.f32 %v5685, %v5748
        %v5798 = vadd.f32 %v5686, %v5747
        %v5799 = vadd.f32 %v5687, %v5746
        %v5800 = vadd.f32 %v5688, %v5745
        %v5801 = vadd.f32 %v5689, %v5744
        %v5802 = vadd.f32 %v5690, %v5743
        %v5803 = vadd.f32 %v5691, %v5742
        %v5804 = vadd.f32 %v5692, %v5741
        %v5805 = vld [vmem:[%s5] sm:$0x1]
        %v5807 = vperm.slane %v5805, 0
        %v5809 = vmul.f32 %v5773, %v5807
        %v5810 = vmul.f32 %v5774, %v5807
        %v5811 = vmul.f32 %v5775, %v5807
        %v5812 = vmul.f32 %v5776, %v5807
        %v5813 = vmul.f32 %v5777, %v5807
        %v5814 = vmul.f32 %v5778, %v5807
        %v5815 = vmul.f32 %v5779, %v5807
        %v5816 = vmul.f32 %v5780, %v5807
        %v5817 = vmul.f32 %v5781, %v5807
        %v5818 = vmul.f32 %v5782, %v5807
        %v5819 = vmul.f32 %v5783, %v5807
        %v5820 = vmul.f32 %v5784, %v5807
        %v5821 = vmul.f32 %v5785, %v5807
        %v5822 = vmul.f32 %v5786, %v5807
        %v5823 = vmul.f32 %v5787, %v5807
        %v5824 = vmul.f32 %v5788, %v5807
        %v5825 = vmul.f32 %v5789, %v5807
        %v5826 = vmul.f32 %v5790, %v5807
        %v5827 = vmul.f32 %v5791, %v5807
        %v5828 = vmul.f32 %v5792, %v5807
        %v5829 = vmul.f32 %v5793, %v5807
        %v5830 = vmul.f32 %v5794, %v5807
        %v5831 = vmul.f32 %v5795, %v5807
        %v5832 = vmul.f32 %v5796, %v5807
        %v5833 = vmul.f32 %v5797, %v5807
        %v5834 = vmul.f32 %v5798, %v5807
        %v5835 = vmul.f32 %v5799, %v5807
        %v5836 = vmul.f32 %v5800, %v5807
        %v5837 = vmul.f32 %v5801, %v5807
        %v5838 = vmul.f32 %v5802, %v5807
        %v5839 = vmul.f32 %v5803, %v5807
        %v5840 = vmul.f32 %v5804, %v5807
        %v5841 = vld [vmem:[%s6] sm:$0x1]
        %v5843 = vperm.slane %v5841, 0
        %v5845 = vadd.f32 %v5809, %v5843
        %v5846 = vadd.f32 %v5810, %v5843
        %v5847 = vadd.f32 %v5811, %v5843
        %v5848 = vadd.f32 %v5812, %v5843
        %v5849 = vadd.f32 %v5813, %v5843
        %v5850 = vadd.f32 %v5814, %v5843
        %v5851 = vadd.f32 %v5815, %v5843
        %v5852 = vadd.f32 %v5816, %v5843
        %v5853 = vadd.f32 %v5817, %v5843
        %v5854 = vadd.f32 %v5818, %v5843
        %v5855 = vadd.f32 %v5819, %v5843
        %v5856 = vadd.f32 %v5820, %v5843
        %v5857 = vadd.f32 %v5821, %v5843
        %v5858 = vadd.f32 %v5822, %v5843
        %v5859 = vadd.f32 %v5823, %v5843
        %v5860 = vadd.f32 %v5824, %v5843
        %v5861 = vadd.f32 %v5825, %v5843
        %v5862 = vadd.f32 %v5826, %v5843
        %v5863 = vadd.f32 %v5827, %v5843
        %v5864 = vadd.f32 %v5828, %v5843
        %v5865 = vadd.f32 %v5829, %v5843
        %v5866 = vadd.f32 %v5830, %v5843
        %v5867 = vadd.f32 %v5831, %v5843
        %v5868 = vadd.f32 %v5832, %v5843
        %v5869 = vadd.f32 %v5833, %v5843
        %v5870 = vadd.f32 %v5834, %v5843
        %v5871 = vadd.f32 %v5835, %v5843
        %v5872 = vadd.f32 %v5836, %v5843
        %v5873 = vadd.f32 %v5837, %v5843
        %v5874 = vadd.f32 %v5838, %v5843
        %v5875 = vadd.f32 %v5839, %v5843
        %v5876 = vadd.f32 %v5840, %v5843
        %v5877 = vunpack.c.l.bf16 %v369
        %v5878 = vunpack.c.l.bf16 %v370
        %v5879 = vunpack.c.l.bf16 %v372
        %v5880 = vunpack.c.l.bf16 %v373
        %v5881 = vunpack.c.l.bf16 %v375
        %v5882 = vunpack.c.l.bf16 %v376
        %v5883 = vunpack.c.l.bf16 %v378
        %v5884 = vunpack.c.l.bf16 %v379
        %v5885 = vunpack.c.l.bf16 %v381
        %v5886 = vunpack.c.l.bf16 %v382
        %v5887 = vunpack.c.l.bf16 %v384
        %v5888 = vunpack.c.l.bf16 %v385
        %v5889 = vunpack.c.l.bf16 %v387
        %v5890 = vunpack.c.l.bf16 %v388
        %v5891 = vunpack.c.l.bf16 %v390
        %v5892 = vunpack.c.l.bf16 %v391
        %v5893 = vunpack.c.l.bf16 %v393
        %v5894 = vunpack.c.l.bf16 %v394
        %v5895 = vunpack.c.l.bf16 %v396
        %v5896 = vunpack.c.l.bf16 %v397
        %v5897 = vunpack.c.l.bf16 %v399
        %v5898 = vunpack.c.l.bf16 %v400
        %v5899 = vunpack.c.l.bf16 %v402
        %v5900 = vunpack.c.l.bf16 %v403
        %v5901 = vunpack.c.l.bf16 %v405
        %v5902 = vunpack.c.l.bf16 %v406
        %v5903 = vunpack.c.l.bf16 %v408
        %v5904 = vunpack.c.l.bf16 %v409
        %v5905 = vunpack.c.l.bf16 %v411
        %v5906 = vunpack.c.l.bf16 %v412
        %v5907 = vunpack.c.l.bf16 %v414
        %v5908 = vunpack.c.l.bf16 %v415
        %v5909 = vadd.f32 %v5845, %v5877
        %v5910 = vadd.f32 %v5846, %v5878
        %v5911 = vadd.f32 %v5847, %v5879
        %v5912 = vadd.f32 %v5848, %v5880
        %v5913 = vadd.f32 %v5849, %v5881
        %v5914 = vadd.f32 %v5850, %v5882
        %v5915 = vadd.f32 %v5851, %v5883
        %v5916 = vadd.f32 %v5852, %v5884
        %v5917 = vadd.f32 %v5853, %v5885
        %v5918 = vadd.f32 %v5854, %v5886
        %v5919 = vadd.f32 %v5855, %v5887
        %v5920 = vadd.f32 %v5856, %v5888
        %v5921 = vadd.f32 %v5857, %v5889
        %v5922 = vadd.f32 %v5858, %v5890
        %v5923 = vadd.f32 %v5859, %v5891
        %v5924 = vadd.f32 %v5860, %v5892
        %v5925 = vadd.f32 %v5861, %v5893
        %v5926 = vadd.f32 %v5862, %v5894
        %v5927 = vadd.f32 %v5863, %v5895
        %v5928 = vadd.f32 %v5864, %v5896
        %v5929 = vadd.f32 %v5865, %v5897
        %v5930 = vadd.f32 %v5866, %v5898
        %v5931 = vadd.f32 %v5867, %v5899
        %v5932 = vadd.f32 %v5868, %v5900
        %v5933 = vadd.f32 %v5869, %v5901
        %v5934 = vadd.f32 %v5870, %v5902
        %v5935 = vadd.f32 %v5871, %v5903
        %v5936 = vadd.f32 %v5872, %v5904
        %v5937 = vadd.f32 %v5873, %v5905
        %v5938 = vadd.f32 %v5874, %v5906
        %v5939 = vadd.f32 %v5875, %v5907
        %v5940 = vadd.f32 %v5876, %v5908
        %v5941 = vmax.f32 %v5909, 0.0
        %v5942 = vmax.f32 %v5910, 0.0
        %v5943 = vmax.f32 %v5911, 0.0
        %v5944 = vmax.f32 %v5912, 0.0
        %v5945 = vmax.f32 %v5913, 0.0
        %v5946 = vmax.f32 %v5914, 0.0
        %v5947 = vmax.f32 %v5915, 0.0
        %v5948 = vmax.f32 %v5916, 0.0
        %v5949 = vmax.f32 %v5917, 0.0
        %v5950 = vmax.f32 %v5918, 0.0
        %v5951 = vmax.f32 %v5919, 0.0
        %v5952 = vmax.f32 %v5920, 0.0
        %v5953 = vmax.f32 %v5921, 0.0
        %v5954 = vmax.f32 %v5922, 0.0
        %v5955 = vmax.f32 %v5923, 0.0
        %v5956 = vmax.f32 %v5924, 0.0
        %v5957 = vmax.f32 %v5925, 0.0
        %v5958 = vmax.f32 %v5926, 0.0
        %v5959 = vmax.f32 %v5927, 0.0
        %v5960 = vmax.f32 %v5928, 0.0
        %v5961 = vmax.f32 %v5929, 0.0
        %v5962 = vmax.f32 %v5930, 0.0
        %v5963 = vmax.f32 %v5931, 0.0
        %v5964 = vmax.f32 %v5932, 0.0
        %v5965 = vmax.f32 %v5933, 0.0
        %v5966 = vmax.f32 %v5934, 0.0
        %v5967 = vmax.f32 %v5935, 0.0
        %v5968 = vmax.f32 %v5936, 0.0
        %v5969 = vmax.f32 %v5937, 0.0
        %v5970 = vmax.f32 %v5938, 0.0
        %v5971 = vmax.f32 %v5939, 0.0
        %v5972 = vmax.f32 %v5940, 0.0
        %v5973 = vpack.c.bf16 %v5941, %v5941
        %v5974 = vpack.c.bf16 %v5942, %v5942
        %v5975 = vpack.c.bf16 %v5943, %v5943
        %v5976 = vpack.c.bf16 %v5944, %v5944
        %v5977 = vpack.c.bf16 %v5945, %v5945
        %v5978 = vpack.c.bf16 %v5946, %v5946
        %v5979 = vpack.c.bf16 %v5947, %v5947
        %v5980 = vpack.c.bf16 %v5948, %v5948
        %v5981 = vpack.c.bf16 %v5949, %v5949
        %v5982 = vpack.c.bf16 %v5950, %v5950
        %v5983 = vpack.c.bf16 %v5951, %v5951
        %v5984 = vpack.c.bf16 %v5952, %v5952
        %v5985 = vpack.c.bf16 %v5953, %v5953
        %v5986 = vpack.c.bf16 %v5954, %v5954
        %v5987 = vpack.c.bf16 %v5955, %v5955
        %v5988 = vpack.c.bf16 %v5956, %v5956
        %v5989 = vpack.c.bf16 %v5957, %v5957
        %v5990 = vpack.c.bf16 %v5958, %v5958
        %v5991 = vpack.c.bf16 %v5959, %v5959
        %v5992 = vpack.c.bf16 %v5960, %v5960
        %v5993 = vpack.c.bf16 %v5961, %v5961
        %v5994 = vpack.c.bf16 %v5962, %v5962
        %v5995 = vpack.c.bf16 %v5963, %v5963
        %v5996 = vpack.c.bf16 %v5964, %v5964
        %v5997 = vpack.c.bf16 %v5965, %v5965
        %v5998 = vpack.c.bf16 %v5966, %v5966
        %v5999 = vpack.c.bf16 %v5967, %v5967
        %v6000 = vpack.c.bf16 %v5968, %v5968
        %v6001 = vpack.c.bf16 %v5969, %v5969
        %v6002 = vpack.c.bf16 %v5970, %v5970
        %v6003 = vpack.c.bf16 %v5971, %v5971
        %v6004 = vpack.c.bf16 %v5972, %v5972
        %6005 = vst [vmem:[%s278] sm:$0xf] %v5973
        %6006 = vst [vmem:[%s278 + $0x4] sm:$0xf] %v5974
        %6007 = vst [vmem:[%s278 + $0x8] sm:$0xf] %v5975
        %6008 = vst [vmem:[%s278 + $0xc] sm:$0xf] %v5976
        %6009 = vst [vmem:[%s278 + $0x10] sm:$0xf] %v5977
        %6010 = vst [vmem:[%s278 + $0x14] sm:$0xf] %v5978
        %6011 = vst [vmem:[%s278 + $0x18] sm:$0xf] %v5979
        %6012 = vst [vmem:[%s278 + $0x1c] sm:$0xf] %v5980
        %6013 = vst [vmem:[%s278 + $0x20] sm:$0xf] %v5981
        %6014 = vst [vmem:[%s278 + $0x24] sm:$0xf] %v5982
        %6015 = vst [vmem:[%s278 + $0x28] sm:$0xf] %v5983
        %6016 = vst [vmem:[%s278 + $0x2c] sm:$0xf] %v5984
        %6017 = vst [vmem:[%s278 + $0x30] sm:$0xf] %v5985
        %6018 = vst [vmem:[%s278 + $0x34] sm:$0xf] %v5986
        %6019 = vst [vmem:[%s278 + $0x38] sm:$0xf] %v5987
        %6020 = vst [vmem:[%s278 + $0x3c] sm:$0xf] %v5988
        %6021 = vst [vmem:[%s278 + $0x40] sm:$0xf] %v5989
        %6022 = vst [vmem:[%s278 + $0x44] sm:$0xf] %v5990
        %6023 = vst [vmem:[%s278 + $0x48] sm:$0xf] %v5991
        %6024 = vst [vmem:[%s278 + $0x4c] sm:$0xf] %v5992
        %6025 = vst [vmem:[%s278 + $0x50] sm:$0xf] %v5993
        %6026 = vst [vmem:[%s278 + $0x54] sm:$0xf] %v5994
        %6027 = vst [vmem:[%s278 + $0x58] sm:$0xf] %v5995
        %6028 = vst [vmem:[%s278 + $0x5c] sm:$0xf] %v5996
        %6029 = vst [vmem:[%s278 + $0x60] sm:$0xf] %v5997
        %6030 = vst [vmem:[%s278 + $0x64] sm:$0xf] %v5998
        %6031 = vst [vmem:[%s278 + $0x68] sm:$0xf] %v5999
        %6032 = vst [vmem:[%s278 + $0x6c] sm:$0xf] %v6000
        %6033 = vst [vmem:[%s278 + $0x70] sm:$0xf] %v6001
        %6034 = vst [vmem:[%s278 + $0x74] sm:$0xf] %v6002
        %6035 = vst [vmem:[%s278 + $0x78] sm:$0xf] %v6003
        %6036 = vst [vmem:[%s278 + $0x7c] sm:$0xf] %v6004
        %s6037 = sand.u32 %s171, 1
        %s6038 = scalar_lea.sflag [#allocation6], %s6037
        %s6039 = sand.u32 %s171, 1
        %s6040 = smul.addr %s6039, 128
        %s6041 = scalar_lea.vmem [#allocation9], %s6040
        // Predicated region
        $region69: #{tpu_custom_call.1} parent=43 // pred_check
          %p6042 = pneg %p181
        $region70: #{tpu_custom_call.1} parent=43 // pred_check_branch
          %6044 = sbr.rel (%p6042) target = $region72
        $region71: #{tpu_custom_call.1} parent=43 // pred_region
          %s6045 = smul.u32 16, %s28
          %6047 = vsyncadd %s6038, 0
          %s6048 = smul.addr %s6045, 2
          %s6049 = smul.addr %s27, 32
          %s6050 = sadd.s32 %s6048, %s6049
          %s6051 = smul.addr %s6050, 4
          %s6052 = scalar_lea.hbm %s7, %s6051
          %s6053 = sshll.u32 %s6041, 4
          %s6054 = int_to_ptr.vmem [resolvable:$true] %s6053
          %s6055 = sshll.u32 %s6052, 4
          %s6056 = int_to_ptr.hbm [resolvable:$true] %s6055
          %6061 = dma.vmem_to_hbm [thread:$0]  %s6054, 2048, %s6056, %s6038, 64, 64, 4
        $region72: #{tpu_custom_call.1} parent=43 // pred_fallthru
          _
      $region44: #{tpu_custom_call.1} parent=5 // pred_fallthru
        _
      %p6062 = scmp.le.s32.totalorder 2, %s18
      // Predicated region
      $region73: #{tpu_custom_call.1} parent=5 // pred_check
        %p6063 = pneg %p6062
      $region74: #{tpu_custom_call.1} parent=5 // pred_check_branch
        %6065 = sbr.rel (%p6063) target = $region76
      $region75: #{tpu_custom_call.1} parent=5 // pred_region
        %s6066 = ssub.s32 %s18, 2
        // Predicated region
        $region77: #{tpu_custom_call.1} parent=75 // pred_check
          %p6067 = pneg %p187
        $region78: #{tpu_custom_call.1} parent=75 // pred_check_branch
          %6069 = sbr.rel (%p6067) target = $region80
        $region79: #{tpu_custom_call.1} parent=75 // pred_region
          %s6070 = sand.u32 %s172, 1
          %s6071 = scalar_lea.sflag [#allocation6], %s6070
          %s6072 = sand.u32 %s172, 1
          %s6073 = smul.addr %s6072, 128
          %s6074 = scalar_lea.vmem [#allocation9], %s6073
          %6076 = dma.done %s6071, 2048
        $region80: #{tpu_custom_call.1} parent=75 // pred_fallthru
          _
      $region76: #{tpu_custom_call.1} parent=5 // pred_fallthru
        _
    $region6: #{tpu_custom_call.1} parent=1 // loop_footer
      %s22 = sadd.s32 1, %s18
    $region7: #{tpu_custom_call.1} parent=1 // loop_footer_branch
      %17 = sbr.rel target = $region3
    $region8: #{tpu_custom_call.1} parent=1 // loop_exit
      _
    %6077 = vsyncpa [#allocation5], 1
    %s6078 = scalar_lea.sflag [#allocation5], 1
    %6079 = vsyncpa %s6078, 1
    %6080 = vsyncpa [#allocation8], 1
    %6081 = vsyncpa [#allocation6], 1
    %s6082 = scalar_lea.sflag [#allocation6], 1
    %6083 = vsyncpa %s6082, 1
  %6084 = vsyncmov [#allocation3]
  %s6085 = vpop.sfrf %6084
  %p6086 = scmp.eq.s32.totalorder %s6085, 0
  %p6087 = pneg %p6086
  %6089 = shalt.err (%p6087)
  %s6090 = scalar_lea.sflag [#allocation3], 1
  %6091 = vsyncmov %s6090
  %s6092 = vpop.sfrf %6091
  %p6093 = scmp.eq.s32.totalorder %s6092, 0
  %p6094 = pneg %p6093
  %6096 = shalt.err (%p6094)

</llo_original>
